<compile_context>
chip_gen: v7x
topology: tpu7x:2x2x1
jax: 0.10.0
libtpu: 0.0.40
codegen_flags: <defaults>
</compile_context>

<pallas_src>
import functools

import jax
import jax.numpy as jnp
import numpy as np
from jax.experimental import pallas as pl
from jax.experimental.pallas import tpu as pltpu


_VMEM_LIMIT_BYTES = 48 * 1024 * 1024      # < v7x 64 MiB physical, > v5e 16 MiB default
_ROW_TILE_BUDGET_BYTES = 12 * 1024 * 1024  # per buffered copy (Pallas double-buffers)


# --------------------------------------------------------------------------
# In-kernel helpers
# --------------------------------------------------------------------------
def _block_sums(a, pht, pwt):
    """Block sums of `a` (rows, cols) -> (n_row_blocks, n_col_blocks).

    pht : (n_row_blocks, rows) 0/1 row-pooling matrix (lane-dense layout)
    pwt : (n_col_blocks, cols) 0/1 col-pooling matrix (lane-dense layout)
    """
    t = jnp.dot(pht, a, preferred_element_type=jnp.float32)          # (nbh, cols)
    return jax.lax.dot_general(                                      # (nbh, nbw)
        t, pwt, (((1,), (1,)), ((), ())), preferred_element_type=jnp.float32)


def _q_block_sum(sx, sy, sxx, syy, sxy, n):
    """Sum over the block grid of the per-block UIQI (Q) values."""
    mul = sx * sy                           # outputs_sum * labels_sum
    sumsq = sx * sx + sy * sy               # outputs_sum**2 + labels_sum**2
    numerator = 4.0 * (n * sxy - mul) * mul
    den_temp = n * (sxx + syy) - sumsq
    denominator = den_temp * sumsq

    den_safe = jnp.where(denominator != 0.0, denominator, 1.0)
    sumsq_safe = jnp.where(sumsq != 0.0, sumsq, 1.0)

    q_map = jnp.ones_like(denominator)
    q_map = jnp.where((den_temp == 0.0) & (sumsq != 0.0),
                      2.0 * mul / sumsq_safe, q_map)
    q_map = jnp.where(denominator != 0.0, numerator / den_safe, q_map)
    return jnp.sum(q_map)


def _accumulate_q_means(x_ref, y, pht, pwt, o_ref, *, n_pix, nbands, inv_nblocks):
    """Add this row-tile's contribution to the per-band Q mean (o_ref: (1,1,C))."""
    # PAN statistics: computed once, shared by every band.
    sy = _block_sums(y, pht, pwt)
    syy = _block_sums(y * y, pht, pwt)

    n = jnp.float32(n_pix)
    lane = jax.lax.broadcasted_iota(jnp.int32, o_ref.shape, len(o_ref.shape) - 1)
    acc = jnp.zeros(o_ref.shape, jnp.float32)
    for c in range(nbands):                 # static unroll: nbands is small
        x = x_ref[0, c]                     # (tile_rows, W)
        sx = _block_sums(x, pht, pwt)
        sxx = _block_sums(x * x, pht, pwt)
        sxy = _block_sums(x * y, pht, pwt)
        qs = _q_block_sum(sx, sy, sxx, syy, sxy, n)
        acc = acc + jnp.where(lane == c, qs, 0.0)

    o_ref[...] += acc * jnp.float32(inv_nblocks)


# --------------------------------------------------------------------------
# Pallas kernels
# --------------------------------------------------------------------------
def _q_mean_kernel(x_ref, y_ref, pht_ref, pwt_ref, o_ref,
                   *, n_pix, nbands, inv_nblocks):
    """High-res pass: x = fused outputs (1,C,tile,W), y = PAN (1,1,tile,W)."""
    @pl.when(pl.program_id(1) == 0)
    def _():
        o_ref[...] = jnp.zeros_like(o_ref)

    _accumulate_q_means(x_ref, y_ref[0, 0], pht_ref[...], pwt_ref[...], o_ref,
                        n_pix=n_pix, nbands=nbands, inv_nblocks=inv_nblocks)


def _q_mean_ds_kernel(x_ref, pan_ref, pht_ref, pwt_ref, dh_ref, dw_ref, o_ref,
                      *, n_pix, nbands, inv_nblocks, inv_area):
    """Low-res pass: x = MS (1,C,tile_lo,Wl); PAN is area-downsampled in-kernel."""
    @pl.when(pl.program_id(1) == 0)
    def _():
        o_ref[...] = jnp.zeros_like(o_ref)

    # Fused area (box) downsample of the full-res PAN tile -> (tile_lo, Wl).
    t = jnp.dot(dh_ref[...], pan_ref[0, 0], preferred_element_type=jnp.float32)
    y = jax.lax.dot_general(
        t, dw_ref[...], (((1,), (1,)), ((), ())),
        preferred_element_type=jnp.float32) * jnp.float32(inv_area)

    _accumulate_q_means(x_ref, y, pht_ref[...], pwt_ref[...], o_ref,
                        n_pix=n_pix, nbands=nbands, inv_nblocks=inv_nblocks)


# --------------------------------------------------------------------------
# Host-side helpers (cached constant matrices, tiling choice)
# --------------------------------------------------------------------------
@functools.lru_cache(maxsize=None)
def _pool_mats(rows, cols, block):
    """Lane-dense 0/1 pooling matrices: (rows//block, rows), (cols//block, cols)."""
    nbr, nbc = rows // block, cols // block
    pht = (np.arange(nbr)[:, None] == (np.arange(rows) // block)[None, :])
    pwt = (np.arange(nbc)[:, None] == (np.arange(cols) // block)[None, :])
    return jnp.asarray(pht, jnp.float32), jnp.asarray(pwt, jnp.float32)


@functools.lru_cache(maxsize=None)
def _down_mats(rows_hi, cols_hi, ratio):
    """Lane-dense 0/1 box-downsample matrices: (rows_hi//r, rows_hi), (cols_hi//r, cols_hi)."""
    rlo, clo = rows_hi // ratio, cols_hi // ratio
    dh = (np.arange(rlo)[:, None] == (np.arange(rows_hi) // ratio)[None, :])
    dw = (np.arange(clo)[:, None] == (np.arange(cols_hi) // ratio)[None, :])
    return jnp.asarray(dh, jnp.float32), jnp.asarray(dw, jnp.float32)


def _choose_row_tile(n_rows, block, bytes_per_row, budget=_ROW_TILE_BUDGET_BYTES):
    """Largest multiple of `block` dividing n_rows with tile*bytes_per_row <= budget."""
    max_rows = max(block, budget // max(1, bytes_per_row))
    tile, cand = block, block
    while cand <= n_rows:
        if n_rows % cand == 0 and cand <= max_rows:
            tile = cand
        cand += block
    return tile


# --------------------------------------------------------------------------
# Wrappers
# --------------------------------------------------------------------------
def q_index_high(x, pan, block_size):
    """Block-wise UIQI between each band of x and the (shared) PAN. Returns (B, C)."""
    B, C, H, W = x.shape
    assert H % block_size == 0 and W % block_size == 0
    row_tile = _choose_row_tile(H, block_size, (C + 1) * W * 4)
    n_ht = H // row_tile
    nbh_t, nbw = row_tile // block_size, W // block_size
    nblocks = (H // block_size) * nbw
    pht, pwt = _pool_mats(row_tile, W, block_size)

    kernel = functools.partial(
        _q_mean_kernel, n_pix=float(block_size * block_size),
        nbands=C, inv_nblocks=1.0 / float(nblocks))

    out = pl.pallas_call(
        kernel,
        out_shape=jax.ShapeDtypeStruct((B, 1, C), jnp.float32),
        grid=(B, n_ht),
        in_specs=[
            pl.BlockSpec((1, C, row_tile, W), lambda b, h: (b, 0, h, 0)),
            # PAN has a single channel; reading it once per tile reproduces
            # pan.repeat(1, nbands, 1, 1) with no data duplication.
            pl.BlockSpec((1, 1, row_tile, W), lambda b, h: (b, 0, h, 0)),
            pl.BlockSpec((nbh_t, row_tile), lambda b, h: (0, 0)),
            pl.BlockSpec((nbw, W), lambda b, h: (0, 0)),
        ],
        out_specs=pl.BlockSpec((1, 1, C), lambda b, h: (b, 0, 0)),
        compiler_params=pltpu.CompilerParams(
            dimension_semantics=("parallel", "arbitrary"),
            vmem_limit_bytes=_VMEM_LIMIT_BYTES),
    )(x, pan, pht, pwt)
    return out[:, 0, :]


def q_index_low(ms, pan, block_size, ratio):
    """Block-wise UIQI between MS bands and the box-downsampled PAN (fused). (B, C)."""
    B, C, Hl, Wl = ms.shape
    Bp, Cp, H, W = pan.shape
    assert Bp == B and Cp == 1 and H == Hl * ratio and W == Wl * ratio
    assert Hl % block_size == 0 and Wl % block_size == 0

    bytes_per_lo_row = (C * Wl + ratio * W) * 4   # ms rows + matching PAN rows
    tile_lo = _choose_row_tile(Hl, block_size, bytes_per_lo_row)
    tile_hi = tile_lo * ratio
    n_ht = Hl // tile_lo
    nbh_t, nbw = tile_lo // block_size, Wl // block_size
    nblocks = (Hl // block_size) * nbw
    pht, pwt = _pool_mats(tile_lo, Wl, block_size)
    dh, dw = _down_mats(tile_hi, W, ratio)

    kernel = functools.partial(
        _q_mean_ds_kernel, n_pix=float(block_size * block_size),
        nbands=C, inv_nblocks=1.0 / float(nblocks),
        inv_area=1.0 / float(ratio * ratio))

    out = pl.pallas_call(
        kernel,
        out_shape=jax.ShapeDtypeStruct((B, 1, C), jnp.float32),
        grid=(B, n_ht),
        in_specs=[
            pl.BlockSpec((1, C, tile_lo, Wl), lambda b, h: (b, 0, h, 0)),
            pl.BlockSpec((1, 1, tile_hi, W), lambda b, h: (b, 0, h, 0)),
            pl.BlockSpec((nbh_t, tile_lo), lambda b, h: (0, 0)),
            pl.BlockSpec((nbw, Wl), lambda b, h: (0, 0)),
            pl.BlockSpec((tile_lo, tile_hi), lambda b, h: (0, 0)),
            pl.BlockSpec((Wl, W), lambda b, h: (0, 0)),
        ],
        out_specs=pl.BlockSpec((1, 1, C), lambda b, h: (b, 0, 0)),
        compiler_params=pltpu.CompilerParams(
            dimension_semantics=("parallel", "arbitrary"),
            vmem_limit_bytes=_VMEM_LIMIT_BYTES),
    )(ms, pan, pht, pwt, dh, dw)
    return out[:, 0, :]


def d_s(outputs, pan, ms, *, nbands, ratio=4, q=1, q_block_size=32):
    """D_s.forward: outputs (B,nbands,H,W), pan (B,1,H,W), ms (B,nbands,H/r,W/r)."""
    # TODO(synk): original `resize(scale=1/ratio)` may use a bicubic / MTF-matched
    #             interpolator; an exact area (box) downsample is used here.
    q_high = q_index_high(outputs, pan, q_block_size)           # (B, nbands)
    q_low = q_index_low(ms, pan, q_block_size // ratio, ratio)  # (B, nbands)
    ds = jnp.sum(jnp.abs(q_high - q_low) ** q, axis=1)          # (B,)
    return (ds / nbands) ** (1.0 / q)


# --------------------------------------------------------------------------
# Pure-JAX reference (for correctness check; mirrors the kernel's box filter)
# --------------------------------------------------------------------------
def _q_ref(x, y, block):
    B, C, H, W = x.shape
    y = jnp.broadcast_to(y, x.shape)

    def bsum(a):
        return a.reshape(B, C, H // block, block, W // block, block).sum(axis=(3, 5))

    sx, sy = bsum(x), bsum(y)
    sxx, syy, sxy = bsum(x * x), bsum(y * y), bsum(x * y)
    n = float(block * block)
    mul = sx * sy
    sumsq = sx * sx + sy * sy
    numerator = 4.0 * (n * sxy - mul) * mul
    den_temp = n * (sxx + syy) - sumsq
    denominator = den_temp * sumsq
    qm = jnp.ones_like(denominator)
    qm = jnp.where((den_temp == 0.0) & (sumsq != 0.0),
                   2.0 * mul / jnp.where(sumsq != 0.0, sumsq, 1.0), qm)
    qm = jnp.where(denominator != 0.0,
                   numerator / jnp.where(denominator != 0.0, denominator, 1.0), qm)
    return qm.mean(axis=(2, 3))


def _d_s_reference(outputs, pan, ms, *, nbands, ratio, q, q_block_size):
    B, _, H, W = pan.shape
    pan_lr = pan.reshape(B, 1, H // ratio, ratio, W // ratio, ratio).mean(axis=(3, 5))
    qh = _q_ref(outputs, pan, q_block_size)
    ql = _q_ref(ms, pan_lr, q_block_size // ratio)
    ds = jnp.sum(jnp.abs(qh - ql) ** q, axis=1)
    return (ds / nbands) ** (1.0 / q)


# --------------------------------------------------------------------------
if __name__ == "__main__":
    B, nbands, ratio, q_block_size, qexp = 2, 4, 4, 32, 1
    H = W = 64

    key = jax.random.PRNGKey(0)
    k1, k2, k3 = jax.random.split(key, 3)
    outputs = jax.random.uniform(k1, (B, nbands, H, W), jnp.float32)
    pan = jax.random.uniform(k2, (B, 1, H, W), jnp.float32)
    ms = jax.random.uniform(k3, (B, nbands, H // ratio, W // ratio), jnp.float32)

    ds = d_s(outputs, pan, ms, nbands=nbands, ratio=ratio, q=qexp,
             q_block_size=q_block_size)
    ds = jax.block_until_ready(ds)
    assert ds.shape == (B,)

    ref = _d_s_reference(outputs, pan, ms, nbands=nbands, ratio=ratio, q=qexp,
                         q_block_size=q_block_size)
    np.testing.assert_allclose(np.asarray(ds), np.asarray(ref), rtol=2e-3, atol=1e-5)
    print("KERNEL_OK")
</pallas_src>

<mosaic_0001>
module attributes {stable_mosaic.version = 11 : i64} {
  func.func @_q_mean_kernel(%arg0: i32, %arg1: i32, %arg2: memref<1x4x64x64xf32, #tpu.memory_space<vmem>>, %arg3: memref<1x1x64x64xf32, #tpu.memory_space<vmem>>, %arg4: memref<2x64xf32, #tpu.memory_space<vmem>>, %arg5: memref<2x64xf32, #tpu.memory_space<vmem>>, %arg6: memref<1x1x4xf32, #tpu.memory_space<vmem>>) attributes {dimension_semantics = [#tpu.dimension_semantics<parallel>, #tpu.dimension_semantics<arbitrary>], iteration_bounds = array<i64: 2, 1>, scalar_prefetch = 0 : i64, scratch_operands = 0 : i64, tpu.core_type = #tpu.core_type<tc>, window_params = [{transform_indices = @transform_0, window_bounds = array<i64: 1, 4, 64, 64>}, {transform_indices = @transform_1, window_bounds = array<i64: 1, 1, 64, 64>}, {pipeline_mode = #tpu.pipeline_mode<synchronous>, transform_indices = @transform_2, window_bounds = array<i64: 2, 64>}, {pipeline_mode = #tpu.pipeline_mode<synchronous>, transform_indices = @transform_3, window_bounds = array<i64: 2, 64>}, {transform_indices = @transform_4, window_bounds = array<i64: 1, 1, 4>}]} {
    %c0_i32 = arith.constant 0 : i32
    %0 = arith.cmpi eq, %arg1, %c0_i32 : i32
    %1 = arith.extui %0 : i1 to i32
    %c0_i32_0 = arith.constant 0 : i32
    %2 = arith.cmpi ne, %1, %c0_i32_0 : i32
    scf.if %2 {
      %cst_113 = arith.constant 0.000000e+00 : f32
      %247 = vector.broadcast %cst_113 : f32 to vector<1x1x4xf32>
      %c0_114 = arith.constant 0 : index
      %c0_115 = arith.constant 0 : index
      %c0_116 = arith.constant 0 : index
      %248 = vector.load %arg6[%c0_114, %c0_115, %c0_116] : memref<1x1x4xf32, #tpu.memory_space<vmem>>, vector<1x1x4xf32>
      tpu.vector_store %arg6[%c0_114, %c0_115, %c0_116], %247 {strides = array<i32>} : memref<1x1x4xf32, #tpu.memory_space<vmem>>, vector<1x1x4xf32>,
    } else {
    }
    %c0 = arith.constant 0 : index
    %c0_1 = arith.constant 0 : index
    %c0_2 = arith.constant 0 : index
    %c0_3 = arith.constant 0 : index
    %3 = vector.load %arg3[%c0, %c0_1, %c0_2, %c0_3] : memref<1x1x64x64xf32, #tpu.memory_space<vmem>>, vector<1x1x64x64xf32>
    %4 = vector.shape_cast %3 : vector<1x1x64x64xf32> to vector<64x64xf32>
    %c0_4 = arith.constant 0 : index
    %c0_5 = arith.constant 0 : index
    %5 = vector.load %arg4[%c0_4, %c0_5] : memref<2x64xf32, #tpu.memory_space<vmem>>, vector<2x64xf32>
    %c0_6 = arith.constant 0 : index
    %c0_7 = arith.constant 0 : index
    %6 = vector.load %arg5[%c0_6, %c0_7] : memref<2x64xf32, #tpu.memory_space<vmem>>, vector<2x64xf32>
    %cst = arith.constant dense<0.000000e+00> : vector<2x64xf32>
    %7 = tpu.matmul %5, %4, %cst {dimension_numbers = #tpu.dot_dimension_numbers<[1], [0], [0], [1], [0, 0, 1, 1], [], []>} : vector<2x64xf32>, vector<64x64xf32>, vector<2x64xf32> -> vector<2x64xf32>
    %cst_8 = arith.constant dense<0.000000e+00> : vector<2x2xf32>
    %8 = tpu.matmul %7, %6, %cst_8 {dimension_numbers = #tpu.dot_dimension_numbers<[1], [1], [0], [0], [0, 0, 1, 0], [], []>} : vector<2x64xf32>, vector<2x64xf32>, vector<2x2xf32> -> vector<2x2xf32>
    %9 = arith.mulf %4, %4 : vector<64x64xf32>
    %cst_9 = arith.constant dense<0.000000e+00> : vector<2x64xf32>
    %10 = tpu.matmul %5, %9, %cst_9 {dimension_numbers = #tpu.dot_dimension_numbers<[1], [0], [0], [1], [0, 0, 1, 1], [], []>} : vector<2x64xf32>, vector<64x64xf32>, vector<2x64xf32> -> vector<2x64xf32>
    %cst_10 = arith.constant dense<0.000000e+00> : vector<2x2xf32>
    %11 = tpu.matmul %10, %6, %cst_10 {dimension_numbers = #tpu.dot_dimension_numbers<[1], [1], [0], [0], [0, 0, 1, 0], [], []>} : vector<2x64xf32>, vector<2x64xf32>, vector<2x2xf32> -> vector<2x2xf32>
    %12 = tpu.iota {dimensions = array<i32: 2>} : vector<1x1x4xi32>
    %cst_11 = arith.constant 0.000000e+00 : f32
    %13 = vector.broadcast %cst_11 : f32 to vector<1x1x4xf32>
    %c0_12 = arith.constant 0 : index
    %c0_13 = arith.constant 0 : index
    %c0_14 = arith.constant 0 : index
    %c0_15 = arith.constant 0 : index
    %14 = vector.load %arg2[%c0_12, %c0_13, %c0_14, %c0_15] : memref<1x4x64x64xf32, #tpu.memory_space<vmem>>, vector<1x1x64x64xf32>
    %15 = vector.shape_cast %14 : vector<1x1x64x64xf32> to vector<64x64xf32>
    %cst_16 = arith.constant dense<0.000000e+00> : vector<2x64xf32>
    %16 = tpu.matmul %5, %15, %cst_16 {dimension_numbers = #tpu.dot_dimension_numbers<[1], [0], [0], [1], [0, 0, 1, 1], [], []>} : vector<2x64xf32>, vector<64x64xf32>, vector<2x64xf32> -> vector<2x64xf32>
    %cst_17 = arith.constant dense<0.000000e+00> : vector<2x2xf32>
    %17 = tpu.matmul %16, %6, %cst_17 {dimension_numbers = #tpu.dot_dimension_numbers<[1], [1], [0], [0], [0, 0, 1, 0], [], []>} : vector<2x64xf32>, vector<2x64xf32>, vector<2x2xf32> -> vector<2x2xf32>
    %18 = arith.mulf %15, %15 : vector<64x64xf32>
    %cst_18 = arith.constant dense<0.000000e+00> : vector<2x64xf32>
    %19 = tpu.matmul %5, %18, %cst_18 {dimension_numbers = #tpu.dot_dimension_numbers<[1], [0], [0], [1], [0, 0, 1, 1], [], []>} : vector<2x64xf32>, vector<64x64xf32>, vector<2x64xf32> -> vector<2x64xf32>
    %cst_19 = arith.constant dense<0.000000e+00> : vector<2x2xf32>
    %20 = tpu.matmul %19, %6, %cst_19 {dimension_numbers = #tpu.dot_dimension_numbers<[1], [1], [0], [0], [0, 0, 1, 0], [], []>} : vector<2x64xf32>, vector<2x64xf32>, vector<2x2xf32> -> vector<2x2xf32>
    %21 = arith.mulf %15, %4 : vector<64x64xf32>
    %cst_20 = arith.constant dense<0.000000e+00> : vector<2x64xf32>
    %22 = tpu.matmul %5, %21, %cst_20 {dimension_numbers = #tpu.dot_dimension_numbers<[1], [0], [0], [1], [0, 0, 1, 1], [], []>} : vector<2x64xf32>, vector<64x64xf32>, vector<2x64xf32> -> vector<2x64xf32>
    %cst_21 = arith.constant dense<0.000000e+00> : vector<2x2xf32>
    %23 = tpu.matmul %22, %6, %cst_21 {dimension_numbers = #tpu.dot_dimension_numbers<[1], [1], [0], [0], [0, 0, 1, 0], [], []>} : vector<2x64xf32>, vector<2x64xf32>, vector<2x2xf32> -> vector<2x2xf32>
    %24 = arith.mulf %17, %8 : vector<2x2xf32>
    %25 = arith.mulf %17, %17 : vector<2x2xf32>
    %26 = arith.mulf %8, %8 : vector<2x2xf32>
    %27 = arith.addf %25, %26 : vector<2x2xf32>
    %cst_22 = arith.constant 1.024000e+03 : f32
    %28 = vector.broadcast %cst_22 : f32 to vector<2x2xf32>
    %29 = arith.mulf %28, %23 : vector<2x2xf32>
    %30 = arith.subf %29, %24 : vector<2x2xf32>
    %cst_23 = arith.constant 4.000000e+00 : f32
    %31 = vector.broadcast %cst_23 : f32 to vector<2x2xf32>
    %32 = arith.mulf %31, %30 : vector<2x2xf32>
    %33 = arith.mulf %32, %24 : vector<2x2xf32>
    %34 = arith.addf %20, %11 : vector<2x2xf32>
    %cst_24 = arith.constant 1.024000e+03 : f32
    %35 = vector.broadcast %cst_24 : f32 to vector<2x2xf32>
    %36 = arith.mulf %35, %34 : vector<2x2xf32>
    %37 = arith.subf %36, %27 : vector<2x2xf32>
    %38 = arith.mulf %37, %27 : vector<2x2xf32>
    %cst_25 = arith.constant 0.000000e+00 : f32
    %39 = vector.broadcast %cst_25 : f32 to vector<2x2xf32>
    %40 = arith.cmpf one, %38, %39 : vector<2x2xf32>
    %cst_26 = arith.constant 1.000000e+00 : f32
    %41 = vector.broadcast %cst_26 : f32 to vector<2x2xf32>
    %42 = arith.select %40, %38, %41 : vector<2x2xi1>, vector<2x2xf32>
    %cst_27 = arith.constant 0.000000e+00 : f32
    %43 = vector.broadcast %cst_27 : f32 to vector<2x2xf32>
    %44 = arith.cmpf one, %27, %43 : vector<2x2xf32>
    %cst_28 = arith.constant 1.000000e+00 : f32
    %45 = vector.broadcast %cst_28 : f32 to vector<2x2xf32>
    %46 = arith.select %44, %27, %45 : vector<2x2xi1>, vector<2x2xf32>
    %cst_29 = arith.constant 1.000000e+00 : f32
    %47 = vector.broadcast %cst_29 : f32 to vector<2x2xf32>
    %cst_30 = arith.constant 0.000000e+00 : f32
    %48 = vector.broadcast %cst_30 : f32 to vector<2x2xf32>
    %49 = arith.cmpf oeq, %37, %48 : vector<2x2xf32>
    %cst_31 = arith.constant 0.000000e+00 : f32
    %50 = vector.broadcast %cst_31 : f32 to vector<2x2xf32>
    %51 = arith.cmpf one, %27, %50 : vector<2x2xf32>
    %52 = arith.andi %49, %51 : vector<2x2xi1>
    %cst_32 = arith.constant 2.000000e+00 : f32
    %53 = vector.broadcast %cst_32 : f32 to vector<2x2xf32>
    %54 = arith.mulf %53, %24 : vector<2x2xf32>
    %55 = arith.divf %54, %46 : vector<2x2xf32>
    %56 = arith.select %52, %55, %47 : vector<2x2xi1>, vector<2x2xf32>
    %cst_33 = arith.constant 0.000000e+00 : f32
    %57 = vector.broadcast %cst_33 : f32 to vector<2x2xf32>
    %58 = arith.cmpf one, %38, %57 : vector<2x2xf32>
    %59 = arith.divf %33, %42 : vector<2x2xf32>
    %60 = arith.select %58, %59, %56 : vector<2x2xi1>, vector<2x2xf32>
    %61 = vector.shape_cast %60 : vector<2x2xf32> to vector<1x2x2xf32>
    %cst_34 = arith.constant dense<0.000000e+00> : vector<1xf32>
    %62 = vector.multi_reduction <add>, %61, %cst_34 [1, 2] : vector<1x2x2xf32> to vector<1xf32>
    %63 = vector.shape_cast %62 : vector<1xf32> to vector<1x1x1xf32>
    %64 = vector.extract %63[0, 0, 0] : f32 from vector<1x1x1xf32>
    %c0_i32_35 = arith.constant 0 : i32
    %65 = vector.broadcast %c0_i32_35 : i32 to vector<1x1x4xi32>
    %66 = arith.cmpi eq, %12, %65 : vector<1x1x4xi32>
    %cst_36 = arith.constant 0.000000e+00 : f32
    %67 = vector.broadcast %64 : f32 to vector<1x1x4xf32>
    %68 = vector.broadcast %cst_36 : f32 to vector<1x1x4xf32>
    %69 = arith.select %66, %67, %68 : vector<1x1x4xi1>, vector<1x1x4xf32>
    %70 = arith.addf %13, %69 : vector<1x1x4xf32>
    %c0_37 = arith.constant 0 : index
    %c1 = arith.constant 1 : index
    %c0_38 = arith.constant 0 : index
    %c0_39 = arith.constant 0 : index
    %71 = vector.load %arg2[%c0_37, %c1, %c0_38, %c0_39] : memref<1x4x64x64xf32, #tpu.memory_space<vmem>>, vector<1x1x64x64xf32>
    %72 = vector.shape_cast %71 : vector<1x1x64x64xf32> to vector<64x64xf32>
    %cst_40 = arith.constant dense<0.000000e+00> : vector<2x64xf32>
    %73 = tpu.matmul %5, %72, %cst_40 {dimension_numbers = #tpu.dot_dimension_numbers<[1], [0], [0], [1], [0, 0, 1, 1], [], []>} : vector<2x64xf32>, vector<64x64xf32>, vector<2x64xf32> -> vector<2x64xf32>
    %cst_41 = arith.constant dense<0.000000e+00> : vector<2x2xf32>
    %74 = tpu.matmul %73, %6, %cst_41 {dimension_numbers = #tpu.dot_dimension_numbers<[1], [1], [0], [0], [0, 0, 1, 0], [], []>} : vector<2x64xf32>, vector<2x64xf32>, vector<2x2xf32> -> vector<2x2xf32>
    %75 = arith.mulf %72, %72 : vector<64x64xf32>
    %cst_42 = arith.constant dense<0.000000e+00> : vector<2x64xf32>
    %76 = tpu.matmul %5, %75, %cst_42 {dimension_numbers = #tpu.dot_dimension_numbers<[1], [0], [0], [1], [0, 0, 1, 1], [], []>} : vector<2x64xf32>, vector<64x64xf32>, vector<2x64xf32> -> vector<2x64xf32>
    %cst_43 = arith.constant dense<0.000000e+00> : vector<2x2xf32>
    %77 = tpu.matmul %76, %6, %cst_43 {dimension_numbers = #tpu.dot_dimension_numbers<[1], [1], [0], [0], [0, 0, 1, 0], [], []>} : vector<2x64xf32>, vector<2x64xf32>, vector<2x2xf32> -> vector<2x2xf32>
    %78 = arith.mulf %72, %4 : vector<64x64xf32>
    %cst_44 = arith.constant dense<0.000000e+00> : vector<2x64xf32>
    %79 = tpu.matmul %5, %78, %cst_44 {dimension_numbers = #tpu.dot_dimension_numbers<[1], [0], [0], [1], [0, 0, 1, 1], [], []>} : vector<2x64xf32>, vector<64x64xf32>, vector<2x64xf32> -> vector<2x64xf32>
    %cst_45 = arith.constant dense<0.000000e+00> : vector<2x2xf32>
    %80 = tpu.matmul %79, %6, %cst_45 {dimension_numbers = #tpu.dot_dimension_numbers<[1], [1], [0], [0], [0, 0, 1, 0], [], []>} : vector<2x64xf32>, vector<2x64xf32>, vector<2x2xf32> -> vector<2x2xf32>
    %81 = arith.mulf %74, %8 : vector<2x2xf32>
    %82 = arith.mulf %74, %74 : vector<2x2xf32>
    %83 = arith.mulf %8, %8 : vector<2x2xf32>
    %84 = arith.addf %82, %83 : vector<2x2xf32>
    %cst_46 = arith.constant 1.024000e+03 : f32
    %85 = vector.broadcast %cst_46 : f32 to vector<2x2xf32>
    %86 = arith.mulf %85, %80 : vector<2x2xf32>
    %87 = arith.subf %86, %81 : vector<2x2xf32>
    %cst_47 = arith.constant 4.000000e+00 : f32
    %88 = vector.broadcast %cst_47 : f32 to vector<2x2xf32>
    %89 = arith.mulf %88, %87 : vector<2x2xf32>
    %90 = arith.mulf %89, %81 : vector<2x2xf32>
    %91 = arith.addf %77, %11 : vector<2x2xf32>
    %cst_48 = arith.constant 1.024000e+03 : f32
    %92 = vector.broadcast %cst_48 : f32 to vector<2x2xf32>
    %93 = arith.mulf %92, %91 : vector<2x2xf32>
    %94 = arith.subf %93, %84 : vector<2x2xf32>
    %95 = arith.mulf %94, %84 : vector<2x2xf32>
    %cst_49 = arith.constant 0.000000e+00 : f32
    %96 = vector.broadcast %cst_49 : f32 to vector<2x2xf32>
    %97 = arith.cmpf one, %95, %96 : vector<2x2xf32>
    %cst_50 = arith.constant 1.000000e+00 : f32
    %98 = vector.broadcast %cst_50 : f32 to vector<2x2xf32>
    %99 = arith.select %97, %95, %98 : vector<2x2xi1>, vector<2x2xf32>
    %cst_51 = arith.constant 0.000000e+00 : f32
    %100 = vector.broadcast %cst_51 : f32 to vector<2x2xf32>
    %101 = arith.cmpf one, %84, %100 : vector<2x2xf32>
    %cst_52 = arith.constant 1.000000e+00 : f32
    %102 = vector.broadcast %cst_52 : f32 to vector<2x2xf32>
    %103 = arith.select %101, %84, %102 : vector<2x2xi1>, vector<2x2xf32>
    %cst_53 = arith.constant 1.000000e+00 : f32
    %104 = vector.broadcast %cst_53 : f32 to vector<2x2xf32>
    %cst_54 = arith.constant 0.000000e+00 : f32
    %105 = vector.broadcast %cst_54 : f32 to vector<2x2xf32>
    %106 = arith.cmpf oeq, %94, %105 : vector<2x2xf32>
    %cst_55 = arith.constant 0.000000e+00 : f32
    %107 = vector.broadcast %cst_55 : f32 to vector<2x2xf32>
    %108 = arith.cmpf one, %84, %107 : vector<2x2xf32>
    %109 = arith.andi %106, %108 : vector<2x2xi1>
    %cst_56 = arith.constant 2.000000e+00 : f32
    %110 = vector.broadcast %cst_56 : f32 to vector<2x2xf32>
    %111 = arith.mulf %110, %81 : vector<2x2xf32>
    %112 = arith.divf %111, %103 : vector<2x2xf32>
    %113 = arith.select %109, %112, %104 : vector<2x2xi1>, vector<2x2xf32>
    %cst_57 = arith.constant 0.000000e+00 : f32
    %114 = vector.broadcast %cst_57 : f32 to vector<2x2xf32>
    %115 = arith.cmpf one, %95, %114 : vector<2x2xf32>
    %116 = arith.divf %90, %99 : vector<2x2xf32>
    %117 = arith.select %115, %116, %113 : vector<2x2xi1>, vector<2x2xf32>
    %118 = vector.shape_cast %117 : vector<2x2xf32> to vector<1x2x2xf32>
    %cst_58 = arith.constant dense<0.000000e+00> : vector<1xf32>
    %119 = vector.multi_reduction <add>, %118, %cst_58 [1, 2] : vector<1x2x2xf32> to vector<1xf32>
    %120 = vector.shape_cast %119 : vector<1xf32> to vector<1x1x1xf32>
    %121 = vector.extract %120[0, 0, 0] : f32 from vector<1x1x1xf32>
    %c1_i32 = arith.constant 1 : i32
    %122 = vector.broadcast %c1_i32 : i32 to vector<1x1x4xi32>
    %123 = arith.cmpi eq, %12, %122 : vector<1x1x4xi32>
    %cst_59 = arith.constant 0.000000e+00 : f32
    %124 = vector.broadcast %121 : f32 to vector<1x1x4xf32>
    %125 = vector.broadcast %cst_59 : f32 to vector<1x1x4xf32>
    %126 = arith.select %123, %124, %125 : vector<1x1x4xi1>, vector<1x1x4xf32>
    %127 = arith.addf %70, %126 : vector<1x1x4xf32>
    %c0_60 = arith.constant 0 : index
    %c2 = arith.constant 2 : index
    %c0_61 = arith.constant 0 : index
    %c0_62 = arith.constant 0 : index
    %128 = vector.load %arg2[%c0_60, %c2, %c0_61, %c0_62] : memref<1x4x64x64xf32, #tpu.memory_space<vmem>>, vector<1x1x64x64xf32>
    %129 = vector.shape_cast %128 : vector<1x1x64x64xf32> to vector<64x64xf32>
    %cst_63 = arith.constant dense<0.000000e+00> : vector<2x64xf32>
    %130 = tpu.matmul %5, %129, %cst_63 {dimension_numbers = #tpu.dot_dimension_numbers<[1], [0], [0], [1], [0, 0, 1, 1], [], []>} : vector<2x64xf32>, vector<64x64xf32>, vector<2x64xf32> -> vector<2x64xf32>
    %cst_64 = arith.constant dense<0.000000e+00> : vector<2x2xf32>
    %131 = tpu.matmul %130, %6, %cst_64 {dimension_numbers = #tpu.dot_dimension_numbers<[1], [1], [0], [0], [0, 0, 1, 0], [], []>} : vector<2x64xf32>, vector<2x64xf32>, vector<2x2xf32> -> vector<2x2xf32>
    %132 = arith.mulf %129, %129 : vector<64x64xf32>
    %cst_65 = arith.constant dense<0.000000e+00> : vector<2x64xf32>
    %133 = tpu.matmul %5, %132, %cst_65 {dimension_numbers = #tpu.dot_dimension_numbers<[1], [0], [0], [1], [0, 0, 1, 1], [], []>} : vector<2x64xf32>, vector<64x64xf32>, vector<2x64xf32> -> vector<2x64xf32>
    %cst_66 = arith.constant dense<0.000000e+00> : vector<2x2xf32>
    %134 = tpu.matmul %133, %6, %cst_66 {dimension_numbers = #tpu.dot_dimension_numbers<[1], [1], [0], [0], [0, 0, 1, 0], [], []>} : vector<2x64xf32>, vector<2x64xf32>, vector<2x2xf32> -> vector<2x2xf32>
    %135 = arith.mulf %129, %4 : vector<64x64xf32>
    %cst_67 = arith.constant dense<0.000000e+00> : vector<2x64xf32>
    %136 = tpu.matmul %5, %135, %cst_67 {dimension_numbers = #tpu.dot_dimension_numbers<[1], [0], [0], [1], [0, 0, 1, 1], [], []>} : vector<2x64xf32>, vector<64x64xf32>, vector<2x64xf32> -> vector<2x64xf32>
    %cst_68 = arith.constant dense<0.000000e+00> : vector<2x2xf32>
    %137 = tpu.matmul %136, %6, %cst_68 {dimension_numbers = #tpu.dot_dimension_numbers<[1], [1], [0], [0], [0, 0, 1, 0], [], []>} : vector<2x64xf32>, vector<2x64xf32>, vector<2x2xf32> -> vector<2x2xf32>
    %138 = arith.mulf %131, %8 : vector<2x2xf32>
    %139 = arith.mulf %131, %131 : vector<2x2xf32>
    %140 = arith.mulf %8, %8 : vector<2x2xf32>
    %141 = arith.addf %139, %140 : vector<2x2xf32>
    %cst_69 = arith.constant 1.024000e+03 : f32
    %142 = vector.broadcast %cst_69 : f32 to vector<2x2xf32>
    %143 = arith.mulf %142, %137 : vector<2x2xf32>
    %144 = arith.subf %143, %138 : vector<2x2xf32>
    %cst_70 = arith.constant 4.000000e+00 : f32
    %145 = vector.broadcast %cst_70 : f32 to vector<2x2xf32>
    %146 = arith.mulf %145, %144 : vector<2x2xf32>
    %147 = arith.mulf %146, %138 : vector<2x2xf32>
    %148 = arith.addf %134, %11 : vector<2x2xf32>
    %cst_71 = arith.constant 1.024000e+03 : f32
    %149 = vector.broadcast %cst_71 : f32 to vector<2x2xf32>
    %150 = arith.mulf %149, %148 : vector<2x2xf32>
    %151 = arith.subf %150, %141 : vector<2x2xf32>
    %152 = arith.mulf %151, %141 : vector<2x2xf32>
    %cst_72 = arith.constant 0.000000e+00 : f32
    %153 = vector.broadcast %cst_72 : f32 to vector<2x2xf32>
    %154 = arith.cmpf one, %152, %153 : vector<2x2xf32>
    %cst_73 = arith.constant 1.000000e+00 : f32
    %155 = vector.broadcast %cst_73 : f32 to vector<2x2xf32>
    %156 = arith.select %154, %152, %155 : vector<2x2xi1>, vector<2x2xf32>
    %cst_74 = arith.constant 0.000000e+00 : f32
    %157 = vector.broadcast %cst_74 : f32 to vector<2x2xf32>
    %158 = arith.cmpf one, %141, %157 : vector<2x2xf32>
    %cst_75 = arith.constant 1.000000e+00 : f32
    %159 = vector.broadcast %cst_75 : f32 to vector<2x2xf32>
    %160 = arith.select %158, %141, %159 : vector<2x2xi1>, vector<2x2xf32>
    %cst_76 = arith.constant 1.000000e+00 : f32
    %161 = vector.broadcast %cst_76 : f32 to vector<2x2xf32>
    %cst_77 = arith.constant 0.000000e+00 : f32
    %162 = vector.broadcast %cst_77 : f32 to vector<2x2xf32>
    %163 = arith.cmpf oeq, %151, %162 : vector<2x2xf32>
    %cst_78 = arith.constant 0.000000e+00 : f32
    %164 = vector.broadcast %cst_78 : f32 to vector<2x2xf32>
    %165 = arith.cmpf one, %141, %164 : vector<2x2xf32>
    %166 = arith.andi %163, %165 : vector<2x2xi1>
    %cst_79 = arith.constant 2.000000e+00 : f32
    %167 = vector.broadcast %cst_79 : f32 to vector<2x2xf32>
    %168 = arith.mulf %167, %138 : vector<2x2xf32>
    %169 = arith.divf %168, %160 : vector<2x2xf32>
    %170 = arith.select %166, %169, %161 : vector<2x2xi1>, vector<2x2xf32>
    %cst_80 = arith.constant 0.000000e+00 : f32
    %171 = vector.broadcast %cst_80 : f32 to vector<2x2xf32>
    %172 = arith.cmpf one, %152, %171 : vector<2x2xf32>
    %173 = arith.divf %147, %156 : vector<2x2xf32>
    %174 = arith.select %172, %173, %170 : vector<2x2xi1>, vector<2x2xf32>
    %175 = vector.shape_cast %174 : vector<2x2xf32> to vector<1x2x2xf32>
    %cst_81 = arith.constant dense<0.000000e+00> : vector<1xf32>
    %176 = vector.multi_reduction <add>, %175, %cst_81 [1, 2] : vector<1x2x2xf32> to vector<1xf32>
    %177 = vector.shape_cast %176 : vector<1xf32> to vector<1x1x1xf32>
    %178 = vector.extract %177[0, 0, 0] : f32 from vector<1x1x1xf32>
    %c2_i32 = arith.constant 2 : i32
    %179 = vector.broadcast %c2_i32 : i32 to vector<1x1x4xi32>
    %180 = arith.cmpi eq, %12, %179 : vector<1x1x4xi32>
    %cst_82 = arith.constant 0.000000e+00 : f32
    %181 = vector.broadcast %178 : f32 to vector<1x1x4xf32>
    %182 = vector.broadcast %cst_82 : f32 to vector<1x1x4xf32>
    %183 = arith.select %180, %181, %182 : vector<1x1x4xi1>, vector<1x1x4xf32>
    %184 = arith.addf %127, %183 : vector<1x1x4xf32>
    %c0_83 = arith.constant 0 : index
    %c3 = arith.constant 3 : index
    %c0_84 = arith.constant 0 : index
    %c0_85 = arith.constant 0 : index
    %185 = vector.load %arg2[%c0_83, %c3, %c0_84, %c0_85] : memref<1x4x64x64xf32, #tpu.memory_space<vmem>>, vector<1x1x64x64xf32>
    %186 = vector.shape_cast %185 : vector<1x1x64x64xf32> to vector<64x64xf32>
    %cst_86 = arith.constant dense<0.000000e+00> : vector<2x64xf32>
    %187 = tpu.matmul %5, %186, %cst_86 {dimension_numbers = #tpu.dot_dimension_numbers<[1], [0], [0], [1], [0, 0, 1, 1], [], []>} : vector<2x64xf32>, vector<64x64xf32>, vector<2x64xf32> -> vector<2x64xf32>
    %cst_87 = arith.constant dense<0.000000e+00> : vector<2x2xf32>
    %188 = tpu.matmul %187, %6, %cst_87 {dimension_numbers = #tpu.dot_dimension_numbers<[1], [1], [0], [0], [0, 0, 1, 0], [], []>} : vector<2x64xf32>, vector<2x64xf32>, vector<2x2xf32> -> vector<2x2xf32>
    %189 = arith.mulf %186, %186 : vector<64x64xf32>
    %cst_88 = arith.constant dense<0.000000e+00> : vector<2x64xf32>
    %190 = tpu.matmul %5, %189, %cst_88 {dimension_numbers = #tpu.dot_dimension_numbers<[1], [0], [0], [1], [0, 0, 1, 1], [], []>} : vector<2x64xf32>, vector<64x64xf32>, vector<2x64xf32> -> vector<2x64xf32>
    %cst_89 = arith.constant dense<0.000000e+00> : vector<2x2xf32>
    %191 = tpu.matmul %190, %6, %cst_89 {dimension_numbers = #tpu.dot_dimension_numbers<[1], [1], [0], [0], [0, 0, 1, 0], [], []>} : vector<2x64xf32>, vector<2x64xf32>, vector<2x2xf32> -> vector<2x2xf32>
    %192 = arith.mulf %186, %4 : vector<64x64xf32>
    %cst_90 = arith.constant dense<0.000000e+00> : vector<2x64xf32>
    %193 = tpu.matmul %5, %192, %cst_90 {dimension_numbers = #tpu.dot_dimension_numbers<[1], [0], [0], [1], [0, 0, 1, 1], [], []>} : vector<2x64xf32>, vector<64x64xf32>, vector<2x64xf32> -> vector<2x64xf32>
    %cst_91 = arith.constant dense<0.000000e+00> : vector<2x2xf32>
    %194 = tpu.matmul %193, %6, %cst_91 {dimension_numbers = #tpu.dot_dimension_numbers<[1], [1], [0], [0], [0, 0, 1, 0], [], []>} : vector<2x64xf32>, vector<2x64xf32>, vector<2x2xf32> -> vector<2x2xf32>
    %195 = arith.mulf %188, %8 : vector<2x2xf32>
    %196 = arith.mulf %188, %188 : vector<2x2xf32>
    %197 = arith.mulf %8, %8 : vector<2x2xf32>
    %198 = arith.addf %196, %197 : vector<2x2xf32>
    %cst_92 = arith.constant 1.024000e+03 : f32
    %199 = vector.broadcast %cst_92 : f32 to vector<2x2xf32>
    %200 = arith.mulf %199, %194 : vector<2x2xf32>
    %201 = arith.subf %200, %195 : vector<2x2xf32>
    %cst_93 = arith.constant 4.000000e+00 : f32
    %202 = vector.broadcast %cst_93 : f32 to vector<2x2xf32>
    %203 = arith.mulf %202, %201 : vector<2x2xf32>
    %204 = arith.mulf %203, %195 : vector<2x2xf32>
    %205 = arith.addf %191, %11 : vector<2x2xf32>
    %cst_94 = arith.constant 1.024000e+03 : f32
    %206 = vector.broadcast %cst_94 : f32 to vector<2x2xf32>
    %207 = arith.mulf %206, %205 : vector<2x2xf32>
    %208 = arith.subf %207, %198 : vector<2x2xf32>
    %209 = arith.mulf %208, %198 : vector<2x2xf32>
    %cst_95 = arith.constant 0.000000e+00 : f32
    %210 = vector.broadcast %cst_95 : f32 to vector<2x2xf32>
    %211 = arith.cmpf one, %209, %210 : vector<2x2xf32>
    %cst_96 = arith.constant 1.000000e+00 : f32
    %212 = vector.broadcast %cst_96 : f32 to vector<2x2xf32>
    %213 = arith.select %211, %209, %212 : vector<2x2xi1>, vector<2x2xf32>
    %cst_97 = arith.constant 0.000000e+00 : f32
    %214 = vector.broadcast %cst_97 : f32 to vector<2x2xf32>
    %215 = arith.cmpf one, %198, %214 : vector<2x2xf32>
    %cst_98 = arith.constant 1.000000e+00 : f32
    %216 = vector.broadcast %cst_98 : f32 to vector<2x2xf32>
    %217 = arith.select %215, %198, %216 : vector<2x2xi1>, vector<2x2xf32>
    %cst_99 = arith.constant 1.000000e+00 : f32
    %218 = vector.broadcast %cst_99 : f32 to vector<2x2xf32>
    %cst_100 = arith.constant 0.000000e+00 : f32
    %219 = vector.broadcast %cst_100 : f32 to vector<2x2xf32>
    %220 = arith.cmpf oeq, %208, %219 : vector<2x2xf32>
    %cst_101 = arith.constant 0.000000e+00 : f32
    %221 = vector.broadcast %cst_101 : f32 to vector<2x2xf32>
    %222 = arith.cmpf one, %198, %221 : vector<2x2xf32>
    %223 = arith.andi %220, %222 : vector<2x2xi1>
    %cst_102 = arith.constant 2.000000e+00 : f32
    %224 = vector.broadcast %cst_102 : f32 to vector<2x2xf32>
    %225 = arith.mulf %224, %195 : vector<2x2xf32>
    %226 = arith.divf %225, %217 : vector<2x2xf32>
    %227 = arith.select %223, %226, %218 : vector<2x2xi1>, vector<2x2xf32>
    %cst_103 = arith.constant 0.000000e+00 : f32
    %228 = vector.broadcast %cst_103 : f32 to vector<2x2xf32>
    %229 = arith.cmpf one, %209, %228 : vector<2x2xf32>
    %230 = arith.divf %204, %213 : vector<2x2xf32>
    %231 = arith.select %229, %230, %227 : vector<2x2xi1>, vector<2x2xf32>
    %232 = vector.shape_cast %231 : vector<2x2xf32> to vector<1x2x2xf32>
    %cst_104 = arith.constant dense<0.000000e+00> : vector<1xf32>
    %233 = vector.multi_reduction <add>, %232, %cst_104 [1, 2] : vector<1x2x2xf32> to vector<1xf32>
    %234 = vector.shape_cast %233 : vector<1xf32> to vector<1x1x1xf32>
    %235 = vector.extract %234[0, 0, 0] : f32 from vector<1x1x1xf32>
    %c3_i32 = arith.constant 3 : i32
    %236 = vector.broadcast %c3_i32 : i32 to vector<1x1x4xi32>
    %237 = arith.cmpi eq, %12, %236 : vector<1x1x4xi32>
    %cst_105 = arith.constant 0.000000e+00 : f32
    %238 = vector.broadcast %235 : f32 to vector<1x1x4xf32>
    %239 = vector.broadcast %cst_105 : f32 to vector<1x1x4xf32>
    %240 = arith.select %237, %238, %239 : vector<1x1x4xi1>, vector<1x1x4xf32>
    %241 = arith.addf %184, %240 : vector<1x1x4xf32>
    %c0_106 = arith.constant 0 : index
    %c0_107 = arith.constant 0 : index
    %c0_108 = arith.constant 0 : index
    %242 = vector.load %arg6[%c0_106, %c0_107, %c0_108] : memref<1x1x4xf32, #tpu.memory_space<vmem>>, vector<1x1x4xf32>
    %cst_109 = arith.constant 2.500000e-01 : f32
    %243 = vector.broadcast %cst_109 : f32 to vector<1x1x4xf32>
    %244 = arith.mulf %241, %243 : vector<1x1x4xf32>
    %245 = arith.addf %242, %244 : vector<1x1x4xf32>
    %c0_110 = arith.constant 0 : index
    %c0_111 = arith.constant 0 : index
    %c0_112 = arith.constant 0 : index
    %246 = vector.load %arg6[%c0_110, %c0_111, %c0_112] : memref<1x1x4xf32, #tpu.memory_space<vmem>>, vector<1x1x4xf32>
    tpu.vector_store %arg6[%c0_110, %c0_111, %c0_112], %245 {strides = array<i32>} : memref<1x1x4xf32, #tpu.memory_space<vmem>>, vector<1x1x4xf32>,
    return
  }
  func.func @transform_0(%arg0: i32, %arg1: i32) -> (i32, i32, i32, i32) {
    %c0_i32 = arith.constant 0 : i32
    %c0_i32_0 = arith.constant 0 : i32
    %c0_i32_1 = arith.constant 0 : i32
    return %arg0, %c0_i32, %arg1, %c0_i32_0 : i32, i32, i32, i32
  }
  func.func @transform_1(%arg0: i32, %arg1: i32) -> (i32, i32, i32, i32) {
    %c0_i32 = arith.constant 0 : i32
    %c0_i32_0 = arith.constant 0 : i32
    %c0_i32_1 = arith.constant 0 : i32
    return %arg0, %c0_i32, %arg1, %c0_i32_0 : i32, i32, i32, i32
  }
  func.func @transform_2(%arg0: i32, %arg1: i32) -> (i32, i32) {
    %c0_i32 = arith.constant 0 : i32
    %c0_i32_0 = arith.constant 0 : i32
    %c0_i32_1 = arith.constant 0 : i32
    return %c0_i32, %c0_i32_0 : i32, i32
  }
  func.func @transform_3(%arg0: i32, %arg1: i32) -> (i32, i32) {
    %c0_i32 = arith.constant 0 : i32
    %c0_i32_0 = arith.constant 0 : i32
    %c0_i32_1 = arith.constant 0 : i32
    return %c0_i32, %c0_i32_0 : i32, i32
  }
  func.func @transform_4(%arg0: i32, %arg1: i32) -> (i32, i32, i32) {
    %c0_i32 = arith.constant 0 : i32
    %c0_i32_0 = arith.constant 0 : i32
    %c0_i32_1 = arith.constant 0 : i32
    return %arg0, %c0_i32, %c0_i32_0 : i32, i32, i32
  }
}

</mosaic_0001>

<llo_original>
// kernel: tpu_custom_call.1
$region0: #{tpu_custom_call.1}
  #allocation0 [shape = 'u32[]', space=smem, size = 0x4, offset = 0x4, fixed_abs, tag = 'smem constant byte address 0x4 - core index']
  #allocation1 [shape = 'u32[144,128]{1,0:T(1,128)}', space=vmem, size = 0x12000, scoped, tag = 'internal scratch']
  %s0 = inlined_call_operand.hbm [shape: f32[2,4,64,64], index: 0, kind: input, shape index: {}]
  %s1 = inlined_call_operand.hbm [shape: f32[2,1,64,64], index: 1, kind: input, shape index: {}]
  %s2 = inlined_call_operand.vmem [shape: f32[2,64], index: 2, kind: input, shape index: {}]
  %s3 = inlined_call_operand.vmem [shape: f32[2,64], index: 3, kind: input, shape index: {}]
  %s4 = inlined_call_operand.hbm [shape: f32[2,1,4], index: 4, kind: output, shape index: {}]
  %s5 = sld [smem:[#allocation0]]
  $region61: #{tpu_custom_call.1} parent=0
    _
  %s7 = ssub.s32 1, %s5
  %s8 = scalar_select 0, %s7, %s5
  $region1: #{tpu_custom_call.1} parent=0
    #allocation2 [shape = 'u8[262144]{0}', space=vmem, size = 0x40000, scoped, tag = 'input window, operand 0']
    #allocation3 [shape = 's32[2]{0}', space=sflag, size = 0x8, scoped, tag = 'scoped memory for tpu_custom_call.1']
    #allocation4 [shape = 's32[2]{0}', space=sflag, size = 0x8, scoped, tag = 'scoped memory for tpu_custom_call.1']
    #allocation5 [shape = 'u8[65536]{0}', space=vmem, size = 0x10000, scoped, tag = 'input window, operand 1']
    #allocation6 [shape = 's32[2]{0}', space=sflag, size = 0x8, scoped, tag = 'scoped memory for tpu_custom_call.1']
    #allocation7 [shape = 'u8[1024]{0}', space=vmem, size = 0x400, scoped, tag = 'output window, operand 0']
    %9 = vsyncpa [#allocation3], 0
    %s10 = scalar_lea.sflag [#allocation3], 1
    %11 = vsyncpa %s10, 0
    %12 = vsyncpa [#allocation6], 0
    %s13 = scalar_lea.sflag [#allocation6], 1
    %14 = vsyncpa %s13, 0
    %15 = vsyncpa [#allocation4], 0
    %s16 = scalar_lea.sflag [#allocation4], 1
    %17 = vsyncpa %s16, 0
    loop: start=0, step=1, limit=4
    $region2: #{tpu_custom_call.1} parent=1 // loop_pre_header
      _
    $region3: #{tpu_custom_call.1} parent=1 // loop_header
      %s19 = sphi 0, %s23
      %p20 = scmp.ge.s32.totalorder %s19, 4
      %s26 = sphi 0, %s38
      %s27 = sphi 0, %s34
      %s28 = sphi 0, %s26
      %s29 = sphi 0, %s27
      %s30 = sphi 0, %s28
      %s31 = sphi 0, %s29
      %s43 = sphi 0, %s45
      %s46 = sphi 0, %s43
      %s47 = sphi 0, %s46
      %s63 = sphi 0, %s47
      %s71 = sphi 0, %s73
      %s74 = sphi 0, %s71
      %s75 = sphi 0, %s74
      %s91 = sphi 0, %s75
      %s95 = sphi 0, %s95
      %s97 = sphi 0, %s95
      %s98 = sphi 0, %s97
      %s112 = sphi 0, %s98
      %s116 = sphi 0, %s116
      %s118 = sphi 0, %s116
      %s119 = sphi 0, %s118
      %s133 = sphi 0, %s119
      %s139 = sphi 0, %s141
      %s142 = sphi 0, %s139
      %s143 = sphi 0, %s142
      %s159 = sphi 0, %s143
    $region4: #{tpu_custom_call.1} parent=1 // loop_header_branch
      %22 = sbr.rel (%p20) target = $region8
    $region5: #{tpu_custom_call.1} parent=1 // loop_body
      %s24 = ssub.s32 %s19, 1
      %s25 = ssub.s32 %s19, 2
      %s32 = sadd.s32 1, %s27
      %p33 = scmp.ge.s32.totalorder %s32, 1
      %s34 = scalar_select %p33, 0, %s32
      %s35 = sadd.s32 1, %s26
      %s36 = scalar_select %p33, %s35, %s26
      %p37 = scmp.ge.s32.totalorder %s36, 2
      %s38 = scalar_select %p37, 0, %s36
      %s39 = ssub.s32 %s26, %s38
      %s40 = ssub.s32 %s27, %s34
      %s41 = sor.u32 %s39, %s40
      %p42 = scmp.eq.s32.totalorder %s41, 0
      %s44 = sadd.s32 %s43, 1
      %s45 = scalar_select %p42, %s43, %s44
      %p48 = pneg %p42
      %p49 = scmp.eq.s32.totalorder %s19, 1
      %p50 = por %p48, %p49
      %p51 = scmp.ne.s32.totalorder %s43, %s46
      %p52 = scmp.eq.s32.totalorder %s19, 0
      %p53 = por %p51, %p52
      %p54 = scmp.ne.s32.totalorder %s43, %s46
      %p55 = scmp.eq.s32.totalorder %s24, 1
      %p56 = por %p54, %p55
      %p57 = scmp.ne.s32.totalorder %s46, %s47
      %p58 = scmp.eq.s32.totalorder %s24, 0
      %p59 = por %p57, %p58
      %p60 = scmp.ne.s32.totalorder %s46, %s47
      %p61 = scmp.eq.s32.totalorder %s25, 1
      %p62 = por %p60, %p61
      %p64 = scmp.ne.s32.totalorder %s47, %s63
      %p65 = scmp.eq.s32.totalorder %s25, 0
      %p66 = por %p64, %p65
      %s67 = ssub.s32 %s26, %s38
      %s68 = ssub.s32 %s27, %s34
      %s69 = sor.u32 %s67, %s68
      %p70 = scmp.eq.s32.totalorder %s69, 0
      %s72 = sadd.s32 %s71, 1
      %s73 = scalar_select %p70, %s71, %s72
      %p76 = pneg %p70
      %p77 = scmp.eq.s32.totalorder %s19, 1
      %p78 = por %p76, %p77
      %p79 = scmp.ne.s32.totalorder %s71, %s74
      %p80 = scmp.eq.s32.totalorder %s19, 0
      %p81 = por %p79, %p80
      %p82 = scmp.ne.s32.totalorder %s71, %s74
      %p83 = scmp.eq.s32.totalorder %s24, 1
      %p84 = por %p82, %p83
      %p85 = scmp.ne.s32.totalorder %s74, %s75
      %p86 = scmp.eq.s32.totalorder %s24, 0
      %p87 = por %p85, %p86
      %p88 = scmp.ne.s32.totalorder %s74, %s75
      %p89 = scmp.eq.s32.totalorder %s25, 1
      %p90 = por %p88, %p89
      %p92 = scmp.ne.s32.totalorder %s75, %s91
      %p93 = scmp.eq.s32.totalorder %s25, 0
      %p94 = por %p92, %p93
      %s96 = sadd.s32 %s95, 1
      %p99 = scmp.eq.s32.totalorder %s19, 1
      %p100 = scmp.ne.s32.totalorder %s95, %s97
      %p101 = scmp.eq.s32.totalorder %s19, 0
      %p102 = por %p100, %p101
      %p103 = scmp.ne.s32.totalorder %s95, %s97
      %p104 = scmp.eq.s32.totalorder %s24, 1
      %p105 = por %p103, %p104
      %p106 = scmp.ne.s32.totalorder %s97, %s98
      %p107 = scmp.eq.s32.totalorder %s24, 0
      %p108 = por %p106, %p107
      %p109 = scmp.ne.s32.totalorder %s97, %s98
      %p110 = scmp.eq.s32.totalorder %s25, 1
      %p111 = por %p109, %p110
      %p113 = scmp.ne.s32.totalorder %s98, %s112
      %p114 = scmp.eq.s32.totalorder %s25, 0
      %p115 = por %p113, %p114
      %s117 = sadd.s32 %s116, 1
      %p120 = scmp.eq.s32.totalorder %s19, 1
      %p121 = scmp.ne.s32.totalorder %s116, %s118
      %p122 = scmp.eq.s32.totalorder %s19, 0
      %p123 = por %p121, %p122
      %p124 = scmp.ne.s32.totalorder %s116, %s118
      %p125 = scmp.eq.s32.totalorder %s24, 1
      %p126 = por %p124, %p125
      %p127 = scmp.ne.s32.totalorder %s118, %s119
      %p128 = scmp.eq.s32.totalorder %s24, 0
      %p129 = por %p127, %p128
      %p130 = scmp.ne.s32.totalorder %s118, %s119
      %p131 = scmp.eq.s32.totalorder %s25, 1
      %p132 = por %p130, %p131
      %p134 = scmp.ne.s32.totalorder %s119, %s133
      %p135 = scmp.eq.s32.totalorder %s25, 0
      %p136 = por %p134, %p135
      %s137 = ssub.s32 %s26, %s38
      %p138 = scmp.eq.s32.totalorder %s137, 0
      %s140 = sadd.s32 %s139, 1
      %s141 = scalar_select %p138, %s139, %s140
      %p144 = pneg %p138
      %p145 = scmp.eq.s32.totalorder %s19, 1
      %p146 = por %p144, %p145
      %p147 = scmp.ne.s32.totalorder %s139, %s142
      %p148 = scmp.eq.s32.totalorder %s19, 0
      %p149 = por %p147, %p148
      %p150 = scmp.ne.s32.totalorder %s139, %s142
      %p151 = scmp.eq.s32.totalorder %s24, 1
      %p152 = por %p150, %p151
      %p153 = scmp.ne.s32.totalorder %s142, %s143
      %p154 = scmp.eq.s32.totalorder %s24, 0
      %p155 = por %p153, %p154
      %p156 = scmp.ne.s32.totalorder %s142, %s143
      %p157 = scmp.eq.s32.totalorder %s25, 1
      %p158 = por %p156, %p157
      %p160 = scmp.ne.s32.totalorder %s143, %s159
      %p161 = scmp.eq.s32.totalorder %s25, 0
      %p162 = por %p160, %p161
      %p163 = scmp.le.s32.totalorder 1, %s19
      %p164 = scmp.lt.s32.totalorder %s19, 3
      %p165 = pnand %p163, %p164
      %p166 = pneg %p165
      // Predicated region
      $region9: #{tpu_custom_call.1} parent=5 // pred_check
        _
      $region10: #{tpu_custom_call.1} parent=5 // pred_check_branch
        %168 = sbr.rel (%p165) target = $region12
      $region11: #{tpu_custom_call.1} parent=5 // pred_region
        %s169 = ssub.s32 %s19, 1
        // Predicated region
        $region13: #{tpu_custom_call.1} parent=11 // pred_check
          %p170 = pneg %p108
        $region14: #{tpu_custom_call.1} parent=11 // pred_check_branch
          %172 = sbr.rel (%p170) target = $region16
        $region15: #{tpu_custom_call.1} parent=11 // pred_region
          _
        $region16: #{tpu_custom_call.1} parent=11 // pred_fallthru
          _
        // Predicated region
        $region17: #{tpu_custom_call.1} parent=11 // pred_check
          %p173 = pneg %p129
        $region18: #{tpu_custom_call.1} parent=11 // pred_check_branch
          %175 = sbr.rel (%p173) target = $region20
        $region19: #{tpu_custom_call.1} parent=11 // pred_region
          _
        $region20: #{tpu_custom_call.1} parent=11 // pred_fallthru
          _
      $region12: #{tpu_custom_call.1} parent=5 // pred_fallthru
        _
      %p176 = scmp.lt.s32.totalorder %s19, 2
      // Predicated region
      $region21: #{tpu_custom_call.1} parent=5 // pred_check
        %p177 = pneg %p176
      $region22: #{tpu_custom_call.1} parent=5 // pred_check_branch
        %179 = sbr.rel (%p177) target = $region24
      $region23: #{tpu_custom_call.1} parent=5 // pred_region
        // Predicated region
        $region25: #{tpu_custom_call.1} parent=23 // pred_check
          %p180 = pneg %p53
        $region26: #{tpu_custom_call.1} parent=23 // pred_check_branch
          %182 = sbr.rel (%p180) target = $region28
        $region27: #{tpu_custom_call.1} parent=23 // pred_region
          %s183 = sand.u32 %s43, 1
          %s184 = scalar_lea.sflag [#allocation3], %s183
          %s185 = sand.u32 %s43, 1
          %s186 = smul.addr %s185, 256
          %s187 = scalar_lea.vmem [#allocation2], %s186
          %s188 = smul.u32 8, %s27
          %s190 = ssub.s32 4096, 4096
          %191 = vsyncadd %s184, %s190
          %s192 = smul.addr %s26, 32
          %s193 = sadd.s32 %s188, %s192
          %s194 = smul.addr %s193, 128
          %s195 = scalar_lea.hbm %s0, %s194
          %s196 = sshll.u32 %s187, 4
          %s197 = int_to_ptr.vmem [resolvable:$true] %s196
          %202 = dma.hbm_to_vmem [thread:$0]  %s195, 4096, %s197, %s184, 128, 128, 8
        $region28: #{tpu_custom_call.1} parent=23 // pred_fallthru
          _
        // Predicated region
        $region29: #{tpu_custom_call.1} parent=23 // pred_check
          %p203 = pneg %p81
        $region30: #{tpu_custom_call.1} parent=23 // pred_check_branch
          %205 = sbr.rel (%p203) target = $region32
        $region31: #{tpu_custom_call.1} parent=23 // pred_region
          %s206 = sand.u32 %s71, 1
          %s207 = scalar_lea.sflag [#allocation6], %s206
          %s208 = sand.u32 %s71, 1
          %s209 = smul.addr %s208, 64
          %s210 = scalar_lea.vmem [#allocation5], %s209
          %s211 = smul.u32 8, %s27
          %s213 = ssub.s32 1024, 1024
          %214 = vsyncadd %s207, %s213
          %s215 = smul.addr %s26, 8
          %s216 = sadd.s32 %s211, %s215
          %s217 = smul.addr %s216, 128
          %s218 = scalar_lea.hbm %s1, %s217
          %s219 = sshll.u32 %s210, 4
          %s220 = int_to_ptr.vmem [resolvable:$true] %s219
          %225 = dma.hbm_to_vmem [thread:$0]  %s218, 1024, %s220, %s207, 128, 128, 8
        $region32: #{tpu_custom_call.1} parent=23 // pred_fallthru
          _
      $region24: #{tpu_custom_call.1} parent=5 // pred_fallthru
        _
      %p226 = scmp.le.s32.totalorder 1, %s19
      %p227 = scmp.lt.s32.totalorder %s19, 3
      %p228 = pnand %p226, %p227
      %p229 = pneg %p228
      // Predicated region
      $region33: #{tpu_custom_call.1} parent=5 // pred_check
        _
      $region34: #{tpu_custom_call.1} parent=5 // pred_check_branch
        %231 = sbr.rel (%p228) target = $region36
      $region35: #{tpu_custom_call.1} parent=5 // pred_region
        %s232 = ssub.s32 %s19, 1
        %s233 = sand.u32 %s46, 1
        %s234 = scalar_lea.sflag [#allocation3], %s233
        %s235 = sand.u32 %s46, 1
        %s236 = smul.addr %s235, 256
        %s237 = scalar_lea.vmem [#allocation2], %s236
        // Predicated region
        $region37: #{tpu_custom_call.1} parent=35 // pred_check
          %p238 = pneg %p59
        $region38: #{tpu_custom_call.1} parent=35 // pred_check_branch
          %240 = sbr.rel (%p238) target = $region40
        $region39: #{tpu_custom_call.1} parent=35 // pred_region
          %241 = dma.done %s234, 4096
        $region40: #{tpu_custom_call.1} parent=35 // pred_fallthru
          _
        %s242 = sand.u32 %s74, 1
        %s243 = scalar_lea.sflag [#allocation6], %s242
        %s244 = sand.u32 %s74, 1
        %s245 = smul.addr %s244, 64
        %s246 = scalar_lea.vmem [#allocation5], %s245
        // Predicated region
        $region41: #{tpu_custom_call.1} parent=35 // pred_check
          %p247 = pneg %p87
        $region42: #{tpu_custom_call.1} parent=35 // pred_check_branch
          %249 = sbr.rel (%p247) target = $region44
        $region43: #{tpu_custom_call.1} parent=35 // pred_region
          %250 = dma.done %s243, 1024
        $region44: #{tpu_custom_call.1} parent=35 // pred_fallthru
          _
        %s251 = sand.u32 %s46, 1
        %s252 = scalar_lea.sflag [#allocation3], %s251
        %s253 = sand.u32 %s46, 1
        %s254 = smul.addr %s253, 256
        %s255 = scalar_lea.vmem [#allocation2], %s254
        %p256 = pneg %p59
        %p257 = pneg %p56
        %s258 = sand.u32 %s74, 1
        %s259 = scalar_lea.sflag [#allocation6], %s258
        %s260 = sand.u32 %s74, 1
        %s261 = smul.addr %s260, 64
        %s262 = scalar_lea.vmem [#allocation5], %s261
        %p263 = pneg %p87
        %p264 = pneg %p84
        %p265 = pneg %p108
        %p266 = pneg %p105
        %p267 = pneg %p129
        %p268 = pneg %p126
        %p269 = pneg %p155
        %p270 = pneg %p152
        %s271 = sand.u32 %s142, 1
        %s272 = scalar_lea.sflag [#allocation4], %s271
        %s273 = sand.u32 %s142, 1
        %s274 = scalar_lea.vmem [#allocation7], %s273
        %s275 = smul.u32 8, %s29
        %s276 = smul.u32 8, %s29
        %p277 = scmp.eq.s32.totalorder %s29, 0
        // Predicated region
        $region45: #{tpu_custom_call.1} parent=35 // pred_check
          %p278 = pneg %p277
        $region46: #{tpu_custom_call.1} parent=35 // pred_check_branch
          %280 = sbr.rel (%p278) target = $region48
        $region47: #{tpu_custom_call.1} parent=35 // pred_region
          %vm281 = vcmask 24576
          %282 = vst.msk [vmem:[%s274] sm:$0x1] %vm281, 0.0
        $region48: #{tpu_custom_call.1} parent=35 // pred_fallthru
          _
        %v283 = vld [vmem:[%s246] sm:$0xff]
        %v284 = vld [vmem:[%s246 + $0x8] sm:$0xff]
        %v285 = vld [vmem:[%s246 + $0x10] sm:$0xff]
        %v286 = vld [vmem:[%s246 + $0x18] sm:$0xff]
        %v287 = vld [vmem:[%s246 + $0x20] sm:$0xff]
        %v288 = vld [vmem:[%s246 + $0x28] sm:$0xff]
        %v289 = vld [vmem:[%s246 + $0x30] sm:$0xff]
        %v290 = vld [vmem:[%s246 + $0x38] sm:$0xff]
        %v291 = vld [vmem:[%s2] sm:$0x3]
        %v292 = vld [vmem:[%s3] sm:$0x3]
        %vm293 = vcmask 523264
        %v295 = vsel %vm293, %v291, 0
        %297 = vmatprep.subr.mxu0 0.0
        %298 = vmatpush1.msra.mxu0 %v283
        %299 = vmatprep.subr.mxu0 0.0
        %300 = vmatpush1.msra.mxu0 %v284
        %301 = vmatprep.subr.mxu0 0.0
        %302 = vmatpush1.msra.mxu0 %v285
        %303 = vmatprep.subr.mxu0 0.0
        %304 = vmatpush1.msra.mxu0 %v286
        %305 = vmatprep.subr.mxu0 0.0
        %306 = vmatpush1.msra.mxu0 %v287
        %307 = vmatprep.subr.mxu0 0.0
        %308 = vmatpush1.msra.mxu0 %v288
        %309 = vmatprep.subr.mxu0 0.0
        %310 = vmatpush1.msra.mxu0 %v289
        %311 = vmatprep.subr.mxu0 0.0
        %312 = vmatpush1.msra.mxu0 %v290
        %313 = vmatprep.subr.mxu0 0.0
        %314 = vmatpush1.msra.mxu0 0.0
        %315 = vmatprep.subr.mxu0 0.0
        %316 = vmatpush1.msra.mxu0 0.0
        %317 = vmatprep.subr.mxu0 0.0
        %318 = vmatpush1.msra.mxu0 0.0
        %319 = vmatprep.subr.mxu0 0.0
        %320 = vmatpush1.msra.mxu0 0.0
        %321 = vmatprep.subr.mxu0 0.0
        %322 = vmatpush1.msra.mxu0 0.0
        %323 = vmatprep.subr.mxu0 0.0
        %324 = vmatpush1.msra.mxu0 0.0
        %325 = vmatprep.subr.mxu0 0.0
        %326 = vmatpush1.msra.mxu0 0.0
        %327 = vmatprep.subr.mxu0 0.0
        %328 = vmatpush1.msra.mxu0 0.0
        %329 = vmatprep.subr.mxu0 0.0
        %330 = vmatpush1.msra.mxu0 0.0
        %331 = vmatprep.subr.mxu0 0.0
        %332 = vmatpush1.msra.mxu0 0.0
        %333 = vmatprep.subr.mxu0 0.0
        %334 = vmatpush1.msra.mxu0 0.0
        %335 = vmatprep.subr.mxu0 0.0
        %336 = vmatpush1.msra.mxu0 0.0
        %337 = vmatprep.subr.mxu0 0.0
        %338 = vmatpush1.msra.mxu0 0.0
        %339 = vmatprep.subr.mxu0 0.0
        %340 = vmatpush1.msra.mxu0 0.0
        %341 = vmatprep.subr.mxu0 0.0
        %342 = vmatpush1.msra.mxu0 0.0
        %343 = vmatprep.subr.mxu0 0.0
        %344 = vmatpush1.msra.mxu0 0.0
        %345 = vmatprep.subr.mxu0 0.0
        %346 = vmatpush1.msra.mxu0 0.0
        %347 = vmatprep.subr.mxu0 0.0
        %348 = vmatpush1.msra.mxu0 0.0
        %349 = vmatprep.subr.mxu0 0.0
        %350 = vmatpush1.msra.mxu0 0.0
        %351 = vmatprep.subr.mxu0 0.0
        %352 = vmatpush1.msra.mxu0 0.0
        %353 = vmatprep.subr.mxu0 0.0
        %354 = vmatpush1.msra.mxu0 0.0
        %355 = vmatprep.subr.mxu0 0.0
        %356 = vmatpush1.msra.mxu0 0.0
        %357 = vmatprep.subr.mxu0 0.0
        %358 = vmatpush1.msra.mxu0 0.0
        %359 = vmatprep.subr.mxu0 0.0
        %360 = vmatpush1.msra.mxu0 0.0
        %361 = vmatprep.mubr.f32.mxu0 0.0
        %362 = vmatmul.mubr.f32.gmra.mrb[0].mxu0 %v295
        %v363 = vpop.f32.mrb[0].mxu0
        %v364 = vadd.f32 0.0, %v363
        %v365 = vpop.f32.mrb[0].mxu0
        %366 = vdwg.mxu0
        %v368 = vsel %vm293, %v364, 0
        %v371 = vsel %vm293, %v292, 0
        %373 = vmatprep.subr.mxu0 0.0
        %374 = vmatpush1.xpose.msra.mxu0 %v371
        %375 = vmatprep.subr.mxu0 0.0
        %376 = vmatpush1.xpose.msra.mxu0 0.0
        %377 = vmatprep.subr.mxu0 0.0
        %378 = vmatpush1.xpose.msra.mxu0 0.0
        %379 = vmatprep.subr.mxu0 0.0
        %380 = vmatpush1.xpose.msra.mxu0 0.0
        %381 = vmatprep.subr.mxu0 0.0
        %382 = vmatpush1.xpose.msra.mxu0 0.0
        %383 = vmatprep.subr.mxu0 0.0
        %384 = vmatpush1.xpose.msra.mxu0 0.0
        %385 = vmatprep.subr.mxu0 0.0
        %386 = vmatpush1.xpose.msra.mxu0 0.0
        %387 = vmatprep.subr.mxu0 0.0
        %388 = vmatpush1.xpose.msra.mxu0 0.0
        %389 = vmatprep.subr.mxu0 0.0
        %390 = vmatpush1.xpose.msra.mxu0 0.0
        %391 = vmatprep.subr.mxu0 0.0
        %392 = vmatpush1.xpose.msra.mxu0 0.0
        %393 = vmatprep.subr.mxu0 0.0
        %394 = vmatpush1.xpose.msra.mxu0 0.0
        %395 = vmatprep.subr.mxu0 0.0
        %396 = vmatpush1.xpose.msra.mxu0 0.0
        %397 = vmatprep.subr.mxu0 0.0
        %398 = vmatpush1.xpose.msra.mxu0 0.0
        %399 = vmatprep.subr.mxu0 0.0
        %400 = vmatpush1.xpose.msra.mxu0 0.0
        %401 = vmatprep.subr.mxu0 0.0
        %402 = vmatpush1.xpose.msra.mxu0 0.0
        %403 = vmatprep.subr.mxu0 0.0
        %404 = vmatpush1.xpose.msra.mxu0 0.0
        %405 = vmatprep.subr.mxu0 0.0
        %406 = vmatpush1.xpose.msra.mxu0 0.0
        %407 = vmatprep.subr.mxu0 0.0
        %408 = vmatpush1.xpose.msra.mxu0 0.0
        %409 = vmatprep.subr.mxu0 0.0
        %410 = vmatpush1.xpose.msra.mxu0 0.0
        %411 = vmatprep.subr.mxu0 0.0
        %412 = vmatpush1.xpose.msra.mxu0 0.0
        %413 = vmatprep.subr.mxu0 0.0
        %414 = vmatpush1.xpose.msra.mxu0 0.0
        %415 = vmatprep.subr.mxu0 0.0
        %416 = vmatpush1.xpose.msra.mxu0 0.0
        %417 = vmatprep.subr.mxu0 0.0
        %418 = vmatpush1.xpose.msra.mxu0 0.0
        %419 = vmatprep.subr.mxu0 0.0
        %420 = vmatpush1.xpose.msra.mxu0 0.0
        %421 = vmatprep.subr.mxu0 0.0
        %422 = vmatpush1.xpose.msra.mxu0 0.0
        %423 = vmatprep.subr.mxu0 0.0
        %424 = vmatpush1.xpose.msra.mxu0 0.0
        %425 = vmatprep.subr.mxu0 0.0
        %426 = vmatpush1.xpose.msra.mxu0 0.0
        %427 = vmatprep.subr.mxu0 0.0
        %428 = vmatpush1.xpose.msra.mxu0 0.0
        %429 = vmatprep.subr.mxu0 0.0
        %430 = vmatpush1.xpose.msra.mxu0 0.0
        %431 = vmatprep.subr.mxu0 0.0
        %432 = vmatpush1.xpose.msra.mxu0 0.0
        %433 = vmatprep.subr.mxu0 0.0
        %434 = vmatpush1.xpose.msra.mxu0 0.0
        %435 = vmatprep.subr.mxu0 0.0
        %436 = vmatpush1.xpose.msra.mxu0 0.0
        %437 = vmatprep.mubr.f32.mxu0 0.0
        %438 = vmatmul.mubr.f32.gmra.mrb[0].mxu0 %v368
        %v439 = vpop.f32.mrb[0].mxu0
        %v440 = vadd.f32 0.0, %v439
        %v441 = vpop.f32.mrb[0].mxu0
        %442 = vdwg.mxu0
        %v443 = vmul.f32 %v283, %v283
        %v444 = vmul.f32 %v284, %v284
        %v445 = vmul.f32 %v285, %v285
        %v446 = vmul.f32 %v286, %v286
        %v447 = vmul.f32 %v287, %v287
        %v448 = vmul.f32 %v288, %v288
        %v449 = vmul.f32 %v289, %v289
        %v450 = vmul.f32 %v290, %v290
        %451 = vmatprep.subr.mxu0 0.0
        %452 = vmatpush1.msra.mxu0 %v443
        %453 = vmatprep.subr.mxu0 0.0
        %454 = vmatpush1.msra.mxu0 %v444
        %455 = vmatprep.subr.mxu0 0.0
        %456 = vmatpush1.msra.mxu0 %v445
        %457 = vmatprep.subr.mxu0 0.0
        %458 = vmatpush1.msra.mxu0 %v446
        %459 = vmatprep.subr.mxu0 0.0
        %460 = vmatpush1.msra.mxu0 %v447
        %461 = vmatprep.subr.mxu0 0.0
        %462 = vmatpush1.msra.mxu0 %v448
        %463 = vmatprep.subr.mxu0 0.0
        %464 = vmatpush1.msra.mxu0 %v449
        %465 = vmatprep.subr.mxu0 0.0
        %466 = vmatpush1.msra.mxu0 %v450
        %467 = vmatprep.subr.mxu0 0.0
        %468 = vmatpush1.msra.mxu0 0.0
        %469 = vmatprep.subr.mxu0 0.0
        %470 = vmatpush1.msra.mxu0 0.0
        %471 = vmatprep.subr.mxu0 0.0
        %472 = vmatpush1.msra.mxu0 0.0
        %473 = vmatprep.subr.mxu0 0.0
        %474 = vmatpush1.msra.mxu0 0.0
        %475 = vmatprep.subr.mxu0 0.0
        %476 = vmatpush1.msra.mxu0 0.0
        %477 = vmatprep.subr.mxu0 0.0
        %478 = vmatpush1.msra.mxu0 0.0
        %479 = vmatprep.subr.mxu0 0.0
        %480 = vmatpush1.msra.mxu0 0.0
        %481 = vmatprep.subr.mxu0 0.0
        %482 = vmatpush1.msra.mxu0 0.0
        %483 = vmatprep.subr.mxu0 0.0
        %484 = vmatpush1.msra.mxu0 0.0
        %485 = vmatprep.subr.mxu0 0.0
        %486 = vmatpush1.msra.mxu0 0.0
        %487 = vmatprep.subr.mxu0 0.0
        %488 = vmatpush1.msra.mxu0 0.0
        %489 = vmatprep.subr.mxu0 0.0
        %490 = vmatpush1.msra.mxu0 0.0
        %491 = vmatprep.subr.mxu0 0.0
        %492 = vmatpush1.msra.mxu0 0.0
        %493 = vmatprep.subr.mxu0 0.0
        %494 = vmatpush1.msra.mxu0 0.0
        %495 = vmatprep.subr.mxu0 0.0
        %496 = vmatpush1.msra.mxu0 0.0
        %497 = vmatprep.subr.mxu0 0.0
        %498 = vmatpush1.msra.mxu0 0.0
        %499 = vmatprep.subr.mxu0 0.0
        %500 = vmatpush1.msra.mxu0 0.0
        %501 = vmatprep.subr.mxu0 0.0
        %502 = vmatpush1.msra.mxu0 0.0
        %503 = vmatprep.subr.mxu0 0.0
        %504 = vmatpush1.msra.mxu0 0.0
        %505 = vmatprep.subr.mxu0 0.0
        %506 = vmatpush1.msra.mxu0 0.0
        %507 = vmatprep.subr.mxu0 0.0
        %508 = vmatpush1.msra.mxu0 0.0
        %509 = vmatprep.subr.mxu0 0.0
        %510 = vmatpush1.msra.mxu0 0.0
        %511 = vmatprep.subr.mxu0 0.0
        %512 = vmatpush1.msra.mxu0 0.0
        %513 = vmatprep.subr.mxu0 0.0
        %514 = vmatpush1.msra.mxu0 0.0
        %515 = vmatprep.mubr.f32.mxu0 0.0
        %516 = vmatmul.mubr.f32.gmra.mrb[0].mxu0 %v295
        %v517 = vpop.f32.mrb[0].mxu0
        %v518 = vadd.f32 0.0, %v517
        %v519 = vpop.f32.mrb[0].mxu0
        %520 = vdwg.mxu0
        %v522 = vsel %vm293, %v518, 0
        %524 = vmatprep.subr.mxu0 0.0
        %525 = vmatpush1.xpose.msra.mxu0 %v371
        %526 = vmatprep.subr.mxu0 0.0
        %527 = vmatpush1.xpose.msra.mxu0 0.0
        %528 = vmatprep.subr.mxu0 0.0
        %529 = vmatpush1.xpose.msra.mxu0 0.0
        %530 = vmatprep.subr.mxu0 0.0
        %531 = vmatpush1.xpose.msra.mxu0 0.0
        %532 = vmatprep.subr.mxu0 0.0
        %533 = vmatpush1.xpose.msra.mxu0 0.0
        %534 = vmatprep.subr.mxu0 0.0
        %535 = vmatpush1.xpose.msra.mxu0 0.0
        %536 = vmatprep.subr.mxu0 0.0
        %537 = vmatpush1.xpose.msra.mxu0 0.0
        %538 = vmatprep.subr.mxu0 0.0
        %539 = vmatpush1.xpose.msra.mxu0 0.0
        %540 = vmatprep.subr.mxu0 0.0
        %541 = vmatpush1.xpose.msra.mxu0 0.0
        %542 = vmatprep.subr.mxu0 0.0
        %543 = vmatpush1.xpose.msra.mxu0 0.0
        %544 = vmatprep.subr.mxu0 0.0
        %545 = vmatpush1.xpose.msra.mxu0 0.0
        %546 = vmatprep.subr.mxu0 0.0
        %547 = vmatpush1.xpose.msra.mxu0 0.0
        %548 = vmatprep.subr.mxu0 0.0
        %549 = vmatpush1.xpose.msra.mxu0 0.0
        %550 = vmatprep.subr.mxu0 0.0
        %551 = vmatpush1.xpose.msra.mxu0 0.0
        %552 = vmatprep.subr.mxu0 0.0
        %553 = vmatpush1.xpose.msra.mxu0 0.0
        %554 = vmatprep.subr.mxu0 0.0
        %555 = vmatpush1.xpose.msra.mxu0 0.0
        %556 = vmatprep.subr.mxu0 0.0
        %557 = vmatpush1.xpose.msra.mxu0 0.0
        %558 = vmatprep.subr.mxu0 0.0
        %559 = vmatpush1.xpose.msra.mxu0 0.0
        %560 = vmatprep.subr.mxu0 0.0
        %561 = vmatpush1.xpose.msra.mxu0 0.0
        %562 = vmatprep.subr.mxu0 0.0
        %563 = vmatpush1.xpose.msra.mxu0 0.0
        %564 = vmatprep.subr.mxu0 0.0
        %565 = vmatpush1.xpose.msra.mxu0 0.0
        %566 = vmatprep.subr.mxu0 0.0
        %567 = vmatpush1.xpose.msra.mxu0 0.0
        %568 = vmatprep.subr.mxu0 0.0
        %569 = vmatpush1.xpose.msra.mxu0 0.0
        %570 = vmatprep.subr.mxu0 0.0
        %571 = vmatpush1.xpose.msra.mxu0 0.0
        %572 = vmatprep.subr.mxu0 0.0
        %573 = vmatpush1.xpose.msra.mxu0 0.0
        %574 = vmatprep.subr.mxu0 0.0
        %575 = vmatpush1.xpose.msra.mxu0 0.0
        %576 = vmatprep.subr.mxu0 0.0
        %577 = vmatpush1.xpose.msra.mxu0 0.0
        %578 = vmatprep.subr.mxu0 0.0
        %579 = vmatpush1.xpose.msra.mxu0 0.0
        %580 = vmatprep.subr.mxu0 0.0
        %581 = vmatpush1.xpose.msra.mxu0 0.0
        %582 = vmatprep.subr.mxu0 0.0
        %583 = vmatpush1.xpose.msra.mxu0 0.0
        %584 = vmatprep.subr.mxu0 0.0
        %585 = vmatpush1.xpose.msra.mxu0 0.0
        %586 = vmatprep.subr.mxu0 0.0
        %587 = vmatpush1.xpose.msra.mxu0 0.0
        %588 = vmatprep.mubr.f32.mxu0 0.0
        %589 = vmatmul.mubr.f32.gmra.mrb[0].mxu0 %v522
        %v590 = vpop.f32.mrb[0].mxu0
        %v591 = vadd.f32 0.0, %v590
        %v592 = vpop.f32.mrb[0].mxu0
        %593 = vdwg.mxu0
        %v594 = vlaneseq
        %v595 = vand.u32 %v594, 127
        %v596 = vld [vmem:[%s237] sm:$0xff]
        %v597 = vld [vmem:[%s237 + $0x8] sm:$0xff]
        %v598 = vld [vmem:[%s237 + $0x10] sm:$0xff]
        %v599 = vld [vmem:[%s237 + $0x18] sm:$0xff]
        %v600 = vld [vmem:[%s237 + $0x20] sm:$0xff]
        %v601 = vld [vmem:[%s237 + $0x28] sm:$0xff]
        %v602 = vld [vmem:[%s237 + $0x30] sm:$0xff]
        %v603 = vld [vmem:[%s237 + $0x38] sm:$0xff]
        %604 = vmatprep.subr.mxu0 0.0
        %605 = vmatpush1.msra.mxu0 %v596
        %606 = vmatprep.subr.mxu0 0.0
        %607 = vmatpush1.msra.mxu0 %v597
        %608 = vmatprep.subr.mxu0 0.0
        %609 = vmatpush1.msra.mxu0 %v598
        %610 = vmatprep.subr.mxu0 0.0
        %611 = vmatpush1.msra.mxu0 %v599
        %612 = vmatprep.subr.mxu0 0.0
        %613 = vmatpush1.msra.mxu0 %v600
        %614 = vmatprep.subr.mxu0 0.0
        %615 = vmatpush1.msra.mxu0 %v601
        %616 = vmatprep.subr.mxu0 0.0
        %617 = vmatpush1.msra.mxu0 %v602
        %618 = vmatprep.subr.mxu0 0.0
        %619 = vmatpush1.msra.mxu0 %v603
        %620 = vmatprep.subr.mxu0 0.0
        %621 = vmatpush1.msra.mxu0 0.0
        %622 = vmatprep.subr.mxu0 0.0
        %623 = vmatpush1.msra.mxu0 0.0
        %624 = vmatprep.subr.mxu0 0.0
        %625 = vmatpush1.msra.mxu0 0.0
        %626 = vmatprep.subr.mxu0 0.0
        %627 = vmatpush1.msra.mxu0 0.0
        %628 = vmatprep.subr.mxu0 0.0
        %629 = vmatpush1.msra.mxu0 0.0
        %630 = vmatprep.subr.mxu0 0.0
        %631 = vmatpush1.msra.mxu0 0.0
        %632 = vmatprep.subr.mxu0 0.0
        %633 = vmatpush1.msra.mxu0 0.0
        %634 = vmatprep.subr.mxu0 0.0
        %635 = vmatpush1.msra.mxu0 0.0
        %636 = vmatprep.subr.mxu0 0.0
        %637 = vmatpush1.msra.mxu0 0.0
        %638 = vmatprep.subr.mxu0 0.0
        %639 = vmatpush1.msra.mxu0 0.0
        %640 = vmatprep.subr.mxu0 0.0
        %641 = vmatpush1.msra.mxu0 0.0
        %642 = vmatprep.subr.mxu0 0.0
        %643 = vmatpush1.msra.mxu0 0.0
        %644 = vmatprep.subr.mxu0 0.0
        %645 = vmatpush1.msra.mxu0 0.0
        %646 = vmatprep.subr.mxu0 0.0
        %647 = vmatpush1.msra.mxu0 0.0
        %648 = vmatprep.subr.mxu0 0.0
        %649 = vmatpush1.msra.mxu0 0.0
        %650 = vmatprep.subr.mxu0 0.0
        %651 = vmatpush1.msra.mxu0 0.0
        %652 = vmatprep.subr.mxu0 0.0
        %653 = vmatpush1.msra.mxu0 0.0
        %654 = vmatprep.subr.mxu0 0.0
        %655 = vmatpush1.msra.mxu0 0.0
        %656 = vmatprep.subr.mxu0 0.0
        %657 = vmatpush1.msra.mxu0 0.0
        %658 = vmatprep.subr.mxu0 0.0
        %659 = vmatpush1.msra.mxu0 0.0
        %660 = vmatprep.subr.mxu0 0.0
        %661 = vmatpush1.msra.mxu0 0.0
        %662 = vmatprep.subr.mxu0 0.0
        %663 = vmatpush1.msra.mxu0 0.0
        %664 = vmatprep.subr.mxu0 0.0
        %665 = vmatpush1.msra.mxu0 0.0
        %666 = vmatprep.subr.mxu0 0.0
        %667 = vmatpush1.msra.mxu0 0.0
        %668 = vmatprep.mubr.f32.mxu0 0.0
        %669 = vmatmul.mubr.f32.gmra.mrb[0].mxu0 %v295
        %v670 = vpop.f32.mrb[0].mxu0
        %v671 = vadd.f32 0.0, %v670
        %v672 = vpop.f32.mrb[0].mxu0
        %673 = vdwg.mxu0
        %v675 = vsel %vm293, %v671, 0
        %677 = vmatprep.subr.mxu0 0.0
        %678 = vmatpush1.xpose.msra.mxu0 %v371
        %679 = vmatprep.subr.mxu0 0.0
        %680 = vmatpush1.xpose.msra.mxu0 0.0
        %681 = vmatprep.subr.mxu0 0.0
        %682 = vmatpush1.xpose.msra.mxu0 0.0
        %683 = vmatprep.subr.mxu0 0.0
        %684 = vmatpush1.xpose.msra.mxu0 0.0
        %685 = vmatprep.subr.mxu0 0.0
        %686 = vmatpush1.xpose.msra.mxu0 0.0
        %687 = vmatprep.subr.mxu0 0.0
        %688 = vmatpush1.xpose.msra.mxu0 0.0
        %689 = vmatprep.subr.mxu0 0.0
        %690 = vmatpush1.xpose.msra.mxu0 0.0
        %691 = vmatprep.subr.mxu0 0.0
        %692 = vmatpush1.xpose.msra.mxu0 0.0
        %693 = vmatprep.subr.mxu0 0.0
        %694 = vmatpush1.xpose.msra.mxu0 0.0
        %695 = vmatprep.subr.mxu0 0.0
        %696 = vmatpush1.xpose.msra.mxu0 0.0
        %697 = vmatprep.subr.mxu0 0.0
        %698 = vmatpush1.xpose.msra.mxu0 0.0
        %699 = vmatprep.subr.mxu0 0.0
        %700 = vmatpush1.xpose.msra.mxu0 0.0
        %701 = vmatprep.subr.mxu0 0.0
        %702 = vmatpush1.xpose.msra.mxu0 0.0
        %703 = vmatprep.subr.mxu0 0.0
        %704 = vmatpush1.xpose.msra.mxu0 0.0
        %705 = vmatprep.subr.mxu0 0.0
        %706 = vmatpush1.xpose.msra.mxu0 0.0
        %707 = vmatprep.subr.mxu0 0.0
        %708 = vmatpush1.xpose.msra.mxu0 0.0
        %709 = vmatprep.subr.mxu0 0.0
        %710 = vmatpush1.xpose.msra.mxu0 0.0
        %711 = vmatprep.subr.mxu0 0.0
        %712 = vmatpush1.xpose.msra.mxu0 0.0
        %713 = vmatprep.subr.mxu0 0.0
        %714 = vmatpush1.xpose.msra.mxu0 0.0
        %715 = vmatprep.subr.mxu0 0.0
        %716 = vmatpush1.xpose.msra.mxu0 0.0
        %717 = vmatprep.subr.mxu0 0.0
        %718 = vmatpush1.xpose.msra.mxu0 0.0
        %719 = vmatprep.subr.mxu0 0.0
        %720 = vmatpush1.xpose.msra.mxu0 0.0
        %721 = vmatprep.subr.mxu0 0.0
        %722 = vmatpush1.xpose.msra.mxu0 0.0
        %723 = vmatprep.subr.mxu0 0.0
        %724 = vmatpush1.xpose.msra.mxu0 0.0
        %725 = vmatprep.subr.mxu0 0.0
        %726 = vmatpush1.xpose.msra.mxu0 0.0
        %727 = vmatprep.subr.mxu0 0.0
        %728 = vmatpush1.xpose.msra.mxu0 0.0
        %729 = vmatprep.subr.mxu0 0.0
        %730 = vmatpush1.xpose.msra.mxu0 0.0
        %731 = vmatprep.subr.mxu0 0.0
        %732 = vmatpush1.xpose.msra.mxu0 0.0
        %733 = vmatprep.subr.mxu0 0.0
        %734 = vmatpush1.xpose.msra.mxu0 0.0
        %735 = vmatprep.subr.mxu0 0.0
        %736 = vmatpush1.xpose.msra.mxu0 0.0
        %737 = vmatprep.subr.mxu0 0.0
        %738 = vmatpush1.xpose.msra.mxu0 0.0
        %739 = vmatprep.subr.mxu0 0.0
        %740 = vmatpush1.xpose.msra.mxu0 0.0
        %741 = vmatprep.mubr.f32.mxu0 0.0
        %742 = vmatmul.mubr.f32.gmra.mrb[0].mxu0 %v675
        %v743 = vpop.f32.mrb[0].mxu0
        %v744 = vadd.f32 0.0, %v743
        %v745 = vpop.f32.mrb[0].mxu0
        %746 = vdwg.mxu0
        %v747 = vmul.f32 %v596, %v596
        %v748 = vmul.f32 %v597, %v597
        %v749 = vmul.f32 %v598, %v598
        %v750 = vmul.f32 %v599, %v599
        %v751 = vmul.f32 %v600, %v600
        %v752 = vmul.f32 %v601, %v601
        %v753 = vmul.f32 %v602, %v602
        %v754 = vmul.f32 %v603, %v603
        %755 = vmatprep.subr.mxu0 0.0
        %756 = vmatpush1.msra.mxu0 %v747
        %757 = vmatprep.subr.mxu0 0.0
        %758 = vmatpush1.msra.mxu0 %v748
        %759 = vmatprep.subr.mxu0 0.0
        %760 = vmatpush1.msra.mxu0 %v749
        %761 = vmatprep.subr.mxu0 0.0
        %762 = vmatpush1.msra.mxu0 %v750
        %763 = vmatprep.subr.mxu0 0.0
        %764 = vmatpush1.msra.mxu0 %v751
        %765 = vmatprep.subr.mxu0 0.0
        %766 = vmatpush1.msra.mxu0 %v752
        %767 = vmatprep.subr.mxu0 0.0
        %768 = vmatpush1.msra.mxu0 %v753
        %769 = vmatprep.subr.mxu0 0.0
        %770 = vmatpush1.msra.mxu0 %v754
        %771 = vmatprep.subr.mxu0 0.0
        %772 = vmatpush1.msra.mxu0 0.0
        %773 = vmatprep.subr.mxu0 0.0
        %774 = vmatpush1.msra.mxu0 0.0
        %775 = vmatprep.subr.mxu0 0.0
        %776 = vmatpush1.msra.mxu0 0.0
        %777 = vmatprep.subr.mxu0 0.0
        %778 = vmatpush1.msra.mxu0 0.0
        %779 = vmatprep.subr.mxu0 0.0
        %780 = vmatpush1.msra.mxu0 0.0
        %781 = vmatprep.subr.mxu0 0.0
        %782 = vmatpush1.msra.mxu0 0.0
        %783 = vmatprep.subr.mxu0 0.0
        %784 = vmatpush1.msra.mxu0 0.0
        %785 = vmatprep.subr.mxu0 0.0
        %786 = vmatpush1.msra.mxu0 0.0
        %787 = vmatprep.subr.mxu0 0.0
        %788 = vmatpush1.msra.mxu0 0.0
        %789 = vmatprep.subr.mxu0 0.0
        %790 = vmatpush1.msra.mxu0 0.0
        %791 = vmatprep.subr.mxu0 0.0
        %792 = vmatpush1.msra.mxu0 0.0
        %793 = vmatprep.subr.mxu0 0.0
        %794 = vmatpush1.msra.mxu0 0.0
        %795 = vmatprep.subr.mxu0 0.0
        %796 = vmatpush1.msra.mxu0 0.0
        %797 = vmatprep.subr.mxu0 0.0
        %798 = vmatpush1.msra.mxu0 0.0
        %799 = vmatprep.subr.mxu0 0.0
        %800 = vmatpush1.msra.mxu0 0.0
        %801 = vmatprep.subr.mxu0 0.0
        %802 = vmatpush1.msra.mxu0 0.0
        %803 = vmatprep.subr.mxu0 0.0
        %804 = vmatpush1.msra.mxu0 0.0
        %805 = vmatprep.subr.mxu0 0.0
        %806 = vmatpush1.msra.mxu0 0.0
        %807 = vmatprep.subr.mxu0 0.0
        %808 = vmatpush1.msra.mxu0 0.0
        %809 = vmatprep.subr.mxu0 0.0
        %810 = vmatpush1.msra.mxu0 0.0
        %811 = vmatprep.subr.mxu0 0.0
        %812 = vmatpush1.msra.mxu0 0.0
        %813 = vmatprep.subr.mxu0 0.0
        %814 = vmatpush1.msra.mxu0 0.0
        %815 = vmatprep.subr.mxu0 0.0
        %816 = vmatpush1.msra.mxu0 0.0
        %817 = vmatprep.subr.mxu0 0.0
        %818 = vmatpush1.msra.mxu0 0.0
        %819 = vmatprep.mubr.f32.mxu0 0.0
        %820 = vmatmul.mubr.f32.gmra.mrb[0].mxu0 %v295
        %v821 = vpop.f32.mrb[0].mxu0
        %v822 = vadd.f32 0.0, %v821
        %v823 = vpop.f32.mrb[0].mxu0
        %824 = vdwg.mxu0
        %v825 = vmul.f32 %v596, %v283
        %v826 = vmul.f32 %v597, %v284
        %v827 = vmul.f32 %v598, %v285
        %v828 = vmul.f32 %v599, %v286
        %v829 = vmul.f32 %v600, %v287
        %v830 = vmul.f32 %v601, %v288
        %v831 = vmul.f32 %v602, %v289
        %v832 = vmul.f32 %v603, %v290
        %833 = vmatprep.subr.mxu0 0.0
        %834 = vmatpush1.msra.mxu0 %v825
        %835 = vmatprep.subr.mxu0 0.0
        %836 = vmatpush1.msra.mxu0 %v826
        %837 = vmatprep.subr.mxu0 0.0
        %838 = vmatpush1.msra.mxu0 %v827
        %839 = vmatprep.subr.mxu0 0.0
        %840 = vmatpush1.msra.mxu0 %v828
        %841 = vmatprep.subr.mxu0 0.0
        %842 = vmatpush1.msra.mxu0 %v829
        %843 = vmatprep.subr.mxu0 0.0
        %844 = vmatpush1.msra.mxu0 %v830
        %845 = vmatprep.subr.mxu0 0.0
        %846 = vmatpush1.msra.mxu0 %v831
        %847 = vmatprep.subr.mxu0 0.0
        %848 = vmatpush1.msra.mxu0 %v832
        %849 = vmatprep.subr.mxu0 0.0
        %850 = vmatpush1.msra.mxu0 0.0
        %851 = vmatprep.subr.mxu0 0.0
        %852 = vmatpush1.msra.mxu0 0.0
        %853 = vmatprep.subr.mxu0 0.0
        %854 = vmatpush1.msra.mxu0 0.0
        %855 = vmatprep.subr.mxu0 0.0
        %856 = vmatpush1.msra.mxu0 0.0
        %857 = vmatprep.subr.mxu0 0.0
        %858 = vmatpush1.msra.mxu0 0.0
        %859 = vmatprep.subr.mxu0 0.0
        %860 = vmatpush1.msra.mxu0 0.0
        %861 = vmatprep.subr.mxu0 0.0
        %862 = vmatpush1.msra.mxu0 0.0
        %863 = vmatprep.subr.mxu0 0.0
        %864 = vmatpush1.msra.mxu0 0.0
        %865 = vmatprep.subr.mxu0 0.0
        %866 = vmatpush1.msra.mxu0 0.0
        %867 = vmatprep.subr.mxu0 0.0
        %868 = vmatpush1.msra.mxu0 0.0
        %869 = vmatprep.subr.mxu0 0.0
        %870 = vmatpush1.msra.mxu0 0.0
        %871 = vmatprep.subr.mxu0 0.0
        %872 = vmatpush1.msra.mxu0 0.0
        %873 = vmatprep.subr.mxu0 0.0
        %874 = vmatpush1.msra.mxu0 0.0
        %875 = vmatprep.subr.mxu0 0.0
        %876 = vmatpush1.msra.mxu0 0.0
        %877 = vmatprep.subr.mxu0 0.0
        %878 = vmatpush1.msra.mxu0 0.0
        %879 = vmatprep.subr.mxu0 0.0
        %880 = vmatpush1.msra.mxu0 0.0
        %881 = vmatprep.subr.mxu0 0.0
        %882 = vmatpush1.msra.mxu0 0.0
        %883 = vmatprep.subr.mxu0 0.0
        %884 = vmatpush1.msra.mxu0 0.0
        %885 = vmatprep.subr.mxu0 0.0
        %886 = vmatpush1.msra.mxu0 0.0
        %887 = vmatprep.subr.mxu0 0.0
        %888 = vmatpush1.msra.mxu0 0.0
        %889 = vmatprep.subr.mxu0 0.0
        %890 = vmatpush1.msra.mxu0 0.0
        %891 = vmatprep.subr.mxu0 0.0
        %892 = vmatpush1.msra.mxu0 0.0
        %893 = vmatprep.subr.mxu0 0.0
        %894 = vmatpush1.msra.mxu0 0.0
        %895 = vmatprep.subr.mxu0 0.0
        %896 = vmatpush1.msra.mxu0 0.0
        %897 = vmatprep.mubr.f32.mxu0 0.0
        %898 = vmatmul.mubr.f32.gmra.mrb[0].mxu0 %v295
        %v899 = vpop.f32.mrb[0].mxu0
        %v900 = vadd.f32 0.0, %v899
        %v901 = vpop.f32.mrb[0].mxu0
        %902 = vdwg.mxu0
        %v904 = vsel %vm293, %v900, 0
        %906 = vmatprep.subr.mxu0 0.0
        %907 = vmatpush1.xpose.msra.mxu0 %v371
        %908 = vmatprep.subr.mxu0 0.0
        %909 = vmatpush1.xpose.msra.mxu0 0.0
        %910 = vmatprep.subr.mxu0 0.0
        %911 = vmatpush1.xpose.msra.mxu0 0.0
        %912 = vmatprep.subr.mxu0 0.0
        %913 = vmatpush1.xpose.msra.mxu0 0.0
        %914 = vmatprep.subr.mxu0 0.0
        %915 = vmatpush1.xpose.msra.mxu0 0.0
        %916 = vmatprep.subr.mxu0 0.0
        %917 = vmatpush1.xpose.msra.mxu0 0.0
        %918 = vmatprep.subr.mxu0 0.0
        %919 = vmatpush1.xpose.msra.mxu0 0.0
        %920 = vmatprep.subr.mxu0 0.0
        %921 = vmatpush1.xpose.msra.mxu0 0.0
        %922 = vmatprep.subr.mxu0 0.0
        %923 = vmatpush1.xpose.msra.mxu0 0.0
        %924 = vmatprep.subr.mxu0 0.0
        %925 = vmatpush1.xpose.msra.mxu0 0.0
        %926 = vmatprep.subr.mxu0 0.0
        %927 = vmatpush1.xpose.msra.mxu0 0.0
        %928 = vmatprep.subr.mxu0 0.0
        %929 = vmatpush1.xpose.msra.mxu0 0.0
        %930 = vmatprep.subr.mxu0 0.0
        %931 = vmatpush1.xpose.msra.mxu0 0.0
        %932 = vmatprep.subr.mxu0 0.0
        %933 = vmatpush1.xpose.msra.mxu0 0.0
        %934 = vmatprep.subr.mxu0 0.0
        %935 = vmatpush1.xpose.msra.mxu0 0.0
        %936 = vmatprep.subr.mxu0 0.0
        %937 = vmatpush1.xpose.msra.mxu0 0.0
        %938 = vmatprep.subr.mxu0 0.0
        %939 = vmatpush1.xpose.msra.mxu0 0.0
        %940 = vmatprep.subr.mxu0 0.0
        %941 = vmatpush1.xpose.msra.mxu0 0.0
        %942 = vmatprep.subr.mxu0 0.0
        %943 = vmatpush1.xpose.msra.mxu0 0.0
        %944 = vmatprep.subr.mxu0 0.0
        %945 = vmatpush1.xpose.msra.mxu0 0.0
        %946 = vmatprep.subr.mxu0 0.0
        %947 = vmatpush1.xpose.msra.mxu0 0.0
        %948 = vmatprep.subr.mxu0 0.0
        %949 = vmatpush1.xpose.msra.mxu0 0.0
        %950 = vmatprep.subr.mxu0 0.0
        %951 = vmatpush1.xpose.msra.mxu0 0.0
        %952 = vmatprep.subr.mxu0 0.0
        %953 = vmatpush1.xpose.msra.mxu0 0.0
        %954 = vmatprep.subr.mxu0 0.0
        %955 = vmatpush1.xpose.msra.mxu0 0.0
        %956 = vmatprep.subr.mxu0 0.0
        %957 = vmatpush1.xpose.msra.mxu0 0.0
        %958 = vmatprep.subr.mxu0 0.0
        %959 = vmatpush1.xpose.msra.mxu0 0.0
        %960 = vmatprep.subr.mxu0 0.0
        %961 = vmatpush1.xpose.msra.mxu0 0.0
        %962 = vmatprep.subr.mxu0 0.0
        %963 = vmatpush1.xpose.msra.mxu0 0.0
        %964 = vmatprep.subr.mxu0 0.0
        %965 = vmatpush1.xpose.msra.mxu0 0.0
        %966 = vmatprep.subr.mxu0 0.0
        %967 = vmatpush1.xpose.msra.mxu0 0.0
        %968 = vmatprep.subr.mxu0 0.0
        %969 = vmatpush1.xpose.msra.mxu0 0.0
        %970 = vmatprep.mubr.f32.mxu0 0.0
        %971 = vmatmul.mubr.f32.gmra.mrb[0].mxu0 %v904
        %v972 = vpop.f32.mrb[0].mxu0
        %v973 = vadd.f32 0.0, %v972
        %v974 = vpop.f32.mrb[0].mxu0
        %975 = vdwg.mxu0
        %v976 = vmul.f32 %v744, %v440
        %v977 = vmul.f32 %v744, %v744
        %v978 = vmul.f32 %v440, %v440
        %v979 = vadd.f32 %v977, %v978
        %v980 = vmul.f32 %v973, 1024.0
        %v981 = vsub.f32 %v980, %v976
        %v982 = vmul.f32 %v981, 4.0
        %v983 = vmul.f32 %v982, %v976
        %v985 = vsel %vm293, %v822, 0
        %987 = vmatprep.subr.mxu0 0.0
        %988 = vmatpush1.xpose.msra.mxu0 %v371
        %989 = vmatprep.subr.mxu0 0.0
        %990 = vmatpush1.xpose.msra.mxu0 0.0
        %991 = vmatprep.subr.mxu0 0.0
        %992 = vmatpush1.xpose.msra.mxu0 0.0
        %993 = vmatprep.subr.mxu0 0.0
        %994 = vmatpush1.xpose.msra.mxu0 0.0
        %995 = vmatprep.subr.mxu0 0.0
        %996 = vmatpush1.xpose.msra.mxu0 0.0
        %997 = vmatprep.subr.mxu0 0.0
        %998 = vmatpush1.xpose.msra.mxu0 0.0
        %999 = vmatprep.subr.mxu0 0.0
        %1000 = vmatpush1.xpose.msra.mxu0 0.0
        %1001 = vmatprep.subr.mxu0 0.0
        %1002 = vmatpush1.xpose.msra.mxu0 0.0
        %1003 = vmatprep.subr.mxu0 0.0
        %1004 = vmatpush1.xpose.msra.mxu0 0.0
        %1005 = vmatprep.subr.mxu0 0.0
        %1006 = vmatpush1.xpose.msra.mxu0 0.0
        %1007 = vmatprep.subr.mxu0 0.0
        %1008 = vmatpush1.xpose.msra.mxu0 0.0
        %1009 = vmatprep.subr.mxu0 0.0
        %1010 = vmatpush1.xpose.msra.mxu0 0.0
        %1011 = vmatprep.subr.mxu0 0.0
        %1012 = vmatpush1.xpose.msra.mxu0 0.0
        %1013 = vmatprep.subr.mxu0 0.0
        %1014 = vmatpush1.xpose.msra.mxu0 0.0
        %1015 = vmatprep.subr.mxu0 0.0
        %1016 = vmatpush1.xpose.msra.mxu0 0.0
        %1017 = vmatprep.subr.mxu0 0.0
        %1018 = vmatpush1.xpose.msra.mxu0 0.0
        %1019 = vmatprep.subr.mxu0 0.0
        %1020 = vmatpush1.xpose.msra.mxu0 0.0
        %1021 = vmatprep.subr.mxu0 0.0
        %1022 = vmatpush1.xpose.msra.mxu0 0.0
        %1023 = vmatprep.subr.mxu0 0.0
        %1024 = vmatpush1.xpose.msra.mxu0 0.0
        %1025 = vmatprep.subr.mxu0 0.0
        %1026 = vmatpush1.xpose.msra.mxu0 0.0
        %1027 = vmatprep.subr.mxu0 0.0
        %1028 = vmatpush1.xpose.msra.mxu0 0.0
        %1029 = vmatprep.subr.mxu0 0.0
        %1030 = vmatpush1.xpose.msra.mxu0 0.0
        %1031 = vmatprep.subr.mxu0 0.0
        %1032 = vmatpush1.xpose.msra.mxu0 0.0
        %1033 = vmatprep.subr.mxu0 0.0
        %1034 = vmatpush1.xpose.msra.mxu0 0.0
        %1035 = vmatprep.subr.mxu0 0.0
        %1036 = vmatpush1.xpose.msra.mxu0 0.0
        %1037 = vmatprep.subr.mxu0 0.0
        %1038 = vmatpush1.xpose.msra.mxu0 0.0
        %1039 = vmatprep.subr.mxu0 0.0
        %1040 = vmatpush1.xpose.msra.mxu0 0.0
        %1041 = vmatprep.subr.mxu0 0.0
        %1042 = vmatpush1.xpose.msra.mxu0 0.0
        %1043 = vmatprep.subr.mxu0 0.0
        %1044 = vmatpush1.xpose.msra.mxu0 0.0
        %1045 = vmatprep.subr.mxu0 0.0
        %1046 = vmatpush1.xpose.msra.mxu0 0.0
        %1047 = vmatprep.subr.mxu0 0.0
        %1048 = vmatpush1.xpose.msra.mxu0 0.0
        %1049 = vmatprep.subr.mxu0 0.0
        %1050 = vmatpush1.xpose.msra.mxu0 0.0
        %1051 = vmatprep.mubr.f32.mxu0 0.0
        %1052 = vmatmul.mubr.f32.gmra.mrb[0].mxu0 %v985
        %v1053 = vpop.f32.mrb[0].mxu0
        %v1054 = vadd.f32 %v591, %v1053
        %v1055 = vpop.f32.mrb[0].mxu0
        %1056 = vdwg.mxu0
        %v1057 = vmul.f32 %v1054, 1024.0
        %v1058 = vsub.f32 %v1057, %v979
        %v1059 = vmul.f32 %v1058, %v979
        %vm1060 = vcmp.ne.f32.partialorder %v1059, 0.0
        %v1061 = vsel %vm1060, %v1059, 1.0
        %vm1062 = vcmp.ne.f32.partialorder %v979, 0.0
        %v1063 = vsel %vm1062, %v979, 1.0
        %vm1064 = vcmp.eq.f32.partialorder %v1058, 0.0
        %vm1065 = vmand %vm1064, %vm1062
        %v1066 = vmul.f32 %v976, 2.0
        %v1067 = vrcp.pop %v1063
        %v1068 = vmul.f32 %v1066, %v1067
        %v1069 = vsel %vm1065, %v1068, 1.0
        %v1070 = vrcp.pop %v1061
        %v1071 = vmul.f32 %v983, %v1070
        %v1072 = vsel %vm1060, %v1071, %v1069
        %vm1073 = vcmask 9216
        %v1074 = vsel %vm1073, %v1072, 0.0
        %1075 = vadd.xlane.f32.xlu0 %v1074
        %v1076 = vpop.xlane.xlu0 %1075
        %v1077 = vrot.slane %v1076, 4
        %v1078 = vadd.f32 %v1076, %v1077
        %v1079 = vrot.slane %v1078, 2
        %v1080 = vadd.f32 %v1078, %v1079
        %v1081 = vrot.slane %v1080, 1
        %v1082 = vadd.f32 %v1080, %v1081
        %s1083 = vtos %v1082
        %vm1084 = vcmp.eq.s32.totalorder %v595, 0
        %v1085 = vstv %s1083
        %v1086 = vsel %vm1084, %v1085, 0.0
        %v1087 = vadd.f32 %v1086, 0.0
        %s1088 = scalar_lea.vmem %s237, 64 [#allocation2]
        %v1089 = vld [vmem:[%s1088] sm:$0xff]
        %v1090 = vld [vmem:[%s1088 + $0x8] sm:$0xff]
        %v1091 = vld [vmem:[%s1088 + $0x10] sm:$0xff]
        %v1092 = vld [vmem:[%s1088 + $0x18] sm:$0xff]
        %v1093 = vld [vmem:[%s1088 + $0x20] sm:$0xff]
        %v1094 = vld [vmem:[%s1088 + $0x28] sm:$0xff]
        %v1095 = vld [vmem:[%s1088 + $0x30] sm:$0xff]
        %v1096 = vld [vmem:[%s1088 + $0x38] sm:$0xff]
        %1097 = vmatprep.subr.mxu0 0.0
        %1098 = vmatpush1.msra.mxu0 %v1089
        %1099 = vmatprep.subr.mxu0 0.0
        %1100 = vmatpush1.msra.mxu0 %v1090
        %1101 = vmatprep.subr.mxu0 0.0
        %1102 = vmatpush1.msra.mxu0 %v1091
        %1103 = vmatprep.subr.mxu0 0.0
        %1104 = vmatpush1.msra.mxu0 %v1092
        %1105 = vmatprep.subr.mxu0 0.0
        %1106 = vmatpush1.msra.mxu0 %v1093
        %1107 = vmatprep.subr.mxu0 0.0
        %1108 = vmatpush1.msra.mxu0 %v1094
        %1109 = vmatprep.subr.mxu0 0.0
        %1110 = vmatpush1.msra.mxu0 %v1095
        %1111 = vmatprep.subr.mxu0 0.0
        %1112 = vmatpush1.msra.mxu0 %v1096
        %1113 = vmatprep.subr.mxu0 0.0
        %1114 = vmatpush1.msra.mxu0 0.0
        %1115 = vmatprep.subr.mxu0 0.0
        %1116 = vmatpush1.msra.mxu0 0.0
        %1117 = vmatprep.subr.mxu0 0.0
        %1118 = vmatpush1.msra.mxu0 0.0
        %1119 = vmatprep.subr.mxu0 0.0
        %1120 = vmatpush1.msra.mxu0 0.0
        %1121 = vmatprep.subr.mxu0 0.0
        %1122 = vmatpush1.msra.mxu0 0.0
        %1123 = vmatprep.subr.mxu0 0.0
        %1124 = vmatpush1.msra.mxu0 0.0
        %1125 = vmatprep.subr.mxu0 0.0
        %1126 = vmatpush1.msra.mxu0 0.0
        %1127 = vmatprep.subr.mxu0 0.0
        %1128 = vmatpush1.msra.mxu0 0.0
        %1129 = vmatprep.subr.mxu0 0.0
        %1130 = vmatpush1.msra.mxu0 0.0
        %1131 = vmatprep.subr.mxu0 0.0
        %1132 = vmatpush1.msra.mxu0 0.0
        %1133 = vmatprep.subr.mxu0 0.0
        %1134 = vmatpush1.msra.mxu0 0.0
        %1135 = vmatprep.subr.mxu0 0.0
        %1136 = vmatpush1.msra.mxu0 0.0
        %1137 = vmatprep.subr.mxu0 0.0
        %1138 = vmatpush1.msra.mxu0 0.0
        %1139 = vmatprep.subr.mxu0 0.0
        %1140 = vmatpush1.msra.mxu0 0.0
        %1141 = vmatprep.subr.mxu0 0.0
        %1142 = vmatpush1.msra.mxu0 0.0
        %1143 = vmatprep.subr.mxu0 0.0
        %1144 = vmatpush1.msra.mxu0 0.0
        %1145 = vmatprep.subr.mxu0 0.0
        %1146 = vmatpush1.msra.mxu0 0.0
        %1147 = vmatprep.subr.mxu0 0.0
        %1148 = vmatpush1.msra.mxu0 0.0
        %1149 = vmatprep.subr.mxu0 0.0
        %1150 = vmatpush1.msra.mxu0 0.0
        %1151 = vmatprep.subr.mxu0 0.0
        %1152 = vmatpush1.msra.mxu0 0.0
        %1153 = vmatprep.subr.mxu0 0.0
        %1154 = vmatpush1.msra.mxu0 0.0
        %1155 = vmatprep.subr.mxu0 0.0
        %1156 = vmatpush1.msra.mxu0 0.0
        %1157 = vmatprep.subr.mxu0 0.0
        %1158 = vmatpush1.msra.mxu0 0.0
        %1159 = vmatprep.subr.mxu0 0.0
        %1160 = vmatpush1.msra.mxu0 0.0
        %1161 = vmatprep.mubr.f32.mxu0 0.0
        %1162 = vmatmul.mubr.f32.gmra.mrb[0].mxu0 %v295
        %v1163 = vpop.f32.mrb[0].mxu0
        %v1164 = vadd.f32 0.0, %v1163
        %v1165 = vpop.f32.mrb[0].mxu0
        %1166 = vdwg.mxu0
        %v1168 = vsel %vm293, %v1164, 0
        %1170 = vmatprep.subr.mxu0 0.0
        %1171 = vmatpush1.xpose.msra.mxu0 %v371
        %1172 = vmatprep.subr.mxu0 0.0
        %1173 = vmatpush1.xpose.msra.mxu0 0.0
        %1174 = vmatprep.subr.mxu0 0.0
        %1175 = vmatpush1.xpose.msra.mxu0 0.0
        %1176 = vmatprep.subr.mxu0 0.0
        %1177 = vmatpush1.xpose.msra.mxu0 0.0
        %1178 = vmatprep.subr.mxu0 0.0
        %1179 = vmatpush1.xpose.msra.mxu0 0.0
        %1180 = vmatprep.subr.mxu0 0.0
        %1181 = vmatpush1.xpose.msra.mxu0 0.0
        %1182 = vmatprep.subr.mxu0 0.0
        %1183 = vmatpush1.xpose.msra.mxu0 0.0
        %1184 = vmatprep.subr.mxu0 0.0
        %1185 = vmatpush1.xpose.msra.mxu0 0.0
        %1186 = vmatprep.subr.mxu0 0.0
        %1187 = vmatpush1.xpose.msra.mxu0 0.0
        %1188 = vmatprep.subr.mxu0 0.0
        %1189 = vmatpush1.xpose.msra.mxu0 0.0
        %1190 = vmatprep.subr.mxu0 0.0
        %1191 = vmatpush1.xpose.msra.mxu0 0.0
        %1192 = vmatprep.subr.mxu0 0.0
        %1193 = vmatpush1.xpose.msra.mxu0 0.0
        %1194 = vmatprep.subr.mxu0 0.0
        %1195 = vmatpush1.xpose.msra.mxu0 0.0
        %1196 = vmatprep.subr.mxu0 0.0
        %1197 = vmatpush1.xpose.msra.mxu0 0.0
        %1198 = vmatprep.subr.mxu0 0.0
        %1199 = vmatpush1.xpose.msra.mxu0 0.0
        %1200 = vmatprep.subr.mxu0 0.0
        %1201 = vmatpush1.xpose.msra.mxu0 0.0
        %1202 = vmatprep.subr.mxu0 0.0
        %1203 = vmatpush1.xpose.msra.mxu0 0.0
        %1204 = vmatprep.subr.mxu0 0.0
        %1205 = vmatpush1.xpose.msra.mxu0 0.0
        %1206 = vmatprep.subr.mxu0 0.0
        %1207 = vmatpush1.xpose.msra.mxu0 0.0
        %1208 = vmatprep.subr.mxu0 0.0
        %1209 = vmatpush1.xpose.msra.mxu0 0.0
        %1210 = vmatprep.subr.mxu0 0.0
        %1211 = vmatpush1.xpose.msra.mxu0 0.0
        %1212 = vmatprep.subr.mxu0 0.0
        %1213 = vmatpush1.xpose.msra.mxu0 0.0
        %1214 = vmatprep.subr.mxu0 0.0
        %1215 = vmatpush1.xpose.msra.mxu0 0.0
        %1216 = vmatprep.subr.mxu0 0.0
        %1217 = vmatpush1.xpose.msra.mxu0 0.0
        %1218 = vmatprep.subr.mxu0 0.0
        %1219 = vmatpush1.xpose.msra.mxu0 0.0
        %1220 = vmatprep.subr.mxu0 0.0
        %1221 = vmatpush1.xpose.msra.mxu0 0.0
        %1222 = vmatprep.subr.mxu0 0.0
        %1223 = vmatpush1.xpose.msra.mxu0 0.0
        %1224 = vmatprep.subr.mxu0 0.0
        %1225 = vmatpush1.xpose.msra.mxu0 0.0
        %1226 = vmatprep.subr.mxu0 0.0
        %1227 = vmatpush1.xpose.msra.mxu0 0.0
        %1228 = vmatprep.subr.mxu0 0.0
        %1229 = vmatpush1.xpose.msra.mxu0 0.0
        %1230 = vmatprep.subr.mxu0 0.0
        %1231 = vmatpush1.xpose.msra.mxu0 0.0
        %1232 = vmatprep.subr.mxu0 0.0
        %1233 = vmatpush1.xpose.msra.mxu0 0.0
        %1234 = vmatprep.mubr.f32.mxu0 0.0
        %1235 = vmatmul.mubr.f32.gmra.mrb[0].mxu0 %v1168
        %v1236 = vpop.f32.mrb[0].mxu0
        %v1237 = vadd.f32 0.0, %v1236
        %v1238 = vpop.f32.mrb[0].mxu0
        %1239 = vdwg.mxu0
        %v1240 = vmul.f32 %v1089, %v1089
        %v1241 = vmul.f32 %v1090, %v1090
        %v1242 = vmul.f32 %v1091, %v1091
        %v1243 = vmul.f32 %v1092, %v1092
        %v1244 = vmul.f32 %v1093, %v1093
        %v1245 = vmul.f32 %v1094, %v1094
        %v1246 = vmul.f32 %v1095, %v1095
        %v1247 = vmul.f32 %v1096, %v1096
        %1248 = vmatprep.subr.mxu0 0.0
        %1249 = vmatpush1.msra.mxu0 %v1240
        %1250 = vmatprep.subr.mxu0 0.0
        %1251 = vmatpush1.msra.mxu0 %v1241
        %1252 = vmatprep.subr.mxu0 0.0
        %1253 = vmatpush1.msra.mxu0 %v1242
        %1254 = vmatprep.subr.mxu0 0.0
        %1255 = vmatpush1.msra.mxu0 %v1243
        %1256 = vmatprep.subr.mxu0 0.0
        %1257 = vmatpush1.msra.mxu0 %v1244
        %1258 = vmatprep.subr.mxu0 0.0
        %1259 = vmatpush1.msra.mxu0 %v1245
        %1260 = vmatprep.subr.mxu0 0.0
        %1261 = vmatpush1.msra.mxu0 %v1246
        %1262 = vmatprep.subr.mxu0 0.0
        %1263 = vmatpush1.msra.mxu0 %v1247
        %1264 = vmatprep.subr.mxu0 0.0
        %1265 = vmatpush1.msra.mxu0 0.0
        %1266 = vmatprep.subr.mxu0 0.0
        %1267 = vmatpush1.msra.mxu0 0.0
        %1268 = vmatprep.subr.mxu0 0.0
        %1269 = vmatpush1.msra.mxu0 0.0
        %1270 = vmatprep.subr.mxu0 0.0
        %1271 = vmatpush1.msra.mxu0 0.0
        %1272 = vmatprep.subr.mxu0 0.0
        %1273 = vmatpush1.msra.mxu0 0.0
        %1274 = vmatprep.subr.mxu0 0.0
        %1275 = vmatpush1.msra.mxu0 0.0
        %1276 = vmatprep.subr.mxu0 0.0
        %1277 = vmatpush1.msra.mxu0 0.0
        %1278 = vmatprep.subr.mxu0 0.0
        %1279 = vmatpush1.msra.mxu0 0.0
        %1280 = vmatprep.subr.mxu0 0.0
        %1281 = vmatpush1.msra.mxu0 0.0
        %1282 = vmatprep.subr.mxu0 0.0
        %1283 = vmatpush1.msra.mxu0 0.0
        %1284 = vmatprep.subr.mxu0 0.0
        %1285 = vmatpush1.msra.mxu0 0.0
        %1286 = vmatprep.subr.mxu0 0.0
        %1287 = vmatpush1.msra.mxu0 0.0
        %1288 = vmatprep.subr.mxu0 0.0
        %1289 = vmatpush1.msra.mxu0 0.0
        %1290 = vmatprep.subr.mxu0 0.0
        %1291 = vmatpush1.msra.mxu0 0.0
        %1292 = vmatprep.subr.mxu0 0.0
        %1293 = vmatpush1.msra.mxu0 0.0
        %1294 = vmatprep.subr.mxu0 0.0
        %1295 = vmatpush1.msra.mxu0 0.0
        %1296 = vmatprep.subr.mxu0 0.0
        %1297 = vmatpush1.msra.mxu0 0.0
        %1298 = vmatprep.subr.mxu0 0.0
        %1299 = vmatpush1.msra.mxu0 0.0
        %1300 = vmatprep.subr.mxu0 0.0
        %1301 = vmatpush1.msra.mxu0 0.0
        %1302 = vmatprep.subr.mxu0 0.0
        %1303 = vmatpush1.msra.mxu0 0.0
        %1304 = vmatprep.subr.mxu0 0.0
        %1305 = vmatpush1.msra.mxu0 0.0
        %1306 = vmatprep.subr.mxu0 0.0
        %1307 = vmatpush1.msra.mxu0 0.0
        %1308 = vmatprep.subr.mxu0 0.0
        %1309 = vmatpush1.msra.mxu0 0.0
        %1310 = vmatprep.subr.mxu0 0.0
        %1311 = vmatpush1.msra.mxu0 0.0
        %1312 = vmatprep.mubr.f32.mxu0 0.0
        %1313 = vmatmul.mubr.f32.gmra.mrb[0].mxu0 %v295
        %v1314 = vpop.f32.mrb[0].mxu0
        %v1315 = vadd.f32 0.0, %v1314
        %v1316 = vpop.f32.mrb[0].mxu0
        %1317 = vdwg.mxu0
        %v1318 = vmul.f32 %v1089, %v283
        %v1319 = vmul.f32 %v1090, %v284
        %v1320 = vmul.f32 %v1091, %v285
        %v1321 = vmul.f32 %v1092, %v286
        %v1322 = vmul.f32 %v1093, %v287
        %v1323 = vmul.f32 %v1094, %v288
        %v1324 = vmul.f32 %v1095, %v289
        %v1325 = vmul.f32 %v1096, %v290
        %1326 = vmatprep.subr.mxu0 0.0
        %1327 = vmatpush1.msra.mxu0 %v1318
        %1328 = vmatprep.subr.mxu0 0.0
        %1329 = vmatpush1.msra.mxu0 %v1319
        %1330 = vmatprep.subr.mxu0 0.0
        %1331 = vmatpush1.msra.mxu0 %v1320
        %1332 = vmatprep.subr.mxu0 0.0
        %1333 = vmatpush1.msra.mxu0 %v1321
        %1334 = vmatprep.subr.mxu0 0.0
        %1335 = vmatpush1.msra.mxu0 %v1322
        %1336 = vmatprep.subr.mxu0 0.0
        %1337 = vmatpush1.msra.mxu0 %v1323
        %1338 = vmatprep.subr.mxu0 0.0
        %1339 = vmatpush1.msra.mxu0 %v1324
        %1340 = vmatprep.subr.mxu0 0.0
        %1341 = vmatpush1.msra.mxu0 %v1325
        %1342 = vmatprep.subr.mxu0 0.0
        %1343 = vmatpush1.msra.mxu0 0.0
        %1344 = vmatprep.subr.mxu0 0.0
        %1345 = vmatpush1.msra.mxu0 0.0
        %1346 = vmatprep.subr.mxu0 0.0
        %1347 = vmatpush1.msra.mxu0 0.0
        %1348 = vmatprep.subr.mxu0 0.0
        %1349 = vmatpush1.msra.mxu0 0.0
        %1350 = vmatprep.subr.mxu0 0.0
        %1351 = vmatpush1.msra.mxu0 0.0
        %1352 = vmatprep.subr.mxu0 0.0
        %1353 = vmatpush1.msra.mxu0 0.0
        %1354 = vmatprep.subr.mxu0 0.0
        %1355 = vmatpush1.msra.mxu0 0.0
        %1356 = vmatprep.subr.mxu0 0.0
        %1357 = vmatpush1.msra.mxu0 0.0
        %1358 = vmatprep.subr.mxu0 0.0
        %1359 = vmatpush1.msra.mxu0 0.0
        %1360 = vmatprep.subr.mxu0 0.0
        %1361 = vmatpush1.msra.mxu0 0.0
        %1362 = vmatprep.subr.mxu0 0.0
        %1363 = vmatpush1.msra.mxu0 0.0
        %1364 = vmatprep.subr.mxu0 0.0
        %1365 = vmatpush1.msra.mxu0 0.0
        %1366 = vmatprep.subr.mxu0 0.0
        %1367 = vmatpush1.msra.mxu0 0.0
        %1368 = vmatprep.subr.mxu0 0.0
        %1369 = vmatpush1.msra.mxu0 0.0
        %1370 = vmatprep.subr.mxu0 0.0
        %1371 = vmatpush1.msra.mxu0 0.0
        %1372 = vmatprep.subr.mxu0 0.0
        %1373 = vmatpush1.msra.mxu0 0.0
        %1374 = vmatprep.subr.mxu0 0.0
        %1375 = vmatpush1.msra.mxu0 0.0
        %1376 = vmatprep.subr.mxu0 0.0
        %1377 = vmatpush1.msra.mxu0 0.0
        %1378 = vmatprep.subr.mxu0 0.0
        %1379 = vmatpush1.msra.mxu0 0.0
        %1380 = vmatprep.subr.mxu0 0.0
        %1381 = vmatpush1.msra.mxu0 0.0
        %1382 = vmatprep.subr.mxu0 0.0
        %1383 = vmatpush1.msra.mxu0 0.0
        %1384 = vmatprep.subr.mxu0 0.0
        %1385 = vmatpush1.msra.mxu0 0.0
        %1386 = vmatprep.subr.mxu0 0.0
        %1387 = vmatpush1.msra.mxu0 0.0
        %1388 = vmatprep.subr.mxu0 0.0
        %1389 = vmatpush1.msra.mxu0 0.0
        %1390 = vmatprep.mubr.f32.mxu0 0.0
        %1391 = vmatmul.mubr.f32.gmra.mrb[0].mxu0 %v295
        %v1392 = vpop.f32.mrb[0].mxu0
        %v1393 = vadd.f32 0.0, %v1392
        %v1394 = vpop.f32.mrb[0].mxu0
        %1395 = vdwg.mxu0
        %v1397 = vsel %vm293, %v1393, 0
        %1399 = vmatprep.subr.mxu0 0.0
        %1400 = vmatpush1.xpose.msra.mxu0 %v371
        %1401 = vmatprep.subr.mxu0 0.0
        %1402 = vmatpush1.xpose.msra.mxu0 0.0
        %1403 = vmatprep.subr.mxu0 0.0
        %1404 = vmatpush1.xpose.msra.mxu0 0.0
        %1405 = vmatprep.subr.mxu0 0.0
        %1406 = vmatpush1.xpose.msra.mxu0 0.0
        %1407 = vmatprep.subr.mxu0 0.0
        %1408 = vmatpush1.xpose.msra.mxu0 0.0
        %1409 = vmatprep.subr.mxu0 0.0
        %1410 = vmatpush1.xpose.msra.mxu0 0.0
        %1411 = vmatprep.subr.mxu0 0.0
        %1412 = vmatpush1.xpose.msra.mxu0 0.0
        %1413 = vmatprep.subr.mxu0 0.0
        %1414 = vmatpush1.xpose.msra.mxu0 0.0
        %1415 = vmatprep.subr.mxu0 0.0
        %1416 = vmatpush1.xpose.msra.mxu0 0.0
        %1417 = vmatprep.subr.mxu0 0.0
        %1418 = vmatpush1.xpose.msra.mxu0 0.0
        %1419 = vmatprep.subr.mxu0 0.0
        %1420 = vmatpush1.xpose.msra.mxu0 0.0
        %1421 = vmatprep.subr.mxu0 0.0
        %1422 = vmatpush1.xpose.msra.mxu0 0.0
        %1423 = vmatprep.subr.mxu0 0.0
        %1424 = vmatpush1.xpose.msra.mxu0 0.0
        %1425 = vmatprep.subr.mxu0 0.0
        %1426 = vmatpush1.xpose.msra.mxu0 0.0
        %1427 = vmatprep.subr.mxu0 0.0
        %1428 = vmatpush1.xpose.msra.mxu0 0.0
        %1429 = vmatprep.subr.mxu0 0.0
        %1430 = vmatpush1.xpose.msra.mxu0 0.0
        %1431 = vmatprep.subr.mxu0 0.0
        %1432 = vmatpush1.xpose.msra.mxu0 0.0
        %1433 = vmatprep.subr.mxu0 0.0
        %1434 = vmatpush1.xpose.msra.mxu0 0.0
        %1435 = vmatprep.subr.mxu0 0.0
        %1436 = vmatpush1.xpose.msra.mxu0 0.0
        %1437 = vmatprep.subr.mxu0 0.0
        %1438 = vmatpush1.xpose.msra.mxu0 0.0
        %1439 = vmatprep.subr.mxu0 0.0
        %1440 = vmatpush1.xpose.msra.mxu0 0.0
        %1441 = vmatprep.subr.mxu0 0.0
        %1442 = vmatpush1.xpose.msra.mxu0 0.0
        %1443 = vmatprep.subr.mxu0 0.0
        %1444 = vmatpush1.xpose.msra.mxu0 0.0
        %1445 = vmatprep.subr.mxu0 0.0
        %1446 = vmatpush1.xpose.msra.mxu0 0.0
        %1447 = vmatprep.subr.mxu0 0.0
        %1448 = vmatpush1.xpose.msra.mxu0 0.0
        %1449 = vmatprep.subr.mxu0 0.0
        %1450 = vmatpush1.xpose.msra.mxu0 0.0
        %1451 = vmatprep.subr.mxu0 0.0
        %1452 = vmatpush1.xpose.msra.mxu0 0.0
        %1453 = vmatprep.subr.mxu0 0.0
        %1454 = vmatpush1.xpose.msra.mxu0 0.0
        %1455 = vmatprep.subr.mxu0 0.0
        %1456 = vmatpush1.xpose.msra.mxu0 0.0
        %1457 = vmatprep.subr.mxu0 0.0
        %1458 = vmatpush1.xpose.msra.mxu0 0.0
        %1459 = vmatprep.subr.mxu0 0.0
        %1460 = vmatpush1.xpose.msra.mxu0 0.0
        %1461 = vmatprep.subr.mxu0 0.0
        %1462 = vmatpush1.xpose.msra.mxu0 0.0
        %1463 = vmatprep.mubr.f32.mxu0 0.0
        %1464 = vmatmul.mubr.f32.gmra.mrb[0].mxu0 %v1397
        %v1465 = vpop.f32.mrb[0].mxu0
        %v1466 = vadd.f32 0.0, %v1465
        %v1467 = vpop.f32.mrb[0].mxu0
        %1468 = vdwg.mxu0
        %v1469 = vmul.f32 %v1237, %v440
        %v1470 = vmul.f32 %v1237, %v1237
        %v1471 = vadd.f32 %v1470, %v978
        %v1472 = vmul.f32 %v1466, 1024.0
        %v1473 = vsub.f32 %v1472, %v1469
        %v1474 = vmul.f32 %v1473, 4.0
        %v1475 = vmul.f32 %v1474, %v1469
        %v1477 = vsel %vm293, %v1315, 0
        %1479 = vmatprep.subr.mxu0 0.0
        %1480 = vmatpush1.xpose.msra.mxu0 %v371
        %1481 = vmatprep.subr.mxu0 0.0
        %1482 = vmatpush1.xpose.msra.mxu0 0.0
        %1483 = vmatprep.subr.mxu0 0.0
        %1484 = vmatpush1.xpose.msra.mxu0 0.0
        %1485 = vmatprep.subr.mxu0 0.0
        %1486 = vmatpush1.xpose.msra.mxu0 0.0
        %1487 = vmatprep.subr.mxu0 0.0
        %1488 = vmatpush1.xpose.msra.mxu0 0.0
        %1489 = vmatprep.subr.mxu0 0.0
        %1490 = vmatpush1.xpose.msra.mxu0 0.0
        %1491 = vmatprep.subr.mxu0 0.0
        %1492 = vmatpush1.xpose.msra.mxu0 0.0
        %1493 = vmatprep.subr.mxu0 0.0
        %1494 = vmatpush1.xpose.msra.mxu0 0.0
        %1495 = vmatprep.subr.mxu0 0.0
        %1496 = vmatpush1.xpose.msra.mxu0 0.0
        %1497 = vmatprep.subr.mxu0 0.0
        %1498 = vmatpush1.xpose.msra.mxu0 0.0
        %1499 = vmatprep.subr.mxu0 0.0
        %1500 = vmatpush1.xpose.msra.mxu0 0.0
        %1501 = vmatprep.subr.mxu0 0.0
        %1502 = vmatpush1.xpose.msra.mxu0 0.0
        %1503 = vmatprep.subr.mxu0 0.0
        %1504 = vmatpush1.xpose.msra.mxu0 0.0
        %1505 = vmatprep.subr.mxu0 0.0
        %1506 = vmatpush1.xpose.msra.mxu0 0.0
        %1507 = vmatprep.subr.mxu0 0.0
        %1508 = vmatpush1.xpose.msra.mxu0 0.0
        %1509 = vmatprep.subr.mxu0 0.0
        %1510 = vmatpush1.xpose.msra.mxu0 0.0
        %1511 = vmatprep.subr.mxu0 0.0
        %1512 = vmatpush1.xpose.msra.mxu0 0.0
        %1513 = vmatprep.subr.mxu0 0.0
        %1514 = vmatpush1.xpose.msra.mxu0 0.0
        %1515 = vmatprep.subr.mxu0 0.0
        %1516 = vmatpush1.xpose.msra.mxu0 0.0
        %1517 = vmatprep.subr.mxu0 0.0
        %1518 = vmatpush1.xpose.msra.mxu0 0.0
        %1519 = vmatprep.subr.mxu0 0.0
        %1520 = vmatpush1.xpose.msra.mxu0 0.0
        %1521 = vmatprep.subr.mxu0 0.0
        %1522 = vmatpush1.xpose.msra.mxu0 0.0
        %1523 = vmatprep.subr.mxu0 0.0
        %1524 = vmatpush1.xpose.msra.mxu0 0.0
        %1525 = vmatprep.subr.mxu0 0.0
        %1526 = vmatpush1.xpose.msra.mxu0 0.0
        %1527 = vmatprep.subr.mxu0 0.0
        %1528 = vmatpush1.xpose.msra.mxu0 0.0
        %1529 = vmatprep.subr.mxu0 0.0
        %1530 = vmatpush1.xpose.msra.mxu0 0.0
        %1531 = vmatprep.subr.mxu0 0.0
        %1532 = vmatpush1.xpose.msra.mxu0 0.0
        %1533 = vmatprep.subr.mxu0 0.0
        %1534 = vmatpush1.xpose.msra.mxu0 0.0
        %1535 = vmatprep.subr.mxu0 0.0
        %1536 = vmatpush1.xpose.msra.mxu0 0.0
        %1537 = vmatprep.subr.mxu0 0.0
        %1538 = vmatpush1.xpose.msra.mxu0 0.0
        %1539 = vmatprep.subr.mxu0 0.0
        %1540 = vmatpush1.xpose.msra.mxu0 0.0
        %1541 = vmatprep.subr.mxu0 0.0
        %1542 = vmatpush1.xpose.msra.mxu0 0.0
        %1543 = vmatprep.mubr.f32.mxu0 0.0
        %1544 = vmatmul.mubr.f32.gmra.mrb[0].mxu0 %v1477
        %v1545 = vpop.f32.mrb[0].mxu0
        %v1546 = vadd.f32 %v591, %v1545
        %v1547 = vpop.f32.mrb[0].mxu0
        %1548 = vdwg.mxu0
        %v1549 = vmul.f32 %v1546, 1024.0
        %v1550 = vsub.f32 %v1549, %v1471
        %v1551 = vmul.f32 %v1550, %v1471
        %vm1552 = vcmp.ne.f32.partialorder %v1551, 0.0
        %v1553 = vsel %vm1552, %v1551, 1.0
        %vm1554 = vcmp.ne.f32.partialorder %v1471, 0.0
        %v1555 = vsel %vm1554, %v1471, 1.0
        %vm1556 = vcmp.eq.f32.partialorder %v1550, 0.0
        %vm1557 = vmand %vm1556, %vm1554
        %v1558 = vmul.f32 %v1469, 2.0
        %v1559 = vrcp.pop %v1555
        %v1560 = vmul.f32 %v1558, %v1559
        %v1561 = vsel %vm1557, %v1560, 1.0
        %v1562 = vrcp.pop %v1553
        %v1563 = vmul.f32 %v1475, %v1562
        %v1564 = vsel %vm1552, %v1563, %v1561
        %v1565 = vsel %vm1073, %v1564, 0.0
        %1566 = vadd.xlane.f32.xlu0 %v1565
        %v1567 = vpop.xlane.xlu0 %1566
        %v1568 = vrot.slane %v1567, 4
        %v1569 = vadd.f32 %v1567, %v1568
        %v1570 = vrot.slane %v1569, 2
        %v1571 = vadd.f32 %v1569, %v1570
        %v1572 = vrot.slane %v1571, 1
        %v1573 = vadd.f32 %v1571, %v1572
        %s1574 = vtos %v1573
        %vm1575 = vcmp.eq.s32.totalorder %v595, 1
        %v1576 = vstv %s1574
        %v1577 = vsel %vm1575, %v1576, 0.0
        %v1578 = vadd.f32 %v1087, %v1577
        %s1579 = scalar_lea.vmem %s237, 128 [#allocation2]
        %v1580 = vld [vmem:[%s1579] sm:$0xff]
        %v1581 = vld [vmem:[%s1579 + $0x8] sm:$0xff]
        %v1582 = vld [vmem:[%s1579 + $0x10] sm:$0xff]
        %v1583 = vld [vmem:[%s1579 + $0x18] sm:$0xff]
        %v1584 = vld [vmem:[%s1579 + $0x20] sm:$0xff]
        %v1585 = vld [vmem:[%s1579 + $0x28] sm:$0xff]
        %v1586 = vld [vmem:[%s1579 + $0x30] sm:$0xff]
        %v1587 = vld [vmem:[%s1579 + $0x38] sm:$0xff]
        %1588 = vmatprep.subr.mxu0 0.0
        %1589 = vmatpush1.msra.mxu0 %v1580
        %1590 = vmatprep.subr.mxu0 0.0
        %1591 = vmatpush1.msra.mxu0 %v1581
        %1592 = vmatprep.subr.mxu0 0.0
        %1593 = vmatpush1.msra.mxu0 %v1582
        %1594 = vmatprep.subr.mxu0 0.0
        %1595 = vmatpush1.msra.mxu0 %v1583
        %1596 = vmatprep.subr.mxu0 0.0
        %1597 = vmatpush1.msra.mxu0 %v1584
        %1598 = vmatprep.subr.mxu0 0.0
        %1599 = vmatpush1.msra.mxu0 %v1585
        %1600 = vmatprep.subr.mxu0 0.0
        %1601 = vmatpush1.msra.mxu0 %v1586
        %1602 = vmatprep.subr.mxu0 0.0
        %1603 = vmatpush1.msra.mxu0 %v1587
        %1604 = vmatprep.subr.mxu0 0.0
        %1605 = vmatpush1.msra.mxu0 0.0
        %1606 = vmatprep.subr.mxu0 0.0
        %1607 = vmatpush1.msra.mxu0 0.0
        %1608 = vmatprep.subr.mxu0 0.0
        %1609 = vmatpush1.msra.mxu0 0.0
        %1610 = vmatprep.subr.mxu0 0.0
        %1611 = vmatpush1.msra.mxu0 0.0
        %1612 = vmatprep.subr.mxu0 0.0
        %1613 = vmatpush1.msra.mxu0 0.0
        %1614 = vmatprep.subr.mxu0 0.0
        %1615 = vmatpush1.msra.mxu0 0.0
        %1616 = vmatprep.subr.mxu0 0.0
        %1617 = vmatpush1.msra.mxu0 0.0
        %1618 = vmatprep.subr.mxu0 0.0
        %1619 = vmatpush1.msra.mxu0 0.0
        %1620 = vmatprep.subr.mxu0 0.0
        %1621 = vmatpush1.msra.mxu0 0.0
        %1622 = vmatprep.subr.mxu0 0.0
        %1623 = vmatpush1.msra.mxu0 0.0
        %1624 = vmatprep.subr.mxu0 0.0
        %1625 = vmatpush1.msra.mxu0 0.0
        %1626 = vmatprep.subr.mxu0 0.0
        %1627 = vmatpush1.msra.mxu0 0.0
        %1628 = vmatprep.subr.mxu0 0.0
        %1629 = vmatpush1.msra.mxu0 0.0
        %1630 = vmatprep.subr.mxu0 0.0
        %1631 = vmatpush1.msra.mxu0 0.0
        %1632 = vmatprep.subr.mxu0 0.0
        %1633 = vmatpush1.msra.mxu0 0.0
        %1634 = vmatprep.subr.mxu0 0.0
        %1635 = vmatpush1.msra.mxu0 0.0
        %1636 = vmatprep.subr.mxu0 0.0
        %1637 = vmatpush1.msra.mxu0 0.0
        %1638 = vmatprep.subr.mxu0 0.0
        %1639 = vmatpush1.msra.mxu0 0.0
        %1640 = vmatprep.subr.mxu0 0.0
        %1641 = vmatpush1.msra.mxu0 0.0
        %1642 = vmatprep.subr.mxu0 0.0
        %1643 = vmatpush1.msra.mxu0 0.0
        %1644 = vmatprep.subr.mxu0 0.0
        %1645 = vmatpush1.msra.mxu0 0.0
        %1646 = vmatprep.subr.mxu0 0.0
        %1647 = vmatpush1.msra.mxu0 0.0
        %1648 = vmatprep.subr.mxu0 0.0
        %1649 = vmatpush1.msra.mxu0 0.0
        %1650 = vmatprep.subr.mxu0 0.0
        %1651 = vmatpush1.msra.mxu0 0.0
        %1652 = vmatprep.mubr.f32.mxu0 0.0
        %1653 = vmatmul.mubr.f32.gmra.mrb[0].mxu0 %v295
        %v1654 = vpop.f32.mrb[0].mxu0
        %v1655 = vadd.f32 0.0, %v1654
        %v1656 = vpop.f32.mrb[0].mxu0
        %1657 = vdwg.mxu0
        %v1659 = vsel %vm293, %v1655, 0
        %1661 = vmatprep.subr.mxu0 0.0
        %1662 = vmatpush1.xpose.msra.mxu0 %v371
        %1663 = vmatprep.subr.mxu0 0.0
        %1664 = vmatpush1.xpose.msra.mxu0 0.0
        %1665 = vmatprep.subr.mxu0 0.0
        %1666 = vmatpush1.xpose.msra.mxu0 0.0
        %1667 = vmatprep.subr.mxu0 0.0
        %1668 = vmatpush1.xpose.msra.mxu0 0.0
        %1669 = vmatprep.subr.mxu0 0.0
        %1670 = vmatpush1.xpose.msra.mxu0 0.0
        %1671 = vmatprep.subr.mxu0 0.0
        %1672 = vmatpush1.xpose.msra.mxu0 0.0
        %1673 = vmatprep.subr.mxu0 0.0
        %1674 = vmatpush1.xpose.msra.mxu0 0.0
        %1675 = vmatprep.subr.mxu0 0.0
        %1676 = vmatpush1.xpose.msra.mxu0 0.0
        %1677 = vmatprep.subr.mxu0 0.0
        %1678 = vmatpush1.xpose.msra.mxu0 0.0
        %1679 = vmatprep.subr.mxu0 0.0
        %1680 = vmatpush1.xpose.msra.mxu0 0.0
        %1681 = vmatprep.subr.mxu0 0.0
        %1682 = vmatpush1.xpose.msra.mxu0 0.0
        %1683 = vmatprep.subr.mxu0 0.0
        %1684 = vmatpush1.xpose.msra.mxu0 0.0
        %1685 = vmatprep.subr.mxu0 0.0
        %1686 = vmatpush1.xpose.msra.mxu0 0.0
        %1687 = vmatprep.subr.mxu0 0.0
        %1688 = vmatpush1.xpose.msra.mxu0 0.0
        %1689 = vmatprep.subr.mxu0 0.0
        %1690 = vmatpush1.xpose.msra.mxu0 0.0
        %1691 = vmatprep.subr.mxu0 0.0
        %1692 = vmatpush1.xpose.msra.mxu0 0.0
        %1693 = vmatprep.subr.mxu0 0.0
        %1694 = vmatpush1.xpose.msra.mxu0 0.0
        %1695 = vmatprep.subr.mxu0 0.0
        %1696 = vmatpush1.xpose.msra.mxu0 0.0
        %1697 = vmatprep.subr.mxu0 0.0
        %1698 = vmatpush1.xpose.msra.mxu0 0.0
        %1699 = vmatprep.subr.mxu0 0.0
        %1700 = vmatpush1.xpose.msra.mxu0 0.0
        %1701 = vmatprep.subr.mxu0 0.0
        %1702 = vmatpush1.xpose.msra.mxu0 0.0
        %1703 = vmatprep.subr.mxu0 0.0
        %1704 = vmatpush1.xpose.msra.mxu0 0.0
        %1705 = vmatprep.subr.mxu0 0.0
        %1706 = vmatpush1.xpose.msra.mxu0 0.0
        %1707 = vmatprep.subr.mxu0 0.0
        %1708 = vmatpush1.xpose.msra.mxu0 0.0
        %1709 = vmatprep.subr.mxu0 0.0
        %1710 = vmatpush1.xpose.msra.mxu0 0.0
        %1711 = vmatprep.subr.mxu0 0.0
        %1712 = vmatpush1.xpose.msra.mxu0 0.0
        %1713 = vmatprep.subr.mxu0 0.0
        %1714 = vmatpush1.xpose.msra.mxu0 0.0
        %1715 = vmatprep.subr.mxu0 0.0
        %1716 = vmatpush1.xpose.msra.mxu0 0.0
        %1717 = vmatprep.subr.mxu0 0.0
        %1718 = vmatpush1.xpose.msra.mxu0 0.0
        %1719 = vmatprep.subr.mxu0 0.0
        %1720 = vmatpush1.xpose.msra.mxu0 0.0
        %1721 = vmatprep.subr.mxu0 0.0
        %1722 = vmatpush1.xpose.msra.mxu0 0.0
        %1723 = vmatprep.subr.mxu0 0.0
        %1724 = vmatpush1.xpose.msra.mxu0 0.0
        %1725 = vmatprep.mubr.f32.mxu0 0.0
        %1726 = vmatmul.mubr.f32.gmra.mrb[0].mxu0 %v1659
        %v1727 = vpop.f32.mrb[0].mxu0
        %v1728 = vadd.f32 0.0, %v1727
        %v1729 = vpop.f32.mrb[0].mxu0
        %1730 = vdwg.mxu0
        %v1731 = vmul.f32 %v1580, %v1580
        %v1732 = vmul.f32 %v1581, %v1581
        %v1733 = vmul.f32 %v1582, %v1582
        %v1734 = vmul.f32 %v1583, %v1583
        %v1735 = vmul.f32 %v1584, %v1584
        %v1736 = vmul.f32 %v1585, %v1585
        %v1737 = vmul.f32 %v1586, %v1586
        %v1738 = vmul.f32 %v1587, %v1587
        %1739 = vmatprep.subr.mxu0 0.0
        %1740 = vmatpush1.msra.mxu0 %v1731
        %1741 = vmatprep.subr.mxu0 0.0
        %1742 = vmatpush1.msra.mxu0 %v1732
        %1743 = vmatprep.subr.mxu0 0.0
        %1744 = vmatpush1.msra.mxu0 %v1733
        %1745 = vmatprep.subr.mxu0 0.0
        %1746 = vmatpush1.msra.mxu0 %v1734
        %1747 = vmatprep.subr.mxu0 0.0
        %1748 = vmatpush1.msra.mxu0 %v1735
        %1749 = vmatprep.subr.mxu0 0.0
        %1750 = vmatpush1.msra.mxu0 %v1736
        %1751 = vmatprep.subr.mxu0 0.0
        %1752 = vmatpush1.msra.mxu0 %v1737
        %1753 = vmatprep.subr.mxu0 0.0
        %1754 = vmatpush1.msra.mxu0 %v1738
        %1755 = vmatprep.subr.mxu0 0.0
        %1756 = vmatpush1.msra.mxu0 0.0
        %1757 = vmatprep.subr.mxu0 0.0
        %1758 = vmatpush1.msra.mxu0 0.0
        %1759 = vmatprep.subr.mxu0 0.0
        %1760 = vmatpush1.msra.mxu0 0.0
        %1761 = vmatprep.subr.mxu0 0.0
        %1762 = vmatpush1.msra.mxu0 0.0
        %1763 = vmatprep.subr.mxu0 0.0
        %1764 = vmatpush1.msra.mxu0 0.0
        %1765 = vmatprep.subr.mxu0 0.0
        %1766 = vmatpush1.msra.mxu0 0.0
        %1767 = vmatprep.subr.mxu0 0.0
        %1768 = vmatpush1.msra.mxu0 0.0
        %1769 = vmatprep.subr.mxu0 0.0
        %1770 = vmatpush1.msra.mxu0 0.0
        %1771 = vmatprep.subr.mxu0 0.0
        %1772 = vmatpush1.msra.mxu0 0.0
        %1773 = vmatprep.subr.mxu0 0.0
        %1774 = vmatpush1.msra.mxu0 0.0
        %1775 = vmatprep.subr.mxu0 0.0
        %1776 = vmatpush1.msra.mxu0 0.0
        %1777 = vmatprep.subr.mxu0 0.0
        %1778 = vmatpush1.msra.mxu0 0.0
        %1779 = vmatprep.subr.mxu0 0.0
        %1780 = vmatpush1.msra.mxu0 0.0
        %1781 = vmatprep.subr.mxu0 0.0
        %1782 = vmatpush1.msra.mxu0 0.0
        %1783 = vmatprep.subr.mxu0 0.0
        %1784 = vmatpush1.msra.mxu0 0.0
        %1785 = vmatprep.subr.mxu0 0.0
        %1786 = vmatpush1.msra.mxu0 0.0
        %1787 = vmatprep.subr.mxu0 0.0
        %1788 = vmatpush1.msra.mxu0 0.0
        %1789 = vmatprep.subr.mxu0 0.0
        %1790 = vmatpush1.msra.mxu0 0.0
        %1791 = vmatprep.subr.mxu0 0.0
        %1792 = vmatpush1.msra.mxu0 0.0
        %1793 = vmatprep.subr.mxu0 0.0
        %1794 = vmatpush1.msra.mxu0 0.0
        %1795 = vmatprep.subr.mxu0 0.0
        %1796 = vmatpush1.msra.mxu0 0.0
        %1797 = vmatprep.subr.mxu0 0.0
        %1798 = vmatpush1.msra.mxu0 0.0
        %1799 = vmatprep.subr.mxu0 0.0
        %1800 = vmatpush1.msra.mxu0 0.0
        %1801 = vmatprep.subr.mxu0 0.0
        %1802 = vmatpush1.msra.mxu0 0.0
        %1803 = vmatprep.mubr.f32.mxu0 0.0
        %1804 = vmatmul.mubr.f32.gmra.mrb[0].mxu0 %v295
        %v1805 = vpop.f32.mrb[0].mxu0
        %v1806 = vadd.f32 0.0, %v1805
        %v1807 = vpop.f32.mrb[0].mxu0
        %1808 = vdwg.mxu0
        %v1809 = vmul.f32 %v1580, %v283
        %v1810 = vmul.f32 %v1581, %v284
        %v1811 = vmul.f32 %v1582, %v285
        %v1812 = vmul.f32 %v1583, %v286
        %v1813 = vmul.f32 %v1584, %v287
        %v1814 = vmul.f32 %v1585, %v288
        %v1815 = vmul.f32 %v1586, %v289
        %v1816 = vmul.f32 %v1587, %v290
        %1817 = vmatprep.subr.mxu0 0.0
        %1818 = vmatpush1.msra.mxu0 %v1809
        %1819 = vmatprep.subr.mxu0 0.0
        %1820 = vmatpush1.msra.mxu0 %v1810
        %1821 = vmatprep.subr.mxu0 0.0
        %1822 = vmatpush1.msra.mxu0 %v1811
        %1823 = vmatprep.subr.mxu0 0.0
        %1824 = vmatpush1.msra.mxu0 %v1812
        %1825 = vmatprep.subr.mxu0 0.0
        %1826 = vmatpush1.msra.mxu0 %v1813
        %1827 = vmatprep.subr.mxu0 0.0
        %1828 = vmatpush1.msra.mxu0 %v1814
        %1829 = vmatprep.subr.mxu0 0.0
        %1830 = vmatpush1.msra.mxu0 %v1815
        %1831 = vmatprep.subr.mxu0 0.0
        %1832 = vmatpush1.msra.mxu0 %v1816
        %1833 = vmatprep.subr.mxu0 0.0
        %1834 = vmatpush1.msra.mxu0 0.0
        %1835 = vmatprep.subr.mxu0 0.0
        %1836 = vmatpush1.msra.mxu0 0.0
        %1837 = vmatprep.subr.mxu0 0.0
        %1838 = vmatpush1.msra.mxu0 0.0
        %1839 = vmatprep.subr.mxu0 0.0
        %1840 = vmatpush1.msra.mxu0 0.0
        %1841 = vmatprep.subr.mxu0 0.0
        %1842 = vmatpush1.msra.mxu0 0.0
        %1843 = vmatprep.subr.mxu0 0.0
        %1844 = vmatpush1.msra.mxu0 0.0
        %1845 = vmatprep.subr.mxu0 0.0
        %1846 = vmatpush1.msra.mxu0 0.0
        %1847 = vmatprep.subr.mxu0 0.0
        %1848 = vmatpush1.msra.mxu0 0.0
        %1849 = vmatprep.subr.mxu0 0.0
        %1850 = vmatpush1.msra.mxu0 0.0
        %1851 = vmatprep.subr.mxu0 0.0
        %1852 = vmatpush1.msra.mxu0 0.0
        %1853 = vmatprep.subr.mxu0 0.0
        %1854 = vmatpush1.msra.mxu0 0.0
        %1855 = vmatprep.subr.mxu0 0.0
        %1856 = vmatpush1.msra.mxu0 0.0
        %1857 = vmatprep.subr.mxu0 0.0
        %1858 = vmatpush1.msra.mxu0 0.0
        %1859 = vmatprep.subr.mxu0 0.0
        %1860 = vmatpush1.msra.mxu0 0.0
        %1861 = vmatprep.subr.mxu0 0.0
        %1862 = vmatpush1.msra.mxu0 0.0
        %1863 = vmatprep.subr.mxu0 0.0
        %1864 = vmatpush1.msra.mxu0 0.0
        %1865 = vmatprep.subr.mxu0 0.0
        %1866 = vmatpush1.msra.mxu0 0.0
        %1867 = vmatprep.subr.mxu0 0.0
        %1868 = vmatpush1.msra.mxu0 0.0
        %1869 = vmatprep.subr.mxu0 0.0
        %1870 = vmatpush1.msra.mxu0 0.0
        %1871 = vmatprep.subr.mxu0 0.0
        %1872 = vmatpush1.msra.mxu0 0.0
        %1873 = vmatprep.subr.mxu0 0.0
        %1874 = vmatpush1.msra.mxu0 0.0
        %1875 = vmatprep.subr.mxu0 0.0
        %1876 = vmatpush1.msra.mxu0 0.0
        %1877 = vmatprep.subr.mxu0 0.0
        %1878 = vmatpush1.msra.mxu0 0.0
        %1879 = vmatprep.subr.mxu0 0.0
        %1880 = vmatpush1.msra.mxu0 0.0
        %1881 = vmatprep.mubr.f32.mxu0 0.0
        %1882 = vmatmul.mubr.f32.gmra.mrb[0].mxu0 %v295
        %v1883 = vpop.f32.mrb[0].mxu0
        %v1884 = vadd.f32 0.0, %v1883
        %v1885 = vpop.f32.mrb[0].mxu0
        %1886 = vdwg.mxu0
        %v1888 = vsel %vm293, %v1884, 0
        %1890 = vmatprep.subr.mxu0 0.0
        %1891 = vmatpush1.xpose.msra.mxu0 %v371
        %1892 = vmatprep.subr.mxu0 0.0
        %1893 = vmatpush1.xpose.msra.mxu0 0.0
        %1894 = vmatprep.subr.mxu0 0.0
        %1895 = vmatpush1.xpose.msra.mxu0 0.0
        %1896 = vmatprep.subr.mxu0 0.0
        %1897 = vmatpush1.xpose.msra.mxu0 0.0
        %1898 = vmatprep.subr.mxu0 0.0
        %1899 = vmatpush1.xpose.msra.mxu0 0.0
        %1900 = vmatprep.subr.mxu0 0.0
        %1901 = vmatpush1.xpose.msra.mxu0 0.0
        %1902 = vmatprep.subr.mxu0 0.0
        %1903 = vmatpush1.xpose.msra.mxu0 0.0
        %1904 = vmatprep.subr.mxu0 0.0
        %1905 = vmatpush1.xpose.msra.mxu0 0.0
        %1906 = vmatprep.subr.mxu0 0.0
        %1907 = vmatpush1.xpose.msra.mxu0 0.0
        %1908 = vmatprep.subr.mxu0 0.0
        %1909 = vmatpush1.xpose.msra.mxu0 0.0
        %1910 = vmatprep.subr.mxu0 0.0
        %1911 = vmatpush1.xpose.msra.mxu0 0.0
        %1912 = vmatprep.subr.mxu0 0.0
        %1913 = vmatpush1.xpose.msra.mxu0 0.0
        %1914 = vmatprep.subr.mxu0 0.0
        %1915 = vmatpush1.xpose.msra.mxu0 0.0
        %1916 = vmatprep.subr.mxu0 0.0
        %1917 = vmatpush1.xpose.msra.mxu0 0.0
        %1918 = vmatprep.subr.mxu0 0.0
        %1919 = vmatpush1.xpose.msra.mxu0 0.0
        %1920 = vmatprep.subr.mxu0 0.0
        %1921 = vmatpush1.xpose.msra.mxu0 0.0
        %1922 = vmatprep.subr.mxu0 0.0
        %1923 = vmatpush1.xpose.msra.mxu0 0.0
        %1924 = vmatprep.subr.mxu0 0.0
        %1925 = vmatpush1.xpose.msra.mxu0 0.0
        %1926 = vmatprep.subr.mxu0 0.0
        %1927 = vmatpush1.xpose.msra.mxu0 0.0
        %1928 = vmatprep.subr.mxu0 0.0
        %1929 = vmatpush1.xpose.msra.mxu0 0.0
        %1930 = vmatprep.subr.mxu0 0.0
        %1931 = vmatpush1.xpose.msra.mxu0 0.0
        %1932 = vmatprep.subr.mxu0 0.0
        %1933 = vmatpush1.xpose.msra.mxu0 0.0
        %1934 = vmatprep.subr.mxu0 0.0
        %1935 = vmatpush1.xpose.msra.mxu0 0.0
        %1936 = vmatprep.subr.mxu0 0.0
        %1937 = vmatpush1.xpose.msra.mxu0 0.0
        %1938 = vmatprep.subr.mxu0 0.0
        %1939 = vmatpush1.xpose.msra.mxu0 0.0
        %1940 = vmatprep.subr.mxu0 0.0
        %1941 = vmatpush1.xpose.msra.mxu0 0.0
        %1942 = vmatprep.subr.mxu0 0.0
        %1943 = vmatpush1.xpose.msra.mxu0 0.0
        %1944 = vmatprep.subr.mxu0 0.0
        %1945 = vmatpush1.xpose.msra.mxu0 0.0
        %1946 = vmatprep.subr.mxu0 0.0
        %1947 = vmatpush1.xpose.msra.mxu0 0.0
        %1948 = vmatprep.subr.mxu0 0.0
        %1949 = vmatpush1.xpose.msra.mxu0 0.0
        %1950 = vmatprep.subr.mxu0 0.0
        %1951 = vmatpush1.xpose.msra.mxu0 0.0
        %1952 = vmatprep.subr.mxu0 0.0
        %1953 = vmatpush1.xpose.msra.mxu0 0.0
        %1954 = vmatprep.mubr.f32.mxu0 0.0
        %1955 = vmatmul.mubr.f32.gmra.mrb[0].mxu0 %v1888
        %v1956 = vpop.f32.mrb[0].mxu0
        %v1957 = vadd.f32 0.0, %v1956
        %v1958 = vpop.f32.mrb[0].mxu0
        %1959 = vdwg.mxu0
        %v1960 = vmul.f32 %v1728, %v440
        %v1961 = vmul.f32 %v1728, %v1728
        %v1962 = vadd.f32 %v1961, %v978
        %v1963 = vmul.f32 %v1957, 1024.0
        %v1964 = vsub.f32 %v1963, %v1960
        %v1965 = vmul.f32 %v1964, 4.0
        %v1966 = vmul.f32 %v1965, %v1960
        %v1968 = vsel %vm293, %v1806, 0
        %1970 = vmatprep.subr.mxu0 0.0
        %1971 = vmatpush1.xpose.msra.mxu0 %v371
        %1972 = vmatprep.subr.mxu0 0.0
        %1973 = vmatpush1.xpose.msra.mxu0 0.0
        %1974 = vmatprep.subr.mxu0 0.0
        %1975 = vmatpush1.xpose.msra.mxu0 0.0
        %1976 = vmatprep.subr.mxu0 0.0
        %1977 = vmatpush1.xpose.msra.mxu0 0.0
        %1978 = vmatprep.subr.mxu0 0.0
        %1979 = vmatpush1.xpose.msra.mxu0 0.0
        %1980 = vmatprep.subr.mxu0 0.0
        %1981 = vmatpush1.xpose.msra.mxu0 0.0
        %1982 = vmatprep.subr.mxu0 0.0
        %1983 = vmatpush1.xpose.msra.mxu0 0.0
        %1984 = vmatprep.subr.mxu0 0.0
        %1985 = vmatpush1.xpose.msra.mxu0 0.0
        %1986 = vmatprep.subr.mxu0 0.0
        %1987 = vmatpush1.xpose.msra.mxu0 0.0
        %1988 = vmatprep.subr.mxu0 0.0
        %1989 = vmatpush1.xpose.msra.mxu0 0.0
        %1990 = vmatprep.subr.mxu0 0.0
        %1991 = vmatpush1.xpose.msra.mxu0 0.0
        %1992 = vmatprep.subr.mxu0 0.0
        %1993 = vmatpush1.xpose.msra.mxu0 0.0
        %1994 = vmatprep.subr.mxu0 0.0
        %1995 = vmatpush1.xpose.msra.mxu0 0.0
        %1996 = vmatprep.subr.mxu0 0.0
        %1997 = vmatpush1.xpose.msra.mxu0 0.0
        %1998 = vmatprep.subr.mxu0 0.0
        %1999 = vmatpush1.xpose.msra.mxu0 0.0
        %2000 = vmatprep.subr.mxu0 0.0
        %2001 = vmatpush1.xpose.msra.mxu0 0.0
        %2002 = vmatprep.subr.mxu0 0.0
        %2003 = vmatpush1.xpose.msra.mxu0 0.0
        %2004 = vmatprep.subr.mxu0 0.0
        %2005 = vmatpush1.xpose.msra.mxu0 0.0
        %2006 = vmatprep.subr.mxu0 0.0
        %2007 = vmatpush1.xpose.msra.mxu0 0.0
        %2008 = vmatprep.subr.mxu0 0.0
        %2009 = vmatpush1.xpose.msra.mxu0 0.0
        %2010 = vmatprep.subr.mxu0 0.0
        %2011 = vmatpush1.xpose.msra.mxu0 0.0
        %2012 = vmatprep.subr.mxu0 0.0
        %2013 = vmatpush1.xpose.msra.mxu0 0.0
        %2014 = vmatprep.subr.mxu0 0.0
        %2015 = vmatpush1.xpose.msra.mxu0 0.0
        %2016 = vmatprep.subr.mxu0 0.0
        %2017 = vmatpush1.xpose.msra.mxu0 0.0
        %2018 = vmatprep.subr.mxu0 0.0
        %2019 = vmatpush1.xpose.msra.mxu0 0.0
        %2020 = vmatprep.subr.mxu0 0.0
        %2021 = vmatpush1.xpose.msra.mxu0 0.0
        %2022 = vmatprep.subr.mxu0 0.0
        %2023 = vmatpush1.xpose.msra.mxu0 0.0
        %2024 = vmatprep.subr.mxu0 0.0
        %2025 = vmatpush1.xpose.msra.mxu0 0.0
        %2026 = vmatprep.subr.mxu0 0.0
        %2027 = vmatpush1.xpose.msra.mxu0 0.0
        %2028 = vmatprep.subr.mxu0 0.0
        %2029 = vmatpush1.xpose.msra.mxu0 0.0
        %2030 = vmatprep.subr.mxu0 0.0
        %2031 = vmatpush1.xpose.msra.mxu0 0.0
        %2032 = vmatprep.subr.mxu0 0.0
        %2033 = vmatpush1.xpose.msra.mxu0 0.0
        %2034 = vmatprep.mubr.f32.mxu0 0.0
        %2035 = vmatmul.mubr.f32.gmra.mrb[0].mxu0 %v1968
        %v2036 = vpop.f32.mrb[0].mxu0
        %v2037 = vadd.f32 %v591, %v2036
        %v2038 = vpop.f32.mrb[0].mxu0
        %2039 = vdwg.mxu0
        %v2040 = vmul.f32 %v2037, 1024.0
        %v2041 = vsub.f32 %v2040, %v1962
        %v2042 = vmul.f32 %v2041, %v1962
        %vm2043 = vcmp.ne.f32.partialorder %v2042, 0.0
        %v2044 = vsel %vm2043, %v2042, 1.0
        %vm2045 = vcmp.ne.f32.partialorder %v1962, 0.0
        %v2046 = vsel %vm2045, %v1962, 1.0
        %vm2047 = vcmp.eq.f32.partialorder %v2041, 0.0
        %vm2048 = vmand %vm2047, %vm2045
        %v2049 = vmul.f32 %v1960, 2.0
        %v2050 = vrcp.pop %v2046
        %v2051 = vmul.f32 %v2049, %v2050
        %v2052 = vsel %vm2048, %v2051, 1.0
        %v2053 = vrcp.pop %v2044
        %v2054 = vmul.f32 %v1966, %v2053
        %v2055 = vsel %vm2043, %v2054, %v2052
        %v2056 = vsel %vm1073, %v2055, 0.0
        %2057 = vadd.xlane.f32.xlu0 %v2056
        %v2058 = vpop.xlane.xlu0 %2057
        %v2059 = vrot.slane %v2058, 4
        %v2060 = vadd.f32 %v2058, %v2059
        %v2061 = vrot.slane %v2060, 2
        %v2062 = vadd.f32 %v2060, %v2061
        %v2063 = vrot.slane %v2062, 1
        %v2064 = vadd.f32 %v2062, %v2063
        %s2065 = vtos %v2064
        %vm2066 = vcmp.eq.s32.totalorder %v595, 2
        %v2067 = vstv %s2065
        %v2068 = vsel %vm2066, %v2067, 0.0
        %v2069 = vadd.f32 %v1578, %v2068
        %s2070 = scalar_lea.vmem %s237, 192 [#allocation2]
        %v2071 = vld [vmem:[%s2070] sm:$0xff]
        %v2072 = vld [vmem:[%s2070 + $0x8] sm:$0xff]
        %v2073 = vld [vmem:[%s2070 + $0x10] sm:$0xff]
        %v2074 = vld [vmem:[%s2070 + $0x18] sm:$0xff]
        %v2075 = vld [vmem:[%s2070 + $0x20] sm:$0xff]
        %v2076 = vld [vmem:[%s2070 + $0x28] sm:$0xff]
        %v2077 = vld [vmem:[%s2070 + $0x30] sm:$0xff]
        %v2078 = vld [vmem:[%s2070 + $0x38] sm:$0xff]
        %2079 = vmatprep.subr.mxu0 0.0
        %2080 = vmatpush1.msra.mxu0 %v2071
        %2081 = vmatprep.subr.mxu0 0.0
        %2082 = vmatpush1.msra.mxu0 %v2072
        %2083 = vmatprep.subr.mxu0 0.0
        %2084 = vmatpush1.msra.mxu0 %v2073
        %2085 = vmatprep.subr.mxu0 0.0
        %2086 = vmatpush1.msra.mxu0 %v2074
        %2087 = vmatprep.subr.mxu0 0.0
        %2088 = vmatpush1.msra.mxu0 %v2075
        %2089 = vmatprep.subr.mxu0 0.0
        %2090 = vmatpush1.msra.mxu0 %v2076
        %2091 = vmatprep.subr.mxu0 0.0
        %2092 = vmatpush1.msra.mxu0 %v2077
        %2093 = vmatprep.subr.mxu0 0.0
        %2094 = vmatpush1.msra.mxu0 %v2078
        %2095 = vmatprep.subr.mxu0 0.0
        %2096 = vmatpush1.msra.mxu0 0.0
        %2097 = vmatprep.subr.mxu0 0.0
        %2098 = vmatpush1.msra.mxu0 0.0
        %2099 = vmatprep.subr.mxu0 0.0
        %2100 = vmatpush1.msra.mxu0 0.0
        %2101 = vmatprep.subr.mxu0 0.0
        %2102 = vmatpush1.msra.mxu0 0.0
        %2103 = vmatprep.subr.mxu0 0.0
        %2104 = vmatpush1.msra.mxu0 0.0
        %2105 = vmatprep.subr.mxu0 0.0
        %2106 = vmatpush1.msra.mxu0 0.0
        %2107 = vmatprep.subr.mxu0 0.0
        %2108 = vmatpush1.msra.mxu0 0.0
        %2109 = vmatprep.subr.mxu0 0.0
        %2110 = vmatpush1.msra.mxu0 0.0
        %2111 = vmatprep.subr.mxu0 0.0
        %2112 = vmatpush1.msra.mxu0 0.0
        %2113 = vmatprep.subr.mxu0 0.0
        %2114 = vmatpush1.msra.mxu0 0.0
        %2115 = vmatprep.subr.mxu0 0.0
        %2116 = vmatpush1.msra.mxu0 0.0
        %2117 = vmatprep.subr.mxu0 0.0
        %2118 = vmatpush1.msra.mxu0 0.0
        %2119 = vmatprep.subr.mxu0 0.0
        %2120 = vmatpush1.msra.mxu0 0.0
        %2121 = vmatprep.subr.mxu0 0.0
        %2122 = vmatpush1.msra.mxu0 0.0
        %2123 = vmatprep.subr.mxu0 0.0
        %2124 = vmatpush1.msra.mxu0 0.0
        %2125 = vmatprep.subr.mxu0 0.0
        %2126 = vmatpush1.msra.mxu0 0.0
        %2127 = vmatprep.subr.mxu0 0.0
        %2128 = vmatpush1.msra.mxu0 0.0
        %2129 = vmatprep.subr.mxu0 0.0
        %2130 = vmatpush1.msra.mxu0 0.0
        %2131 = vmatprep.subr.mxu0 0.0
        %2132 = vmatpush1.msra.mxu0 0.0
        %2133 = vmatprep.subr.mxu0 0.0
        %2134 = vmatpush1.msra.mxu0 0.0
        %2135 = vmatprep.subr.mxu0 0.0
        %2136 = vmatpush1.msra.mxu0 0.0
        %2137 = vmatprep.subr.mxu0 0.0
        %2138 = vmatpush1.msra.mxu0 0.0
        %2139 = vmatprep.subr.mxu0 0.0
        %2140 = vmatpush1.msra.mxu0 0.0
        %2141 = vmatprep.subr.mxu0 0.0
        %2142 = vmatpush1.msra.mxu0 0.0
        %2143 = vmatprep.mubr.f32.mxu0 0.0
        %2144 = vmatmul.mubr.f32.gmra.mrb[0].mxu0 %v295
        %v2145 = vpop.f32.mrb[0].mxu0
        %v2146 = vadd.f32 0.0, %v2145
        %v2147 = vpop.f32.mrb[0].mxu0
        %2148 = vdwg.mxu0
        %v2150 = vsel %vm293, %v2146, 0
        %2152 = vmatprep.subr.mxu0 0.0
        %2153 = vmatpush1.xpose.msra.mxu0 %v371
        %2154 = vmatprep.subr.mxu0 0.0
        %2155 = vmatpush1.xpose.msra.mxu0 0.0
        %2156 = vmatprep.subr.mxu0 0.0
        %2157 = vmatpush1.xpose.msra.mxu0 0.0
        %2158 = vmatprep.subr.mxu0 0.0
        %2159 = vmatpush1.xpose.msra.mxu0 0.0
        %2160 = vmatprep.subr.mxu0 0.0
        %2161 = vmatpush1.xpose.msra.mxu0 0.0
        %2162 = vmatprep.subr.mxu0 0.0
        %2163 = vmatpush1.xpose.msra.mxu0 0.0
        %2164 = vmatprep.subr.mxu0 0.0
        %2165 = vmatpush1.xpose.msra.mxu0 0.0
        %2166 = vmatprep.subr.mxu0 0.0
        %2167 = vmatpush1.xpose.msra.mxu0 0.0
        %2168 = vmatprep.subr.mxu0 0.0
        %2169 = vmatpush1.xpose.msra.mxu0 0.0
        %2170 = vmatprep.subr.mxu0 0.0
        %2171 = vmatpush1.xpose.msra.mxu0 0.0
        %2172 = vmatprep.subr.mxu0 0.0
        %2173 = vmatpush1.xpose.msra.mxu0 0.0
        %2174 = vmatprep.subr.mxu0 0.0
        %2175 = vmatpush1.xpose.msra.mxu0 0.0
        %2176 = vmatprep.subr.mxu0 0.0
        %2177 = vmatpush1.xpose.msra.mxu0 0.0
        %2178 = vmatprep.subr.mxu0 0.0
        %2179 = vmatpush1.xpose.msra.mxu0 0.0
        %2180 = vmatprep.subr.mxu0 0.0
        %2181 = vmatpush1.xpose.msra.mxu0 0.0
        %2182 = vmatprep.subr.mxu0 0.0
        %2183 = vmatpush1.xpose.msra.mxu0 0.0
        %2184 = vmatprep.subr.mxu0 0.0
        %2185 = vmatpush1.xpose.msra.mxu0 0.0
        %2186 = vmatprep.subr.mxu0 0.0
        %2187 = vmatpush1.xpose.msra.mxu0 0.0
        %2188 = vmatprep.subr.mxu0 0.0
        %2189 = vmatpush1.xpose.msra.mxu0 0.0
        %2190 = vmatprep.subr.mxu0 0.0
        %2191 = vmatpush1.xpose.msra.mxu0 0.0
        %2192 = vmatprep.subr.mxu0 0.0
        %2193 = vmatpush1.xpose.msra.mxu0 0.0
        %2194 = vmatprep.subr.mxu0 0.0
        %2195 = vmatpush1.xpose.msra.mxu0 0.0
        %2196 = vmatprep.subr.mxu0 0.0
        %2197 = vmatpush1.xpose.msra.mxu0 0.0
        %2198 = vmatprep.subr.mxu0 0.0
        %2199 = vmatpush1.xpose.msra.mxu0 0.0
        %2200 = vmatprep.subr.mxu0 0.0
        %2201 = vmatpush1.xpose.msra.mxu0 0.0
        %2202 = vmatprep.subr.mxu0 0.0
        %2203 = vmatpush1.xpose.msra.mxu0 0.0
        %2204 = vmatprep.subr.mxu0 0.0
        %2205 = vmatpush1.xpose.msra.mxu0 0.0
        %2206 = vmatprep.subr.mxu0 0.0
        %2207 = vmatpush1.xpose.msra.mxu0 0.0
        %2208 = vmatprep.subr.mxu0 0.0
        %2209 = vmatpush1.xpose.msra.mxu0 0.0
        %2210 = vmatprep.subr.mxu0 0.0
        %2211 = vmatpush1.xpose.msra.mxu0 0.0
        %2212 = vmatprep.subr.mxu0 0.0
        %2213 = vmatpush1.xpose.msra.mxu0 0.0
        %2214 = vmatprep.subr.mxu0 0.0
        %2215 = vmatpush1.xpose.msra.mxu0 0.0
        %2216 = vmatprep.mubr.f32.mxu0 0.0
        %2217 = vmatmul.mubr.f32.gmra.mrb[0].mxu0 %v2150
        %v2218 = vpop.f32.mrb[0].mxu0
        %v2219 = vadd.f32 0.0, %v2218
        %v2220 = vpop.f32.mrb[0].mxu0
        %2221 = vdwg.mxu0
        %v2222 = vmul.f32 %v2071, %v2071
        %v2223 = vmul.f32 %v2072, %v2072
        %v2224 = vmul.f32 %v2073, %v2073
        %v2225 = vmul.f32 %v2074, %v2074
        %v2226 = vmul.f32 %v2075, %v2075
        %v2227 = vmul.f32 %v2076, %v2076
        %v2228 = vmul.f32 %v2077, %v2077
        %v2229 = vmul.f32 %v2078, %v2078
        %2230 = vmatprep.subr.mxu0 0.0
        %2231 = vmatpush1.msra.mxu0 %v2222
        %2232 = vmatprep.subr.mxu0 0.0
        %2233 = vmatpush1.msra.mxu0 %v2223
        %2234 = vmatprep.subr.mxu0 0.0
        %2235 = vmatpush1.msra.mxu0 %v2224
        %2236 = vmatprep.subr.mxu0 0.0
        %2237 = vmatpush1.msra.mxu0 %v2225
        %2238 = vmatprep.subr.mxu0 0.0
        %2239 = vmatpush1.msra.mxu0 %v2226
        %2240 = vmatprep.subr.mxu0 0.0
        %2241 = vmatpush1.msra.mxu0 %v2227
        %2242 = vmatprep.subr.mxu0 0.0
        %2243 = vmatpush1.msra.mxu0 %v2228
        %2244 = vmatprep.subr.mxu0 0.0
        %2245 = vmatpush1.msra.mxu0 %v2229
        %2246 = vmatprep.subr.mxu0 0.0
        %2247 = vmatpush1.msra.mxu0 0.0
        %2248 = vmatprep.subr.mxu0 0.0
        %2249 = vmatpush1.msra.mxu0 0.0
        %2250 = vmatprep.subr.mxu0 0.0
        %2251 = vmatpush1.msra.mxu0 0.0
        %2252 = vmatprep.subr.mxu0 0.0
        %2253 = vmatpush1.msra.mxu0 0.0
        %2254 = vmatprep.subr.mxu0 0.0
        %2255 = vmatpush1.msra.mxu0 0.0
        %2256 = vmatprep.subr.mxu0 0.0
        %2257 = vmatpush1.msra.mxu0 0.0
        %2258 = vmatprep.subr.mxu0 0.0
        %2259 = vmatpush1.msra.mxu0 0.0
        %2260 = vmatprep.subr.mxu0 0.0
        %2261 = vmatpush1.msra.mxu0 0.0
        %2262 = vmatprep.subr.mxu0 0.0
        %2263 = vmatpush1.msra.mxu0 0.0
        %2264 = vmatprep.subr.mxu0 0.0
        %2265 = vmatpush1.msra.mxu0 0.0
        %2266 = vmatprep.subr.mxu0 0.0
        %2267 = vmatpush1.msra.mxu0 0.0
        %2268 = vmatprep.subr.mxu0 0.0
        %2269 = vmatpush1.msra.mxu0 0.0
        %2270 = vmatprep.subr.mxu0 0.0
        %2271 = vmatpush1.msra.mxu0 0.0
        %2272 = vmatprep.subr.mxu0 0.0
        %2273 = vmatpush1.msra.mxu0 0.0
        %2274 = vmatprep.subr.mxu0 0.0
        %2275 = vmatpush1.msra.mxu0 0.0
        %2276 = vmatprep.subr.mxu0 0.0
        %2277 = vmatpush1.msra.mxu0 0.0
        %2278 = vmatprep.subr.mxu0 0.0
        %2279 = vmatpush1.msra.mxu0 0.0
        %2280 = vmatprep.subr.mxu0 0.0
        %2281 = vmatpush1.msra.mxu0 0.0
        %2282 = vmatprep.subr.mxu0 0.0
        %2283 = vmatpush1.msra.mxu0 0.0
        %2284 = vmatprep.subr.mxu0 0.0
        %2285 = vmatpush1.msra.mxu0 0.0
        %2286 = vmatprep.subr.mxu0 0.0
        %2287 = vmatpush1.msra.mxu0 0.0
        %2288 = vmatprep.subr.mxu0 0.0
        %2289 = vmatpush1.msra.mxu0 0.0
        %2290 = vmatprep.subr.mxu0 0.0
        %2291 = vmatpush1.msra.mxu0 0.0
        %2292 = vmatprep.subr.mxu0 0.0
        %2293 = vmatpush1.msra.mxu0 0.0
        %2294 = vmatprep.mubr.f32.mxu0 0.0
        %2295 = vmatmul.mubr.f32.gmra.mrb[0].mxu0 %v295
        %v2296 = vpop.f32.mrb[0].mxu0
        %v2297 = vadd.f32 0.0, %v2296
        %v2298 = vpop.f32.mrb[0].mxu0
        %2299 = vdwg.mxu0
        %v2300 = vmul.f32 %v2071, %v283
        %v2301 = vmul.f32 %v2072, %v284
        %v2302 = vmul.f32 %v2073, %v285
        %v2303 = vmul.f32 %v2074, %v286
        %v2304 = vmul.f32 %v2075, %v287
        %v2305 = vmul.f32 %v2076, %v288
        %v2306 = vmul.f32 %v2077, %v289
        %v2307 = vmul.f32 %v2078, %v290
        %2308 = vmatprep.subr.mxu0 0.0
        %2309 = vmatpush1.msra.mxu0 %v2300
        %2310 = vmatprep.subr.mxu0 0.0
        %2311 = vmatpush1.msra.mxu0 %v2301
        %2312 = vmatprep.subr.mxu0 0.0
        %2313 = vmatpush1.msra.mxu0 %v2302
        %2314 = vmatprep.subr.mxu0 0.0
        %2315 = vmatpush1.msra.mxu0 %v2303
        %2316 = vmatprep.subr.mxu0 0.0
        %2317 = vmatpush1.msra.mxu0 %v2304
        %2318 = vmatprep.subr.mxu0 0.0
        %2319 = vmatpush1.msra.mxu0 %v2305
        %2320 = vmatprep.subr.mxu0 0.0
        %2321 = vmatpush1.msra.mxu0 %v2306
        %2322 = vmatprep.subr.mxu0 0.0
        %2323 = vmatpush1.msra.mxu0 %v2307
        %2324 = vmatprep.subr.mxu0 0.0
        %2325 = vmatpush1.msra.mxu0 0.0
        %2326 = vmatprep.subr.mxu0 0.0
        %2327 = vmatpush1.msra.mxu0 0.0
        %2328 = vmatprep.subr.mxu0 0.0
        %2329 = vmatpush1.msra.mxu0 0.0
        %2330 = vmatprep.subr.mxu0 0.0
        %2331 = vmatpush1.msra.mxu0 0.0
        %2332 = vmatprep.subr.mxu0 0.0
        %2333 = vmatpush1.msra.mxu0 0.0
        %2334 = vmatprep.subr.mxu0 0.0
        %2335 = vmatpush1.msra.mxu0 0.0
        %2336 = vmatprep.subr.mxu0 0.0
        %2337 = vmatpush1.msra.mxu0 0.0
        %2338 = vmatprep.subr.mxu0 0.0
        %2339 = vmatpush1.msra.mxu0 0.0
        %2340 = vmatprep.subr.mxu0 0.0
        %2341 = vmatpush1.msra.mxu0 0.0
        %2342 = vmatprep.subr.mxu0 0.0
        %2343 = vmatpush1.msra.mxu0 0.0
        %2344 = vmatprep.subr.mxu0 0.0
        %2345 = vmatpush1.msra.mxu0 0.0
        %2346 = vmatprep.subr.mxu0 0.0
        %2347 = vmatpush1.msra.mxu0 0.0
        %2348 = vmatprep.subr.mxu0 0.0
        %2349 = vmatpush1.msra.mxu0 0.0
        %2350 = vmatprep.subr.mxu0 0.0
        %2351 = vmatpush1.msra.mxu0 0.0
        %2352 = vmatprep.subr.mxu0 0.0
        %2353 = vmatpush1.msra.mxu0 0.0
        %2354 = vmatprep.subr.mxu0 0.0
        %2355 = vmatpush1.msra.mxu0 0.0
        %2356 = vmatprep.subr.mxu0 0.0
        %2357 = vmatpush1.msra.mxu0 0.0
        %2358 = vmatprep.subr.mxu0 0.0
        %2359 = vmatpush1.msra.mxu0 0.0
        %2360 = vmatprep.subr.mxu0 0.0
        %2361 = vmatpush1.msra.mxu0 0.0
        %2362 = vmatprep.subr.mxu0 0.0
        %2363 = vmatpush1.msra.mxu0 0.0
        %2364 = vmatprep.subr.mxu0 0.0
        %2365 = vmatpush1.msra.mxu0 0.0
        %2366 = vmatprep.subr.mxu0 0.0
        %2367 = vmatpush1.msra.mxu0 0.0
        %2368 = vmatprep.subr.mxu0 0.0
        %2369 = vmatpush1.msra.mxu0 0.0
        %2370 = vmatprep.subr.mxu0 0.0
        %2371 = vmatpush1.msra.mxu0 0.0
        %2372 = vmatprep.mubr.f32.mxu0 0.0
        %2373 = vmatmul.mubr.f32.gmra.mrb[0].mxu0 %v295
        %v2374 = vpop.f32.mrb[0].mxu0
        %v2375 = vadd.f32 0.0, %v2374
        %v2376 = vpop.f32.mrb[0].mxu0
        %2377 = vdwg.mxu0
        %v2379 = vsel %vm293, %v2375, 0
        %2381 = vmatprep.subr.mxu0 0.0
        %2382 = vmatpush1.xpose.msra.mxu0 %v371
        %2383 = vmatprep.subr.mxu0 0.0
        %2384 = vmatpush1.xpose.msra.mxu0 0.0
        %2385 = vmatprep.subr.mxu0 0.0
        %2386 = vmatpush1.xpose.msra.mxu0 0.0
        %2387 = vmatprep.subr.mxu0 0.0
        %2388 = vmatpush1.xpose.msra.mxu0 0.0
        %2389 = vmatprep.subr.mxu0 0.0
        %2390 = vmatpush1.xpose.msra.mxu0 0.0
        %2391 = vmatprep.subr.mxu0 0.0
        %2392 = vmatpush1.xpose.msra.mxu0 0.0
        %2393 = vmatprep.subr.mxu0 0.0
        %2394 = vmatpush1.xpose.msra.mxu0 0.0
        %2395 = vmatprep.subr.mxu0 0.0
        %2396 = vmatpush1.xpose.msra.mxu0 0.0
        %2397 = vmatprep.subr.mxu0 0.0
        %2398 = vmatpush1.xpose.msra.mxu0 0.0
        %2399 = vmatprep.subr.mxu0 0.0
        %2400 = vmatpush1.xpose.msra.mxu0 0.0
        %2401 = vmatprep.subr.mxu0 0.0
        %2402 = vmatpush1.xpose.msra.mxu0 0.0
        %2403 = vmatprep.subr.mxu0 0.0
        %2404 = vmatpush1.xpose.msra.mxu0 0.0
        %2405 = vmatprep.subr.mxu0 0.0
        %2406 = vmatpush1.xpose.msra.mxu0 0.0
        %2407 = vmatprep.subr.mxu0 0.0
        %2408 = vmatpush1.xpose.msra.mxu0 0.0
        %2409 = vmatprep.subr.mxu0 0.0
        %2410 = vmatpush1.xpose.msra.mxu0 0.0
        %2411 = vmatprep.subr.mxu0 0.0
        %2412 = vmatpush1.xpose.msra.mxu0 0.0
        %2413 = vmatprep.subr.mxu0 0.0
        %2414 = vmatpush1.xpose.msra.mxu0 0.0
        %2415 = vmatprep.subr.mxu0 0.0
        %2416 = vmatpush1.xpose.msra.mxu0 0.0
        %2417 = vmatprep.subr.mxu0 0.0
        %2418 = vmatpush1.xpose.msra.mxu0 0.0
        %2419 = vmatprep.subr.mxu0 0.0
        %2420 = vmatpush1.xpose.msra.mxu0 0.0
        %2421 = vmatprep.subr.mxu0 0.0
        %2422 = vmatpush1.xpose.msra.mxu0 0.0
        %2423 = vmatprep.subr.mxu0 0.0
        %2424 = vmatpush1.xpose.msra.mxu0 0.0
        %2425 = vmatprep.subr.mxu0 0.0
        %2426 = vmatpush1.xpose.msra.mxu0 0.0
        %2427 = vmatprep.subr.mxu0 0.0
        %2428 = vmatpush1.xpose.msra.mxu0 0.0
        %2429 = vmatprep.subr.mxu0 0.0
        %2430 = vmatpush1.xpose.msra.mxu0 0.0
        %2431 = vmatprep.subr.mxu0 0.0
        %2432 = vmatpush1.xpose.msra.mxu0 0.0
        %2433 = vmatprep.subr.mxu0 0.0
        %2434 = vmatpush1.xpose.msra.mxu0 0.0
        %2435 = vmatprep.subr.mxu0 0.0
        %2436 = vmatpush1.xpose.msra.mxu0 0.0
        %2437 = vmatprep.subr.mxu0 0.0
        %2438 = vmatpush1.xpose.msra.mxu0 0.0
        %2439 = vmatprep.subr.mxu0 0.0
        %2440 = vmatpush1.xpose.msra.mxu0 0.0
        %2441 = vmatprep.subr.mxu0 0.0
        %2442 = vmatpush1.xpose.msra.mxu0 0.0
        %2443 = vmatprep.subr.mxu0 0.0
        %2444 = vmatpush1.xpose.msra.mxu0 0.0
        %2445 = vmatprep.mubr.f32.mxu0 0.0
        %2446 = vmatmul.mubr.f32.gmra.mrb[0].mxu0 %v2379
        %v2447 = vpop.f32.mrb[0].mxu0
        %v2448 = vadd.f32 0.0, %v2447
        %v2449 = vpop.f32.mrb[0].mxu0
        %2450 = vdwg.mxu0
        %v2451 = vmul.f32 %v2219, %v440
        %v2452 = vmul.f32 %v2219, %v2219
        %v2453 = vadd.f32 %v2452, %v978
        %v2454 = vmul.f32 %v2448, 1024.0
        %v2455 = vsub.f32 %v2454, %v2451
        %v2456 = vmul.f32 %v2455, 4.0
        %v2457 = vmul.f32 %v2456, %v2451
        %v2459 = vsel %vm293, %v2297, 0
        %2461 = vmatprep.subr.mxu0 0.0
        %2462 = vmatpush1.xpose.msra.mxu0 %v371
        %2463 = vmatprep.subr.mxu0 0.0
        %2464 = vmatpush1.xpose.msra.mxu0 0.0
        %2465 = vmatprep.subr.mxu0 0.0
        %2466 = vmatpush1.xpose.msra.mxu0 0.0
        %2467 = vmatprep.subr.mxu0 0.0
        %2468 = vmatpush1.xpose.msra.mxu0 0.0
        %2469 = vmatprep.subr.mxu0 0.0
        %2470 = vmatpush1.xpose.msra.mxu0 0.0
        %2471 = vmatprep.subr.mxu0 0.0
        %2472 = vmatpush1.xpose.msra.mxu0 0.0
        %2473 = vmatprep.subr.mxu0 0.0
        %2474 = vmatpush1.xpose.msra.mxu0 0.0
        %2475 = vmatprep.subr.mxu0 0.0
        %2476 = vmatpush1.xpose.msra.mxu0 0.0
        %2477 = vmatprep.subr.mxu0 0.0
        %2478 = vmatpush1.xpose.msra.mxu0 0.0
        %2479 = vmatprep.subr.mxu0 0.0
        %2480 = vmatpush1.xpose.msra.mxu0 0.0
        %2481 = vmatprep.subr.mxu0 0.0
        %2482 = vmatpush1.xpose.msra.mxu0 0.0
        %2483 = vmatprep.subr.mxu0 0.0
        %2484 = vmatpush1.xpose.msra.mxu0 0.0
        %2485 = vmatprep.subr.mxu0 0.0
        %2486 = vmatpush1.xpose.msra.mxu0 0.0
        %2487 = vmatprep.subr.mxu0 0.0
        %2488 = vmatpush1.xpose.msra.mxu0 0.0
        %2489 = vmatprep.subr.mxu0 0.0
        %2490 = vmatpush1.xpose.msra.mxu0 0.0
        %2491 = vmatprep.subr.mxu0 0.0
        %2492 = vmatpush1.xpose.msra.mxu0 0.0
        %2493 = vmatprep.subr.mxu0 0.0
        %2494 = vmatpush1.xpose.msra.mxu0 0.0
        %2495 = vmatprep.subr.mxu0 0.0
        %2496 = vmatpush1.xpose.msra.mxu0 0.0
        %2497 = vmatprep.subr.mxu0 0.0
        %2498 = vmatpush1.xpose.msra.mxu0 0.0
        %2499 = vmatprep.subr.mxu0 0.0
        %2500 = vmatpush1.xpose.msra.mxu0 0.0
        %2501 = vmatprep.subr.mxu0 0.0
        %2502 = vmatpush1.xpose.msra.mxu0 0.0
        %2503 = vmatprep.subr.mxu0 0.0
        %2504 = vmatpush1.xpose.msra.mxu0 0.0
        %2505 = vmatprep.subr.mxu0 0.0
        %2506 = vmatpush1.xpose.msra.mxu0 0.0
        %2507 = vmatprep.subr.mxu0 0.0
        %2508 = vmatpush1.xpose.msra.mxu0 0.0
        %2509 = vmatprep.subr.mxu0 0.0
        %2510 = vmatpush1.xpose.msra.mxu0 0.0
        %2511 = vmatprep.subr.mxu0 0.0
        %2512 = vmatpush1.xpose.msra.mxu0 0.0
        %2513 = vmatprep.subr.mxu0 0.0
        %2514 = vmatpush1.xpose.msra.mxu0 0.0
        %2515 = vmatprep.subr.mxu0 0.0
        %2516 = vmatpush1.xpose.msra.mxu0 0.0
        %2517 = vmatprep.subr.mxu0 0.0
        %2518 = vmatpush1.xpose.msra.mxu0 0.0
        %2519 = vmatprep.subr.mxu0 0.0
        %2520 = vmatpush1.xpose.msra.mxu0 0.0
        %2521 = vmatprep.subr.mxu0 0.0
        %2522 = vmatpush1.xpose.msra.mxu0 0.0
        %2523 = vmatprep.subr.mxu0 0.0
        %2524 = vmatpush1.xpose.msra.mxu0 0.0
        %2525 = vmatprep.mubr.f32.mxu0 0.0
        %2526 = vmatmul.mubr.f32.gmra.mrb[0].mxu0 %v2459
        %v2527 = vpop.f32.mrb[0].mxu0
        %v2528 = vadd.f32 %v591, %v2527
        %v2529 = vpop.f32.mrb[0].mxu0
        %2530 = vdwg.mxu0
        %v2531 = vmul.f32 %v2528, 1024.0
        %v2532 = vsub.f32 %v2531, %v2453
        %v2533 = vmul.f32 %v2532, %v2453
        %vm2534 = vcmp.ne.f32.partialorder %v2533, 0.0
        %v2535 = vsel %vm2534, %v2533, 1.0
        %vm2536 = vcmp.ne.f32.partialorder %v2453, 0.0
        %v2537 = vsel %vm2536, %v2453, 1.0
        %vm2538 = vcmp.eq.f32.partialorder %v2532, 0.0
        %vm2539 = vmand %vm2538, %vm2536
        %v2540 = vmul.f32 %v2451, 2.0
        %v2541 = vrcp.pop %v2537
        %v2542 = vmul.f32 %v2540, %v2541
        %v2543 = vsel %vm2539, %v2542, 1.0
        %v2544 = vrcp.pop %v2535
        %v2545 = vmul.f32 %v2457, %v2544
        %v2546 = vsel %vm2534, %v2545, %v2543
        %v2547 = vsel %vm1073, %v2546, 0.0
        %2548 = vadd.xlane.f32.xlu0 %v2547
        %v2549 = vpop.xlane.xlu0 %2548
        %v2550 = vrot.slane %v2549, 4
        %v2551 = vadd.f32 %v2549, %v2550
        %v2552 = vrot.slane %v2551, 2
        %v2553 = vadd.f32 %v2551, %v2552
        %v2554 = vrot.slane %v2553, 1
        %v2555 = vadd.f32 %v2553, %v2554
        %s2556 = vtos %v2555
        %vm2557 = vcmp.eq.s32.totalorder %v595, 3
        %v2558 = vstv %s2556
        %v2559 = vsel %vm2557, %v2558, 0.0
        %v2560 = vadd.f32 %v2069, %v2559
        %v2561 = vld [vmem:[%s274] sm:$0x1]
        %v2562 = vmul.f32 %v2560, 0.25
        %v2563 = vadd.f32 %v2561, %v2562
        %vm2564 = vcmask 24576
        %2565 = vst.msk [vmem:[%s274] sm:$0x1] %vm2564, %v2563
        %s2566 = sand.u32 %s142, 1
        %s2567 = scalar_lea.sflag [#allocation4], %s2566
        %s2568 = sand.u32 %s142, 1
        %s2569 = scalar_lea.vmem [#allocation7], %s2568
        // Predicated region
        $region49: #{tpu_custom_call.1} parent=35 // pred_check
          %p2570 = pneg %p152
        $region50: #{tpu_custom_call.1} parent=35 // pred_check_branch
          %2572 = sbr.rel (%p2570) target = $region52
        $region51: #{tpu_custom_call.1} parent=35 // pred_region
          %s2574 = ssub.s32 16, 16
          %2575 = vsyncadd %s2567, %s2574
          %s2576 = smul.addr %s28, 16
          %s2577 = scalar_lea.hbm %s4, %s2576
          %s2579 = sshll.u32 %s2569, 4
          %s2580 = int_to_ptr.vmem [resolvable:$true] %s2579
          %2582 = dma.vmem_to_hbm [thread:$0]  %s2580, 16, %s2577, %s2567
        $region52: #{tpu_custom_call.1} parent=35 // pred_fallthru
          _
      $region36: #{tpu_custom_call.1} parent=5 // pred_fallthru
        _
      %p2583 = scmp.le.s32.totalorder 2, %s19
      // Predicated region
      $region53: #{tpu_custom_call.1} parent=5 // pred_check
        %p2584 = pneg %p2583
      $region54: #{tpu_custom_call.1} parent=5 // pred_check_branch
        %2586 = sbr.rel (%p2584) target = $region56
      $region55: #{tpu_custom_call.1} parent=5 // pred_region
        %s2587 = ssub.s32 %s19, 2
        // Predicated region
        $region57: #{tpu_custom_call.1} parent=55 // pred_check
          %p2588 = pneg %p158
        $region58: #{tpu_custom_call.1} parent=55 // pred_check_branch
          %2590 = sbr.rel (%p2588) target = $region60
        $region59: #{tpu_custom_call.1} parent=55 // pred_region
          %s2591 = sand.u32 %s143, 1
          %s2592 = scalar_lea.sflag [#allocation4], %s2591
          %s2593 = sand.u32 %s143, 1
          %s2594 = scalar_lea.vmem [#allocation7], %s2593
          %2595 = dma.done %s2592, 16
        $region60: #{tpu_custom_call.1} parent=55 // pred_fallthru
          _
      $region56: #{tpu_custom_call.1} parent=5 // pred_fallthru
        _
    $region6: #{tpu_custom_call.1} parent=1 // loop_footer
      %s23 = sadd.s32 1, %s19
    $region7: #{tpu_custom_call.1} parent=1 // loop_footer_branch
      %18 = sbr.rel target = $region3
    $region8: #{tpu_custom_call.1} parent=1 // loop_exit
      _
    %2596 = vsyncpa [#allocation3], 1
    %s2597 = scalar_lea.sflag [#allocation3], 1
    %2598 = vsyncpa %s2597, 1
    %2599 = vsyncpa [#allocation6], 1
    %s2600 = scalar_lea.sflag [#allocation6], 1
    %2601 = vsyncpa %s2600, 1
    %2602 = vsyncpa [#allocation4], 1
    %s2603 = scalar_lea.sflag [#allocation4], 1
    %2604 = vsyncpa %s2603, 1

</llo_original>
